<compile_context>
chip_gen: v7x
topology: tpu7x:2x2x1
jax: 0.10.0
libtpu: 0.0.40
codegen_flags: <defaults>
</compile_context>

<pallas_src>
import jax
import jax.numpy as jnp
from jax.experimental import pallas as pl
from jax.experimental.pallas import tpu as pltpu

IN_FEATURES = 784          # 1 * 28 * 28
HIDDEN = 512


def autoencoder_kernel(x_ref,
                       w1_ref, b1_ref,   # encoder linear1: 784 -> 512
                       w2_ref, b2_ref,   # encoder linear2: 512 -> latent_pad
                       w3_ref, b3_ref,   # decoder linear1: latent_pad -> 512
                       w4_ref, b4_ref,   # decoder linear2: 512 -> 784
                       o_ref):
    bf16, f32 = jnp.bfloat16, jnp.float32

    # Read f32 input once from HBM, cast to bf16 in VMEM for the MXU.
    x = x_ref[...].astype(bf16)                       # (TB, 784)

    # Encoder -- bf16 MXU operands, f32 accumulation, f32 activation math.
    h = jnp.dot(x, w1_ref[...], preferred_element_type=f32) + b1_ref[...].astype(f32)
    h = jnp.maximum(h, 0.0)                           # relu (f32, VPU)
    z = jnp.dot(h.astype(bf16), w2_ref[...], preferred_element_type=f32) \
        + b2_ref[...].astype(f32)

    # Decoder
    d = jnp.dot(z.astype(bf16), w3_ref[...], preferred_element_type=f32) \
        + b3_ref[...].astype(f32)
    d = jnp.maximum(d, 0.0)                           # relu
    y = jnp.dot(d.astype(bf16), w4_ref[...], preferred_element_type=f32) \
        + b4_ref[...].astype(f32)

    o_ref[...] = jax.nn.sigmoid(y).astype(o_ref.dtype)   # sigmoid (f32, EUP)


def init_params(key, latent_dims):
    """Deterministic PyTorch-nn.Linear-style init (uniform +-1/sqrt(fan_in)).
    Weights stored as (in_features, out_features), biases as (1, out_features)."""
    dims = [(IN_FEATURES, HIDDEN), (HIDDEN, latent_dims),
            (latent_dims, HIDDEN), (HIDDEN, IN_FEATURES)]
    params = []
    for (fan_in, fan_out) in dims:
        key, kw, kb = jax.random.split(key, 3)
        bound = 1.0 / jnp.sqrt(float(fan_in))
        w = jax.random.uniform(kw, (fan_in, fan_out), jnp.float32, -bound, bound)
        b = jax.random.uniform(kb, (1, fan_out), jnp.float32, -bound, bound)
        params += [w, b]
    return tuple(params)


def pack_params(params_f32, latent_dims):
    """Cast params to bf16 and zero-pad the latent dim up to 128 lanes.
    Padding is exact: padded weight cols/rows and padded bias entries are 0."""
    w1, b1, w2, b2, w3, b3, w4, b4 = params_f32
    lat_pad = max(128, ((latent_dims + 127) // 128) * 128)
    bf = lambda a: a.astype(jnp.bfloat16)

    w2p = jnp.zeros((HIDDEN, lat_pad), jnp.bfloat16).at[:, :latent_dims].set(bf(w2))
    b2p = jnp.zeros((1, lat_pad), jnp.bfloat16).at[:, :latent_dims].set(bf(b2))
    w3p = jnp.zeros((lat_pad, HIDDEN), jnp.bfloat16).at[:latent_dims, :].set(bf(w3))

    # Decoder output weights stay at their natural 784 width (lane-dense output
    # is written directly; no 896 padding / post-kernel slice needed).
    return (bf(w1), bf(b1), w2p, b2p, w3p, bf(b3), bf(w4), bf(b4))


def _round_up(v, m):
    return ((v + m - 1) // m) * m


def _choose_tb(B):
    """Batch tile height: multiple of 8 (f32 sublanes), capped at 512, and
    >= 2 tiles once B > 8 so v7x's two TensorCores both get work."""
    if B <= 8:
        return 8
    return max(8, min(512, _round_up((B + 1) // 2, 8)))


def autoencoder_forward(x_nchw, packed_params):
    """x_nchw: (B, 1, 28, 28) float32 -> (B, 1, 28, 28) float32."""
    B = x_nchw.shape[0]
    # torch.flatten(x, start_dim=1) -- free bitcast; kept in f32 (cast to bf16
    # happens inside the kernel, avoiding a separate XLA cast pass over HBM).
    x_flat = x_nchw.reshape(B, IN_FEATURES)

    TB = _choose_tb(B)
    B_pad = _round_up(B, TB)
    if B_pad != B:
        x_flat = jnp.pad(x_flat, ((0, B_pad - B), (0, 0)))

    weights = packed_params

    def resident_spec(arr):
        # Constant block index across the batch grid -> DMA'd once, stays
        # resident in VMEM across grid steps.
        zeros = (0,) * arr.ndim
        return pl.BlockSpec(arr.shape, lambda i, _z=zeros: _z)

    out = pl.pallas_call(
        autoencoder_kernel,
        out_shape=jax.ShapeDtypeStruct((B_pad, IN_FEATURES), jnp.float32),
        grid_spec=pltpu.PrefetchScalarGridSpec(
            num_scalar_prefetch=0,
            grid=(B_pad // TB,),
            in_specs=[pl.BlockSpec((TB, IN_FEATURES), lambda i: (i, 0))]
                     + [resident_spec(a) for a in weights],
            # Last dim 784 equals the full array dim -> legal block shape,
            # and the output is written at its natural width (no slice pass).
            out_specs=pl.BlockSpec((TB, IN_FEATURES), lambda i: (i, 0)),
        ),
        compiler_params=pltpu.CompilerParams(
            dimension_semantics=("parallel",),    # v7x: split batch tiles over 2 TCs
            vmem_limit_bytes=32 << 20,
        ),
    )(x_flat, *weights)

    if B_pad != B:
        out = out[:B]
    return out.reshape(B, 1, 28, 28)


if __name__ == "__main__":
    latent_dims = 32
    batch = 8

    key = jax.random.PRNGKey(0)
    key, kx = jax.random.split(key)
    x = jax.random.normal(kx, (batch, 1, 28, 28), jnp.float32)  # NCHW, like PyTorch

    params_f32 = init_params(key, latent_dims)
    packed = pack_params(params_f32, latent_dims)

    out = autoencoder_forward(x, packed)
    jax.block_until_ready(out)

    assert out.shape == (batch, 1, 28, 28)
    assert out.dtype == jnp.float32

    # Plain-JAX reference of the same (bf16-weight, f32-accumulate) forward pass.
    w1, b1, w2, b2, w3, b3, w4, b4 = params_f32
    bf16, f32 = jnp.bfloat16, jnp.float32

    def bdot(a, w):
        return jnp.dot(a.astype(bf16), w.astype(bf16), preferred_element_type=f32)

    def bbias(b):
        return b.astype(bf16).astype(f32)

    xf = x.reshape(batch, IN_FEATURES)
    h = jnp.maximum(bdot(xf, w1) + bbias(b1), 0.0)
    z = bdot(h, w2) + bbias(b2)
    d = jnp.maximum(bdot(z, w3) + bbias(b3), 0.0)
    ref = jax.nn.sigmoid(bdot(d, w4) + bbias(b4)).reshape(batch, 1, 28, 28)

    max_err = float(jnp.max(jnp.abs(out - ref)))
    assert jnp.allclose(out, ref, atol=2e-3, rtol=2e-3), max_err

    print("KERNEL_OK")
</pallas_src>

<mosaic_0001>
module attributes {stable_mosaic.version = 11 : i64} {
  func.func @autoencoder_kernel(%arg0: i32, %arg1: memref<8x784xf32, #tpu.memory_space<vmem>>, %arg2: memref<784x512xbf16, #tpu.memory_space<vmem>>, %arg3: memref<1x512xbf16, #tpu.memory_space<vmem>>, %arg4: memref<512x128xbf16, #tpu.memory_space<vmem>>, %arg5: memref<1x128xbf16, #tpu.memory_space<vmem>>, %arg6: memref<128x512xbf16, #tpu.memory_space<vmem>>, %arg7: memref<1x512xbf16, #tpu.memory_space<vmem>>, %arg8: memref<512x784xbf16, #tpu.memory_space<vmem>>, %arg9: memref<1x784xbf16, #tpu.memory_space<vmem>>, %arg10: memref<8x784xf32, #tpu.memory_space<vmem>>) attributes {dimension_semantics = [#tpu.dimension_semantics<parallel>], iteration_bounds = array<i64: 1>, scalar_prefetch = 0 : i64, scratch_operands = 0 : i64, tpu.core_type = #tpu.core_type<tc>, window_params = [{transform_indices = @transform_0, window_bounds = array<i64: 8, 784>}, {pipeline_mode = #tpu.pipeline_mode<synchronous>, transform_indices = @transform_1, window_bounds = array<i64: 784, 512>}, {pipeline_mode = #tpu.pipeline_mode<synchronous>, transform_indices = @transform_2, window_bounds = array<i64: 1, 512>}, {pipeline_mode = #tpu.pipeline_mode<synchronous>, transform_indices = @transform_3, window_bounds = array<i64: 512, 128>}, {pipeline_mode = #tpu.pipeline_mode<synchronous>, transform_indices = @transform_4, window_bounds = array<i64: 1, 128>}, {pipeline_mode = #tpu.pipeline_mode<synchronous>, transform_indices = @transform_5, window_bounds = array<i64: 128, 512>}, {pipeline_mode = #tpu.pipeline_mode<synchronous>, transform_indices = @transform_6, window_bounds = array<i64: 1, 512>}, {pipeline_mode = #tpu.pipeline_mode<synchronous>, transform_indices = @transform_7, window_bounds = array<i64: 512, 784>}, {pipeline_mode = #tpu.pipeline_mode<synchronous>, transform_indices = @transform_8, window_bounds = array<i64: 1, 784>}, {transform_indices = @transform_9, window_bounds = array<i64: 8, 784>}]} {
    %c0 = arith.constant 0 : index
    %c0_0 = arith.constant 0 : index
    %0 = vector.load %arg1[%c0, %c0_0] : memref<8x784xf32, #tpu.memory_space<vmem>>, vector<8x784xf32>
    %1 = arith.truncf %0 : vector<8x784xf32> to vector<8x784xbf16>
    %c0_1 = arith.constant 0 : index
    %c0_2 = arith.constant 0 : index
    %2 = vector.load %arg2[%c0_1, %c0_2] : memref<784x512xbf16, #tpu.memory_space<vmem>>, vector<784x512xbf16>
    %cst = arith.constant dense<0.000000e+00> : vector<8x512xf32>
    %3 = tpu.matmul %1, %2, %cst {dimension_numbers = #tpu.dot_dimension_numbers<[1], [0], [0], [1], [0, 0, 1, 1], [], []>} : vector<8x784xbf16>, vector<784x512xbf16>, vector<8x512xf32> -> vector<8x512xf32>
    %c0_3 = arith.constant 0 : index
    %c0_4 = arith.constant 0 : index
    %4 = vector.load %arg3[%c0_3, %c0_4] : memref<1x512xbf16, #tpu.memory_space<vmem>>, vector<1x512xbf16>
    %5 = arith.extf %4 : vector<1x512xbf16> to vector<1x512xf32>
    %6 = vector.broadcast %5 : vector<1x512xf32> to vector<8x512xf32>
    %7 = arith.addf %3, %6 : vector<8x512xf32>
    %cst_5 = arith.constant 0.000000e+00 : f32
    %8 = vector.broadcast %cst_5 : f32 to vector<8x512xf32>
    %9 = arith.maximumf %7, %8 : vector<8x512xf32>
    %10 = arith.truncf %9 : vector<8x512xf32> to vector<8x512xbf16>
    %c0_6 = arith.constant 0 : index
    %c0_7 = arith.constant 0 : index
    %11 = vector.load %arg4[%c0_6, %c0_7] : memref<512x128xbf16, #tpu.memory_space<vmem>>, vector<512x128xbf16>
    %cst_8 = arith.constant dense<0.000000e+00> : vector<8x128xf32>
    %12 = tpu.matmul %10, %11, %cst_8 {dimension_numbers = #tpu.dot_dimension_numbers<[1], [0], [0], [1], [0, 0, 1, 1], [], []>} : vector<8x512xbf16>, vector<512x128xbf16>, vector<8x128xf32> -> vector<8x128xf32>
    %c0_9 = arith.constant 0 : index
    %c0_10 = arith.constant 0 : index
    %13 = vector.load %arg5[%c0_9, %c0_10] : memref<1x128xbf16, #tpu.memory_space<vmem>>, vector<1x128xbf16>
    %14 = arith.extf %13 : vector<1x128xbf16> to vector<1x128xf32>
    %15 = vector.broadcast %14 : vector<1x128xf32> to vector<8x128xf32>
    %16 = arith.addf %12, %15 : vector<8x128xf32>
    %17 = arith.truncf %16 : vector<8x128xf32> to vector<8x128xbf16>
    %c0_11 = arith.constant 0 : index
    %c0_12 = arith.constant 0 : index
    %18 = vector.load %arg6[%c0_11, %c0_12] : memref<128x512xbf16, #tpu.memory_space<vmem>>, vector<128x512xbf16>
    %cst_13 = arith.constant dense<0.000000e+00> : vector<8x512xf32>
    %19 = tpu.matmul %17, %18, %cst_13 {dimension_numbers = #tpu.dot_dimension_numbers<[1], [0], [0], [1], [0, 0, 1, 1], [], []>} : vector<8x128xbf16>, vector<128x512xbf16>, vector<8x512xf32> -> vector<8x512xf32>
    %c0_14 = arith.constant 0 : index
    %c0_15 = arith.constant 0 : index
    %20 = vector.load %arg7[%c0_14, %c0_15] : memref<1x512xbf16, #tpu.memory_space<vmem>>, vector<1x512xbf16>
    %21 = arith.extf %20 : vector<1x512xbf16> to vector<1x512xf32>
    %22 = vector.broadcast %21 : vector<1x512xf32> to vector<8x512xf32>
    %23 = arith.addf %19, %22 : vector<8x512xf32>
    %cst_16 = arith.constant 0.000000e+00 : f32
    %24 = vector.broadcast %cst_16 : f32 to vector<8x512xf32>
    %25 = arith.maximumf %23, %24 : vector<8x512xf32>
    %26 = arith.truncf %25 : vector<8x512xf32> to vector<8x512xbf16>
    %c0_17 = arith.constant 0 : index
    %c0_18 = arith.constant 0 : index
    %27 = vector.load %arg8[%c0_17, %c0_18] : memref<512x784xbf16, #tpu.memory_space<vmem>>, vector<512x784xbf16>
    %cst_19 = arith.constant dense<0.000000e+00> : vector<8x784xf32>
    %28 = tpu.matmul %26, %27, %cst_19 {dimension_numbers = #tpu.dot_dimension_numbers<[1], [0], [0], [1], [0, 0, 1, 1], [], []>} : vector<8x512xbf16>, vector<512x784xbf16>, vector<8x784xf32> -> vector<8x784xf32>
    %c0_20 = arith.constant 0 : index
    %c0_21 = arith.constant 0 : index
    %29 = vector.load %arg9[%c0_20, %c0_21] : memref<1x784xbf16, #tpu.memory_space<vmem>>, vector<1x784xbf16>
    %30 = arith.extf %29 : vector<1x784xbf16> to vector<1x784xf32>
    %31 = vector.broadcast %30 : vector<1x784xf32> to vector<8x784xf32>
    %32 = arith.addf %28, %31 : vector<8x784xf32>
    %33 = arith.negf %32 : vector<8x784xf32>
    %34 = math.exp %33 : vector<8x784xf32>
    %cst_22 = arith.constant 1.000000e+00 : f32
    %35 = vector.broadcast %cst_22 : f32 to vector<8x784xf32>
    %36 = arith.addf %35, %34 : vector<8x784xf32>
    %37 = arith.divf %35, %36 : vector<8x784xf32>
    %c0_23 = arith.constant 0 : index
    %c0_24 = arith.constant 0 : index
    %38 = vector.load %arg10[%c0_23, %c0_24] : memref<8x784xf32, #tpu.memory_space<vmem>>, vector<8x784xf32>
    tpu.vector_store %arg10[%c0_23, %c0_24], %37 {strides = array<i32>} : memref<8x784xf32, #tpu.memory_space<vmem>>, vector<8x784xf32>,
    return
  }
  func.func @transform_0(%arg0: i32) -> (i32, i32) {
    %c0_i32 = arith.constant 0 : i32
    %c0_i32_0 = arith.constant 0 : i32
    return %arg0, %c0_i32 : i32, i32
  }
  func.func @transform_1(%arg0: i32) -> (i32, i32) {
    %c0_i32 = arith.constant 0 : i32
    %c0_i32_0 = arith.constant 0 : i32
    %c0_i32_1 = arith.constant 0 : i32
    return %c0_i32, %c0_i32_0 : i32, i32
  }
  func.func @transform_2(%arg0: i32) -> (i32, i32) {
    %c0_i32 = arith.constant 0 : i32
    %c0_i32_0 = arith.constant 0 : i32
    %c0_i32_1 = arith.constant 0 : i32
    return %c0_i32, %c0_i32_0 : i32, i32
  }
  func.func @transform_3(%arg0: i32) -> (i32, i32) {
    %c0_i32 = arith.constant 0 : i32
    %c0_i32_0 = arith.constant 0 : i32
    %c0_i32_1 = arith.constant 0 : i32
    return %c0_i32, %c0_i32_0 : i32, i32
  }
  func.func @transform_4(%arg0: i32) -> (i32, i32) {
    %c0_i32 = arith.constant 0 : i32
    %c0_i32_0 = arith.constant 0 : i32
    %c0_i32_1 = arith.constant 0 : i32
    return %c0_i32, %c0_i32_0 : i32, i32
  }
  func.func @transform_5(%arg0: i32) -> (i32, i32) {
    %c0_i32 = arith.constant 0 : i32
    %c0_i32_0 = arith.constant 0 : i32
    %c0_i32_1 = arith.constant 0 : i32
    return %c0_i32, %c0_i32_0 : i32, i32
  }
  func.func @transform_6(%arg0: i32) -> (i32, i32) {
    %c0_i32 = arith.constant 0 : i32
    %c0_i32_0 = arith.constant 0 : i32
    %c0_i32_1 = arith.constant 0 : i32
    return %c0_i32, %c0_i32_0 : i32, i32
  }
  func.func @transform_7(%arg0: i32) -> (i32, i32) {
    %c0_i32 = arith.constant 0 : i32
    %c0_i32_0 = arith.constant 0 : i32
    %c0_i32_1 = arith.constant 0 : i32
    return %c0_i32, %c0_i32_0 : i32, i32
  }
  func.func @transform_8(%arg0: i32) -> (i32, i32) {
    %c0_i32 = arith.constant 0 : i32
    %c0_i32_0 = arith.constant 0 : i32
    %c0_i32_1 = arith.constant 0 : i32
    return %c0_i32, %c0_i32_0 : i32, i32
  }
  func.func @transform_9(%arg0: i32) -> (i32, i32) {
    %c0_i32 = arith.constant 0 : i32
    %c0_i32_0 = arith.constant 0 : i32
    return %arg0, %c0_i32 : i32, i32
  }
}

</mosaic_0001>

<llo_original>
// kernel: tpu_custom_call.1
$region0: #{tpu_custom_call.1}
  #allocation0 [shape = 'u32[]', space=smem, size = 0x4, offset = 0x4, fixed_abs, tag = 'smem constant byte address 0x4 - core index']
  #allocation1 [shape = 'u32[144,128]{1,0:T(1,128)}', space=vmem, size = 0x12000, scoped, tag = 'internal scratch']
  %s0 = inlined_call_operand.vmem [shape: f32[8,784], index: 0, kind: input, shape index: {}]
  %s1 = inlined_call_operand.vmem [shape: bf16[784,512], index: 1, kind: input, shape index: {}]
  %s2 = inlined_call_operand.vmem [shape: bf16[1,512], index: 2, kind: input, shape index: {}]
  %s3 = inlined_call_operand.vmem [shape: bf16[512,128], index: 3, kind: input, shape index: {}]
  %s4 = inlined_call_operand.vmem [shape: bf16[1,128], index: 4, kind: input, shape index: {}]
  %s5 = inlined_call_operand.vmem [shape: bf16[128,512], index: 5, kind: input, shape index: {}]
  %s6 = inlined_call_operand.vmem [shape: bf16[1,512], index: 6, kind: input, shape index: {}]
  %s7 = inlined_call_operand.vmem [shape: bf16[512,784], index: 7, kind: input, shape index: {}]
  %s8 = inlined_call_operand.vmem [shape: bf16[1,784], index: 8, kind: input, shape index: {}]
  %s9 = inlined_call_operand.hbm [shape: f32[8,784], index: 9, kind: output, shape index: {}]
  %s10 = sld [smem:[#allocation0]]
  $region46: #{tpu_custom_call.1} parent=0
    _
  %s12 = ssub.s32 1, %s10
  %s13 = scalar_select 0, %s12, %s10
  $region1: #{tpu_custom_call.1} parent=0
    #allocation2 [shape = 'u8[28672]{0}', space=vmem, size = 0x7000, scoped, tag = 'output window, operand 0, single buffered']
    #allocation3 [shape = 's32[1]{0}', space=sflag, size = 0x4, scoped, tag = 'scoped memory for tpu_custom_call.1']
    %14 = vsyncpa [#allocation3], 0
    // Predicated region
    $region2: #{tpu_custom_call.1} parent=1 // pred_check
      _
    $region3: #{tpu_custom_call.1} parent=1 // pred_check_branch
      %16 = sbr.rel (0) target = $region5
    $region4: #{tpu_custom_call.1} parent=1 // pred_region
      _
    $region5: #{tpu_custom_call.1} parent=1 // pred_fallthru
      _
    // Predicated region
    $region6: #{tpu_custom_call.1} parent=1 // pred_check
      _
    $region7: #{tpu_custom_call.1} parent=1 // pred_check_branch
      %18 = sbr.rel (0) target = $region9
    $region8: #{tpu_custom_call.1} parent=1 // pred_region
      _
    $region9: #{tpu_custom_call.1} parent=1 // pred_fallthru
      _
    // Predicated region
    $region10: #{tpu_custom_call.1} parent=1 // pred_check
      _
    $region11: #{tpu_custom_call.1} parent=1 // pred_check_branch
      %20 = sbr.rel (0) target = $region13
    $region12: #{tpu_custom_call.1} parent=1 // pred_region
      _
    $region13: #{tpu_custom_call.1} parent=1 // pred_fallthru
      _
    // Predicated region
    $region14: #{tpu_custom_call.1} parent=1 // pred_check
      _
    $region15: #{tpu_custom_call.1} parent=1 // pred_check_branch
      %22 = sbr.rel (0) target = $region17
    $region16: #{tpu_custom_call.1} parent=1 // pred_region
      _
    $region17: #{tpu_custom_call.1} parent=1 // pred_fallthru
      _
    // Predicated region
    $region18: #{tpu_custom_call.1} parent=1 // pred_check
      _
    $region19: #{tpu_custom_call.1} parent=1 // pred_check_branch
      %24 = sbr.rel (0) target = $region21
    $region20: #{tpu_custom_call.1} parent=1 // pred_region
      _
    $region21: #{tpu_custom_call.1} parent=1 // pred_fallthru
      _
    // Predicated region
    $region22: #{tpu_custom_call.1} parent=1 // pred_check
      _
    $region23: #{tpu_custom_call.1} parent=1 // pred_check_branch
      %26 = sbr.rel (0) target = $region25
    $region24: #{tpu_custom_call.1} parent=1 // pred_region
      _
    $region25: #{tpu_custom_call.1} parent=1 // pred_fallthru
      _
    // Predicated region
    $region26: #{tpu_custom_call.1} parent=1 // pred_check
      _
    $region27: #{tpu_custom_call.1} parent=1 // pred_check_branch
      %28 = sbr.rel (0) target = $region29
    $region28: #{tpu_custom_call.1} parent=1 // pred_region
      _
    $region29: #{tpu_custom_call.1} parent=1 // pred_fallthru
      _
    // Predicated region
    $region30: #{tpu_custom_call.1} parent=1 // pred_check
      _
    $region31: #{tpu_custom_call.1} parent=1 // pred_check_branch
      %30 = sbr.rel (0) target = $region33
    $region32: #{tpu_custom_call.1} parent=1 // pred_region
      _
    $region33: #{tpu_custom_call.1} parent=1 // pred_fallthru
      _
    // Predicated region
    $region34: #{tpu_custom_call.1} parent=1 // pred_check
      _
    $region35: #{tpu_custom_call.1} parent=1 // pred_check_branch
      %32 = sbr.rel (0) target = $region37
    $region36: #{tpu_custom_call.1} parent=1 // pred_region
      _
    $region37: #{tpu_custom_call.1} parent=1 // pred_fallthru
      _
    %v34 = vld [vmem:[%s0] sm:$0xff]
    %v35 = vld [vmem:[%s0 + $0x8] sm:$0xff]
    %v36 = vld [vmem:[%s0 + $0x10] sm:$0xff]
    %v37 = vld [vmem:[%s0 + $0x18] sm:$0xff]
    %v38 = vld [vmem:[%s0 + $0x20] sm:$0xff]
    %v39 = vld [vmem:[%s0 + $0x28] sm:$0xff]
    %v40 = vld [vmem:[%s0 + $0x30] sm:$0xff]
    %v41 = vpack.c.bf16 %v34, %v34
    %v42 = vpack.c.bf16 %v35, %v35
    %v43 = vpack.c.bf16 %v36, %v36
    %v44 = vpack.c.bf16 %v37, %v37
    %v45 = vpack.c.bf16 %v38, %v38
    %v46 = vpack.c.bf16 %v39, %v39
    %v47 = vpack.c.bf16 %v40, %v40
    %v48 = vld [vmem:[%s1] sm:$0xff]
    %v49 = vld [vmem:[%s1 + $0x8] sm:$0xff]
    %v50 = vld [vmem:[%s1 + $0x10] sm:$0xff]
    %v51 = vld [vmem:[%s1 + $0x18] sm:$0xff]
    %v52 = vld [vmem:[%s1 + $0x20] sm:$0xff]
    %v53 = vld [vmem:[%s1 + $0x28] sm:$0xff]
    %v54 = vld [vmem:[%s1 + $0x30] sm:$0xff]
    %v55 = vld [vmem:[%s1 + $0x38] sm:$0xff]
    %v56 = vld [vmem:[%s1 + $0x40] sm:$0xff]
    %v57 = vld [vmem:[%s1 + $0x48] sm:$0xff]
    %v58 = vld [vmem:[%s1 + $0x50] sm:$0xff]
    %v59 = vld [vmem:[%s1 + $0x58] sm:$0xff]
    %v60 = vld [vmem:[%s1 + $0x60] sm:$0xff]
    %v61 = vld [vmem:[%s1 + $0x68] sm:$0xff]
    %v62 = vld [vmem:[%s1 + $0x70] sm:$0xff]
    %v63 = vld [vmem:[%s1 + $0x78] sm:$0xff]
    %v64 = vld [vmem:[%s1 + $0x80] sm:$0xff]
    %v65 = vld [vmem:[%s1 + $0x88] sm:$0xff]
    %v66 = vld [vmem:[%s1 + $0x90] sm:$0xff]
    %v67 = vld [vmem:[%s1 + $0x98] sm:$0xff]
    %v68 = vld [vmem:[%s1 + $0xa0] sm:$0xff]
    %v69 = vld [vmem:[%s1 + $0xa8] sm:$0xff]
    %v70 = vld [vmem:[%s1 + $0xb0] sm:$0xff]
    %v71 = vld [vmem:[%s1 + $0xb8] sm:$0xff]
    %v72 = vld [vmem:[%s1 + $0xc0] sm:$0xff]
    %v73 = vld [vmem:[%s1 + $0xc8] sm:$0xff]
    %v74 = vld [vmem:[%s1 + $0xd0] sm:$0xff]
    %v75 = vld [vmem:[%s1 + $0xd8] sm:$0xff]
    %v76 = vld [vmem:[%s1 + $0xe0] sm:$0xff]
    %v77 = vld [vmem:[%s1 + $0xe8] sm:$0xff]
    %v78 = vld [vmem:[%s1 + $0xf0] sm:$0xff]
    %v79 = vld [vmem:[%s1 + $0xf8] sm:$0xff]
    %v80 = vld [vmem:[%s1 + $0x100] sm:$0xff]
    %v81 = vld [vmem:[%s1 + $0x108] sm:$0xff]
    %v82 = vld [vmem:[%s1 + $0x110] sm:$0xff]
    %v83 = vld [vmem:[%s1 + $0x118] sm:$0xff]
    %v84 = vld [vmem:[%s1 + $0x120] sm:$0xff]
    %v85 = vld [vmem:[%s1 + $0x128] sm:$0xff]
    %v86 = vld [vmem:[%s1 + $0x130] sm:$0xff]
    %v87 = vld [vmem:[%s1 + $0x138] sm:$0xff]
    %v88 = vld [vmem:[%s1 + $0x140] sm:$0xff]
    %v89 = vld [vmem:[%s1 + $0x148] sm:$0xff]
    %v90 = vld [vmem:[%s1 + $0x150] sm:$0xff]
    %v91 = vld [vmem:[%s1 + $0x158] sm:$0xff]
    %v92 = vld [vmem:[%s1 + $0x160] sm:$0xff]
    %v93 = vld [vmem:[%s1 + $0x168] sm:$0xff]
    %v94 = vld [vmem:[%s1 + $0x170] sm:$0xff]
    %v95 = vld [vmem:[%s1 + $0x178] sm:$0xff]
    %v96 = vld [vmem:[%s1 + $0x180] sm:$0xff]
    %v97 = vld [vmem:[%s1 + $0x188] sm:$0xff]
    %v98 = vld [vmem:[%s1 + $0x190] sm:$0xff]
    %v99 = vld [vmem:[%s1 + $0x198] sm:$0xff]
    %v100 = vld [vmem:[%s1 + $0x1a0] sm:$0xff]
    %v101 = vld [vmem:[%s1 + $0x1a8] sm:$0xff]
    %v102 = vld [vmem:[%s1 + $0x1b0] sm:$0xff]
    %v103 = vld [vmem:[%s1 + $0x1b8] sm:$0xff]
    %v104 = vld [vmem:[%s1 + $0x1c0] sm:$0xff]
    %v105 = vld [vmem:[%s1 + $0x1c8] sm:$0xff]
    %v106 = vld [vmem:[%s1 + $0x1d0] sm:$0xff]
    %v107 = vld [vmem:[%s1 + $0x1d8] sm:$0xff]
    %v108 = vld [vmem:[%s1 + $0x1e0] sm:$0xff]
    %v109 = vld [vmem:[%s1 + $0x1e8] sm:$0xff]
    %v110 = vld [vmem:[%s1 + $0x1f0] sm:$0xff]
    %v111 = vld [vmem:[%s1 + $0x1f8] sm:$0xff]
    %v112 = vld [vmem:[%s1 + $0x200] sm:$0xff]
    %v113 = vld [vmem:[%s1 + $0x208] sm:$0xff]
    %v114 = vld [vmem:[%s1 + $0x210] sm:$0xff]
    %v115 = vld [vmem:[%s1 + $0x218] sm:$0xff]
    %v116 = vld [vmem:[%s1 + $0x220] sm:$0xff]
    %v117 = vld [vmem:[%s1 + $0x228] sm:$0xff]
    %v118 = vld [vmem:[%s1 + $0x230] sm:$0xff]
    %v119 = vld [vmem:[%s1 + $0x238] sm:$0xff]
    %v120 = vld [vmem:[%s1 + $0x240] sm:$0xff]
    %v121 = vld [vmem:[%s1 + $0x248] sm:$0xff]
    %v122 = vld [vmem:[%s1 + $0x250] sm:$0xff]
    %v123 = vld [vmem:[%s1 + $0x258] sm:$0xff]
    %v124 = vld [vmem:[%s1 + $0x260] sm:$0xff]
    %v125 = vld [vmem:[%s1 + $0x268] sm:$0xff]
    %v126 = vld [vmem:[%s1 + $0x270] sm:$0xff]
    %v127 = vld [vmem:[%s1 + $0x278] sm:$0xff]
    %v128 = vld [vmem:[%s1 + $0x280] sm:$0xff]
    %v129 = vld [vmem:[%s1 + $0x288] sm:$0xff]
    %v130 = vld [vmem:[%s1 + $0x290] sm:$0xff]
    %v131 = vld [vmem:[%s1 + $0x298] sm:$0xff]
    %v132 = vld [vmem:[%s1 + $0x2a0] sm:$0xff]
    %v133 = vld [vmem:[%s1 + $0x2a8] sm:$0xff]
    %v134 = vld [vmem:[%s1 + $0x2b0] sm:$0xff]
    %v135 = vld [vmem:[%s1 + $0x2b8] sm:$0xff]
    %v136 = vld [vmem:[%s1 + $0x2c0] sm:$0xff]
    %v137 = vld [vmem:[%s1 + $0x2c8] sm:$0xff]
    %v138 = vld [vmem:[%s1 + $0x2d0] sm:$0xff]
    %v139 = vld [vmem:[%s1 + $0x2d8] sm:$0xff]
    %v140 = vld [vmem:[%s1 + $0x2e0] sm:$0xff]
    %v141 = vld [vmem:[%s1 + $0x2e8] sm:$0xff]
    %v142 = vld [vmem:[%s1 + $0x2f0] sm:$0xff]
    %v143 = vld [vmem:[%s1 + $0x2f8] sm:$0xff]
    %v144 = vld [vmem:[%s1 + $0x300] sm:$0xff]
    %v145 = vld [vmem:[%s1 + $0x308] sm:$0xff]
    %v146 = vld [vmem:[%s1 + $0x310] sm:$0xff]
    %v147 = vld [vmem:[%s1 + $0x318] sm:$0xff]
    %v148 = vld [vmem:[%s1 + $0x320] sm:$0xff]
    %v149 = vld [vmem:[%s1 + $0x328] sm:$0xff]
    %v150 = vld [vmem:[%s1 + $0x330] sm:$0xff]
    %v151 = vld [vmem:[%s1 + $0x338] sm:$0xff]
    %v152 = vld [vmem:[%s1 + $0x340] sm:$0xff]
    %v153 = vld [vmem:[%s1 + $0x348] sm:$0xff]
    %v154 = vld [vmem:[%s1 + $0x350] sm:$0xff]
    %v155 = vld [vmem:[%s1 + $0x358] sm:$0xff]
    %v156 = vld [vmem:[%s1 + $0x360] sm:$0xff]
    %v157 = vld [vmem:[%s1 + $0x368] sm:$0xff]
    %v158 = vld [vmem:[%s1 + $0x370] sm:$0xff]
    %v159 = vld [vmem:[%s1 + $0x378] sm:$0xff]
    %v160 = vld [vmem:[%s1 + $0x380] sm:$0xff]
    %v161 = vld [vmem:[%s1 + $0x388] sm:$0xff]
    %v162 = vld [vmem:[%s1 + $0x390] sm:$0xff]
    %v163 = vld [vmem:[%s1 + $0x398] sm:$0xff]
    %v164 = vld [vmem:[%s1 + $0x3a0] sm:$0xff]
    %v165 = vld [vmem:[%s1 + $0x3a8] sm:$0xff]
    %v166 = vld [vmem:[%s1 + $0x3b0] sm:$0xff]
    %v167 = vld [vmem:[%s1 + $0x3b8] sm:$0xff]
    %v168 = vld [vmem:[%s1 + $0x3c0] sm:$0xff]
    %v169 = vld [vmem:[%s1 + $0x3c8] sm:$0xff]
    %v170 = vld [vmem:[%s1 + $0x3d0] sm:$0xff]
    %v171 = vld [vmem:[%s1 + $0x3d8] sm:$0xff]
    %v172 = vld [vmem:[%s1 + $0x3e0] sm:$0xff]
    %v173 = vld [vmem:[%s1 + $0x3e8] sm:$0xff]
    %v174 = vld [vmem:[%s1 + $0x3f0] sm:$0xff]
    %v175 = vld [vmem:[%s1 + $0x3f8] sm:$0xff]
    %v176 = vld [vmem:[%s1 + $0x400] sm:$0xff]
    %v177 = vld [vmem:[%s1 + $0x408] sm:$0xff]
    %v178 = vld [vmem:[%s1 + $0x410] sm:$0xff]
    %v179 = vld [vmem:[%s1 + $0x418] sm:$0xff]
    %v180 = vld [vmem:[%s1 + $0x420] sm:$0xff]
    %v181 = vld [vmem:[%s1 + $0x428] sm:$0xff]
    %v182 = vld [vmem:[%s1 + $0x430] sm:$0xff]
    %v183 = vld [vmem:[%s1 + $0x438] sm:$0xff]
    %v184 = vld [vmem:[%s1 + $0x440] sm:$0xff]
    %v185 = vld [vmem:[%s1 + $0x448] sm:$0xff]
    %v186 = vld [vmem:[%s1 + $0x450] sm:$0xff]
    %v187 = vld [vmem:[%s1 + $0x458] sm:$0xff]
    %v188 = vld [vmem:[%s1 + $0x460] sm:$0xff]
    %v189 = vld [vmem:[%s1 + $0x468] sm:$0xff]
    %v190 = vld [vmem:[%s1 + $0x470] sm:$0xff]
    %v191 = vld [vmem:[%s1 + $0x478] sm:$0xff]
    %v192 = vld [vmem:[%s1 + $0x480] sm:$0xff]
    %v193 = vld [vmem:[%s1 + $0x488] sm:$0xff]
    %v194 = vld [vmem:[%s1 + $0x490] sm:$0xff]
    %v195 = vld [vmem:[%s1 + $0x498] sm:$0xff]
    %v196 = vld [vmem:[%s1 + $0x4a0] sm:$0xff]
    %v197 = vld [vmem:[%s1 + $0x4a8] sm:$0xff]
    %v198 = vld [vmem:[%s1 + $0x4b0] sm:$0xff]
    %v199 = vld [vmem:[%s1 + $0x4b8] sm:$0xff]
    %v200 = vld [vmem:[%s1 + $0x4c0] sm:$0xff]
    %v201 = vld [vmem:[%s1 + $0x4c8] sm:$0xff]
    %v202 = vld [vmem:[%s1 + $0x4d0] sm:$0xff]
    %v203 = vld [vmem:[%s1 + $0x4d8] sm:$0xff]
    %v204 = vld [vmem:[%s1 + $0x4e0] sm:$0xff]
    %v205 = vld [vmem:[%s1 + $0x4e8] sm:$0xff]
    %v206 = vld [vmem:[%s1 + $0x4f0] sm:$0xff]
    %v207 = vld [vmem:[%s1 + $0x4f8] sm:$0xff]
    %v208 = vld [vmem:[%s1 + $0x500] sm:$0xff]
    %v209 = vld [vmem:[%s1 + $0x508] sm:$0xff]
    %v210 = vld [vmem:[%s1 + $0x510] sm:$0xff]
    %v211 = vld [vmem:[%s1 + $0x518] sm:$0xff]
    %v212 = vld [vmem:[%s1 + $0x520] sm:$0xff]
    %v213 = vld [vmem:[%s1 + $0x528] sm:$0xff]
    %v214 = vld [vmem:[%s1 + $0x530] sm:$0xff]
    %v215 = vld [vmem:[%s1 + $0x538] sm:$0xff]
    %v216 = vld [vmem:[%s1 + $0x540] sm:$0xff]
    %v217 = vld [vmem:[%s1 + $0x548] sm:$0xff]
    %v218 = vld [vmem:[%s1 + $0x550] sm:$0xff]
    %v219 = vld [vmem:[%s1 + $0x558] sm:$0xff]
    %v220 = vld [vmem:[%s1 + $0x560] sm:$0xff]
    %v221 = vld [vmem:[%s1 + $0x568] sm:$0xff]
    %v222 = vld [vmem:[%s1 + $0x570] sm:$0xff]
    %v223 = vld [vmem:[%s1 + $0x578] sm:$0xff]
    %v224 = vld [vmem:[%s1 + $0x580] sm:$0xff]
    %v225 = vld [vmem:[%s1 + $0x588] sm:$0xff]
    %v226 = vld [vmem:[%s1 + $0x590] sm:$0xff]
    %v227 = vld [vmem:[%s1 + $0x598] sm:$0xff]
    %v228 = vld [vmem:[%s1 + $0x5a0] sm:$0xff]
    %v229 = vld [vmem:[%s1 + $0x5a8] sm:$0xff]
    %v230 = vld [vmem:[%s1 + $0x5b0] sm:$0xff]
    %v231 = vld [vmem:[%s1 + $0x5b8] sm:$0xff]
    %v232 = vld [vmem:[%s1 + $0x5c0] sm:$0xff]
    %v233 = vld [vmem:[%s1 + $0x5c8] sm:$0xff]
    %v234 = vld [vmem:[%s1 + $0x5d0] sm:$0xff]
    %v235 = vld [vmem:[%s1 + $0x5d8] sm:$0xff]
    %v236 = vld [vmem:[%s1 + $0x5e0] sm:$0xff]
    %v237 = vld [vmem:[%s1 + $0x5e8] sm:$0xff]
    %v238 = vld [vmem:[%s1 + $0x5f0] sm:$0xff]
    %v239 = vld [vmem:[%s1 + $0x5f8] sm:$0xff]
    %v240 = vld [vmem:[%s1 + $0x600] sm:$0xff]
    %v241 = vld [vmem:[%s1 + $0x608] sm:$0xff]
    %v242 = vld [vmem:[%s1 + $0x610] sm:$0xff]
    %v243 = vld [vmem:[%s1 + $0x618] sm:$0xff]
    %v244 = vld [vmem:[%s2] sm:$0xf]
    %v245 = vunpack.c.l.bf16 %v244
    %v247 = vlaneseq
    %v248 = vshrl.u32 %v247, 7
    %v249 = vsub.s32 0, %v248
    %v250 = vrot.slane %v245, %v249
    %v251 = vlaneseq
    %v252 = vshrl.u32 %v251, 7
    %v253 = vsub.s32 2, %v252
    %v254 = vrot.slane %v245, %v253
    %v255 = vlaneseq
    %v256 = vshrl.u32 %v255, 7
    %v257 = vsub.s32 4, %v256
    %v258 = vrot.slane %v245, %v257
    %v259 = vlaneseq
    %v260 = vshrl.u32 %v259, 7
    %v261 = vsub.s32 6, %v260
    %v262 = vrot.slane %v245, %v261
    %v267 = vlaneseq
    %v268 = vshrl.u32 %v267, 7
    %v269 = vsub.s32 0, %v268
    %v270 = vrot.slane %v250, %v269
    %v271 = vlaneseq
    %v272 = vshrl.u32 %v271, 7
    %v273 = vsub.s32 0, %v272
    %v274 = vrot.slane %v254, %v273
    %v275 = vlaneseq
    %v276 = vshrl.u32 %v275, 7
    %v277 = vsub.s32 0, %v276
    %v278 = vrot.slane %v258, %v277
    %v279 = vlaneseq
    %v280 = vshrl.u32 %v279, 7
    %v281 = vsub.s32 0, %v280
    %v282 = vrot.slane %v262, %v281
    %v479 = vunpack.c.l.b16 %v48
    %v480 = vunpack.c.h.b16 %v48
    %v481 = vunpack.c.l.b16 %v49
    %v482 = vunpack.c.h.b16 %v49
    %v483 = vunpack.c.l.b16 %v50
    %v484 = vunpack.c.h.b16 %v50
    %v485 = vunpack.c.l.b16 %v51
    %v486 = vunpack.c.h.b16 %v51
    %v487 = vunpack.c.l.b16 %v52
    %v488 = vunpack.c.h.b16 %v52
    %v489 = vunpack.c.l.b16 %v53
    %v490 = vunpack.c.h.b16 %v53
    %v491 = vunpack.c.l.b16 %v54
    %v492 = vunpack.c.h.b16 %v54
    %v493 = vunpack.c.l.b16 %v55
    %v494 = vunpack.c.h.b16 %v55
    %v495 = vunpack.c.l.b16 %v56
    %v496 = vunpack.c.h.b16 %v56
    %v497 = vunpack.c.l.b16 %v57
    %v498 = vunpack.c.h.b16 %v57
    %v499 = vunpack.c.l.b16 %v58
    %v500 = vunpack.c.h.b16 %v58
    %v501 = vunpack.c.l.b16 %v59
    %v502 = vunpack.c.h.b16 %v59
    %v503 = vunpack.c.l.b16 %v60
    %v504 = vunpack.c.h.b16 %v60
    %v505 = vunpack.c.l.b16 %v61
    %v506 = vunpack.c.h.b16 %v61
    %v507 = vunpack.c.l.b16 %v62
    %v508 = vunpack.c.h.b16 %v62
    %v509 = vunpack.c.l.b16 %v63
    %v510 = vunpack.c.h.b16 %v63
    %v511 = vunpack.c.l.b16 %v64
    %v512 = vunpack.c.h.b16 %v64
    %v513 = vunpack.c.l.b16 %v65
    %v514 = vunpack.c.h.b16 %v65
    %v515 = vunpack.c.l.b16 %v66
    %v516 = vunpack.c.h.b16 %v66
    %v517 = vunpack.c.l.b16 %v67
    %v518 = vunpack.c.h.b16 %v67
    %v519 = vunpack.c.l.b16 %v68
    %v520 = vunpack.c.h.b16 %v68
    %v521 = vunpack.c.l.b16 %v69
    %v522 = vunpack.c.h.b16 %v69
    %v523 = vunpack.c.l.b16 %v70
    %v524 = vunpack.c.h.b16 %v70
    %v525 = vunpack.c.l.b16 %v71
    %v526 = vunpack.c.h.b16 %v71
    %v527 = vunpack.c.l.b16 %v72
    %v528 = vunpack.c.h.b16 %v72
    %v529 = vunpack.c.l.b16 %v73
    %v530 = vunpack.c.h.b16 %v73
    %v531 = vunpack.c.l.b16 %v74
    %v532 = vunpack.c.h.b16 %v74
    %v533 = vunpack.c.l.b16 %v75
    %v534 = vunpack.c.h.b16 %v75
    %v535 = vunpack.c.l.b16 %v76
    %v536 = vunpack.c.h.b16 %v76
    %v537 = vunpack.c.l.b16 %v77
    %v538 = vunpack.c.h.b16 %v77
    %v539 = vunpack.c.l.b16 %v78
    %v540 = vunpack.c.h.b16 %v78
    %v541 = vunpack.c.l.b16 %v79
    %v542 = vunpack.c.h.b16 %v79
    %v543 = vunpack.c.l.b16 %v80
    %v544 = vunpack.c.h.b16 %v80
    %v545 = vunpack.c.l.b16 %v81
    %v546 = vunpack.c.h.b16 %v81
    %v547 = vunpack.c.l.b16 %v82
    %v548 = vunpack.c.h.b16 %v82
    %v549 = vunpack.c.l.b16 %v83
    %v550 = vunpack.c.h.b16 %v83
    %v551 = vunpack.c.l.b16 %v84
    %v552 = vunpack.c.h.b16 %v84
    %v553 = vunpack.c.l.b16 %v85
    %v554 = vunpack.c.h.b16 %v85
    %v555 = vunpack.c.l.b16 %v86
    %v556 = vunpack.c.h.b16 %v86
    %v557 = vunpack.c.l.b16 %v87
    %v558 = vunpack.c.h.b16 %v87
    %v559 = vunpack.c.l.b16 %v88
    %v560 = vunpack.c.h.b16 %v88
    %v561 = vunpack.c.l.b16 %v89
    %v562 = vunpack.c.h.b16 %v89
    %v563 = vunpack.c.l.b16 %v90
    %v564 = vunpack.c.h.b16 %v90
    %v565 = vunpack.c.l.b16 %v91
    %v566 = vunpack.c.h.b16 %v91
    %v567 = vunpack.c.l.b16 %v92
    %v568 = vunpack.c.h.b16 %v92
    %v569 = vunpack.c.l.b16 %v93
    %v570 = vunpack.c.h.b16 %v93
    %v571 = vunpack.c.l.b16 %v94
    %v572 = vunpack.c.h.b16 %v94
    %v573 = vunpack.c.l.b16 %v95
    %v574 = vunpack.c.h.b16 %v95
    %v575 = vunpack.c.l.b16 %v96
    %v576 = vunpack.c.h.b16 %v96
    %v577 = vunpack.c.l.b16 %v97
    %v578 = vunpack.c.h.b16 %v97
    %v579 = vunpack.c.l.b16 %v98
    %v580 = vunpack.c.h.b16 %v98
    %v581 = vunpack.c.l.b16 %v99
    %v582 = vunpack.c.h.b16 %v99
    %v583 = vunpack.c.l.b16 %v100
    %v584 = vunpack.c.h.b16 %v100
    %v585 = vunpack.c.l.b16 %v101
    %v586 = vunpack.c.h.b16 %v101
    %v587 = vunpack.c.l.b16 %v102
    %v588 = vunpack.c.h.b16 %v102
    %v589 = vunpack.c.l.b16 %v103
    %v590 = vunpack.c.h.b16 %v103
    %v591 = vunpack.c.l.b16 %v104
    %v592 = vunpack.c.h.b16 %v104
    %v593 = vunpack.c.l.b16 %v105
    %v594 = vunpack.c.h.b16 %v105
    %v595 = vunpack.c.l.b16 %v106
    %v596 = vunpack.c.h.b16 %v106
    %v597 = vunpack.c.l.b16 %v107
    %v598 = vunpack.c.h.b16 %v107
    %v599 = vunpack.c.l.b16 %v108
    %v600 = vunpack.c.h.b16 %v108
    %v601 = vunpack.c.l.b16 %v109
    %v602 = vunpack.c.h.b16 %v109
    %v603 = vunpack.c.l.b16 %v110
    %v604 = vunpack.c.h.b16 %v110
    %v605 = vunpack.c.l.b16 %v111
    %v606 = vunpack.c.h.b16 %v111
    %v607 = vunpack.c.l.b16 %v112
    %v608 = vunpack.c.h.b16 %v112
    %v609 = vunpack.c.l.b16 %v113
    %v610 = vunpack.c.h.b16 %v113
    %v611 = vunpack.c.l.b16 %v114
    %v612 = vunpack.c.h.b16 %v114
    %v613 = vunpack.c.l.b16 %v115
    %v614 = vunpack.c.h.b16 %v115
    %v615 = vunpack.c.l.b16 %v116
    %v616 = vunpack.c.h.b16 %v116
    %v617 = vunpack.c.l.b16 %v117
    %v618 = vunpack.c.h.b16 %v117
    %v619 = vunpack.c.l.b16 %v118
    %v620 = vunpack.c.h.b16 %v118
    %v621 = vunpack.c.l.b16 %v119
    %v622 = vunpack.c.h.b16 %v119
    %v623 = vunpack.c.l.b16 %v120
    %v624 = vunpack.c.h.b16 %v120
    %v625 = vunpack.c.l.b16 %v121
    %v626 = vunpack.c.h.b16 %v121
    %v627 = vunpack.c.l.b16 %v122
    %v628 = vunpack.c.h.b16 %v122
    %v629 = vunpack.c.l.b16 %v123
    %v630 = vunpack.c.h.b16 %v123
    %v631 = vunpack.c.l.b16 %v124
    %v632 = vunpack.c.h.b16 %v124
    %v633 = vunpack.c.l.b16 %v125
    %v634 = vunpack.c.h.b16 %v125
    %v635 = vunpack.c.l.b16 %v126
    %v636 = vunpack.c.h.b16 %v126
    %v637 = vunpack.c.l.b16 %v127
    %v638 = vunpack.c.h.b16 %v127
    %v639 = vunpack.c.l.b16 %v128
    %v640 = vunpack.c.h.b16 %v128
    %v641 = vunpack.c.l.b16 %v129
    %v642 = vunpack.c.h.b16 %v129
    %v643 = vunpack.c.l.b16 %v130
    %v644 = vunpack.c.h.b16 %v130
    %v645 = vunpack.c.l.b16 %v131
    %v646 = vunpack.c.h.b16 %v131
    %v647 = vunpack.c.l.b16 %v132
    %v648 = vunpack.c.h.b16 %v132
    %v649 = vunpack.c.l.b16 %v133
    %v650 = vunpack.c.h.b16 %v133
    %v651 = vunpack.c.l.b16 %v134
    %v652 = vunpack.c.h.b16 %v134
    %v653 = vunpack.c.l.b16 %v135
    %v654 = vunpack.c.h.b16 %v135
    %v655 = vunpack.c.l.b16 %v136
    %v656 = vunpack.c.h.b16 %v136
    %v657 = vunpack.c.l.b16 %v137
    %v658 = vunpack.c.h.b16 %v137
    %v659 = vunpack.c.l.b16 %v138
    %v660 = vunpack.c.h.b16 %v138
    %v661 = vunpack.c.l.b16 %v139
    %v662 = vunpack.c.h.b16 %v139
    %v663 = vunpack.c.l.b16 %v140
    %v664 = vunpack.c.h.b16 %v140
    %v665 = vunpack.c.l.b16 %v141
    %v666 = vunpack.c.h.b16 %v141
    %v667 = vunpack.c.l.b16 %v142
    %v668 = vunpack.c.h.b16 %v142
    %v669 = vunpack.c.l.b16 %v143
    %v670 = vunpack.c.h.b16 %v143
    %v671 = vunpack.c.l.b16 %v144
    %v672 = vunpack.c.h.b16 %v144
    %v673 = vunpack.c.l.b16 %v145
    %v674 = vunpack.c.h.b16 %v145
    %v675 = vunpack.c.l.b16 %v146
    %v676 = vunpack.c.h.b16 %v146
    %v677 = vunpack.c.l.b16 %v147
    %v678 = vunpack.c.h.b16 %v147
    %v679 = vunpack.c.l.b16 %v148
    %v680 = vunpack.c.h.b16 %v148
    %v681 = vunpack.c.l.b16 %v149
    %v682 = vunpack.c.h.b16 %v149
    %v683 = vunpack.c.l.b16 %v150
    %v684 = vunpack.c.h.b16 %v150
    %v685 = vunpack.c.l.b16 %v151
    %v686 = vunpack.c.h.b16 %v151
    %v687 = vunpack.c.l.b16 %v152
    %v688 = vunpack.c.h.b16 %v152
    %v689 = vunpack.c.l.b16 %v153
    %v690 = vunpack.c.h.b16 %v153
    %v691 = vunpack.c.l.b16 %v154
    %v692 = vunpack.c.h.b16 %v154
    %v693 = vunpack.c.l.b16 %v155
    %v694 = vunpack.c.h.b16 %v155
    %v695 = vunpack.c.l.b16 %v156
    %v696 = vunpack.c.h.b16 %v156
    %v697 = vunpack.c.l.b16 %v157
    %v698 = vunpack.c.h.b16 %v157
    %v699 = vunpack.c.l.b16 %v158
    %v700 = vunpack.c.h.b16 %v158
    %v701 = vunpack.c.l.b16 %v159
    %v702 = vunpack.c.h.b16 %v159
    %v703 = vunpack.c.l.b16 %v160
    %v704 = vunpack.c.h.b16 %v160
    %v705 = vunpack.c.l.b16 %v161
    %v706 = vunpack.c.h.b16 %v161
    %v707 = vunpack.c.l.b16 %v162
    %v708 = vunpack.c.h.b16 %v162
    %v709 = vunpack.c.l.b16 %v163
    %v710 = vunpack.c.h.b16 %v163
    %v711 = vunpack.c.l.b16 %v164
    %v712 = vunpack.c.h.b16 %v164
    %v713 = vunpack.c.l.b16 %v165
    %v714 = vunpack.c.h.b16 %v165
    %v715 = vunpack.c.l.b16 %v166
    %v716 = vunpack.c.h.b16 %v166
    %v717 = vunpack.c.l.b16 %v167
    %v718 = vunpack.c.h.b16 %v167
    %v719 = vunpack.c.l.b16 %v168
    %v720 = vunpack.c.h.b16 %v168
    %v721 = vunpack.c.l.b16 %v169
    %v722 = vunpack.c.h.b16 %v169
    %v723 = vunpack.c.l.b16 %v170
    %v724 = vunpack.c.h.b16 %v170
    %v725 = vunpack.c.l.b16 %v171
    %v726 = vunpack.c.h.b16 %v171
    %v727 = vunpack.c.l.b16 %v172
    %v728 = vunpack.c.h.b16 %v172
    %v729 = vunpack.c.l.b16 %v173
    %v730 = vunpack.c.h.b16 %v173
    %v731 = vunpack.c.l.b16 %v174
    %v732 = vunpack.c.h.b16 %v174
    %v733 = vunpack.c.l.b16 %v175
    %v734 = vunpack.c.h.b16 %v175
    %v735 = vunpack.c.l.b16 %v176
    %v736 = vunpack.c.h.b16 %v176
    %v737 = vunpack.c.l.b16 %v177
    %v738 = vunpack.c.h.b16 %v177
    %v739 = vunpack.c.l.b16 %v178
    %v740 = vunpack.c.h.b16 %v178
    %v741 = vunpack.c.l.b16 %v179
    %v742 = vunpack.c.h.b16 %v179
    %v743 = vunpack.c.l.b16 %v180
    %v744 = vunpack.c.h.b16 %v180
    %v745 = vunpack.c.l.b16 %v181
    %v746 = vunpack.c.h.b16 %v181
    %v747 = vunpack.c.l.b16 %v182
    %v748 = vunpack.c.h.b16 %v182
    %v749 = vunpack.c.l.b16 %v183
    %v750 = vunpack.c.h.b16 %v183
    %v751 = vunpack.c.l.b16 %v184
    %v752 = vunpack.c.h.b16 %v184
    %v753 = vunpack.c.l.b16 %v185
    %v754 = vunpack.c.h.b16 %v185
    %v755 = vunpack.c.l.b16 %v186
    %v756 = vunpack.c.h.b16 %v186
    %v757 = vunpack.c.l.b16 %v187
    %v758 = vunpack.c.h.b16 %v187
    %v759 = vunpack.c.l.b16 %v188
    %v760 = vunpack.c.h.b16 %v188
    %v761 = vunpack.c.l.b16 %v189
    %v762 = vunpack.c.h.b16 %v189
    %v763 = vunpack.c.l.b16 %v190
    %v764 = vunpack.c.h.b16 %v190
    %v765 = vunpack.c.l.b16 %v191
    %v766 = vunpack.c.h.b16 %v191
    %v767 = vunpack.c.l.b16 %v192
    %v768 = vunpack.c.h.b16 %v192
    %v769 = vunpack.c.l.b16 %v193
    %v770 = vunpack.c.h.b16 %v193
    %v771 = vunpack.c.l.b16 %v194
    %v772 = vunpack.c.h.b16 %v194
    %v773 = vunpack.c.l.b16 %v195
    %v774 = vunpack.c.h.b16 %v195
    %v775 = vunpack.c.l.b16 %v196
    %v776 = vunpack.c.h.b16 %v196
    %v777 = vunpack.c.l.b16 %v197
    %v778 = vunpack.c.h.b16 %v197
    %v779 = vunpack.c.l.b16 %v198
    %v780 = vunpack.c.h.b16 %v198
    %v781 = vunpack.c.l.b16 %v199
    %v782 = vunpack.c.h.b16 %v199
    %v783 = vunpack.c.l.b16 %v200
    %v784 = vunpack.c.h.b16 %v200
    %v785 = vunpack.c.l.b16 %v201
    %v786 = vunpack.c.h.b16 %v201
    %v787 = vunpack.c.l.b16 %v202
    %v788 = vunpack.c.h.b16 %v202
    %v789 = vunpack.c.l.b16 %v203
    %v790 = vunpack.c.h.b16 %v203
    %v791 = vunpack.c.l.b16 %v204
    %v792 = vunpack.c.h.b16 %v204
    %v793 = vunpack.c.l.b16 %v205
    %v794 = vunpack.c.h.b16 %v205
    %v795 = vunpack.c.l.b16 %v206
    %v796 = vunpack.c.h.b16 %v206
    %v797 = vunpack.c.l.b16 %v207
    %v798 = vunpack.c.h.b16 %v207
    %v799 = vunpack.c.l.b16 %v208
    %v800 = vunpack.c.h.b16 %v208
    %v801 = vunpack.c.l.b16 %v209
    %v802 = vunpack.c.h.b16 %v209
    %v803 = vunpack.c.l.b16 %v210
    %v804 = vunpack.c.h.b16 %v210
    %v805 = vunpack.c.l.b16 %v211
    %v806 = vunpack.c.h.b16 %v211
    %v807 = vunpack.c.l.b16 %v212
    %v808 = vunpack.c.h.b16 %v212
    %v809 = vunpack.c.l.b16 %v213
    %v810 = vunpack.c.h.b16 %v213
    %v811 = vunpack.c.l.b16 %v214
    %v812 = vunpack.c.h.b16 %v214
    %v813 = vunpack.c.l.b16 %v215
    %v814 = vunpack.c.h.b16 %v215
    %v815 = vunpack.c.l.b16 %v216
    %v816 = vunpack.c.h.b16 %v216
    %v817 = vunpack.c.l.b16 %v217
    %v818 = vunpack.c.h.b16 %v217
    %v819 = vunpack.c.l.b16 %v218
    %v820 = vunpack.c.h.b16 %v218
    %v821 = vunpack.c.l.b16 %v219
    %v822 = vunpack.c.h.b16 %v219
    %v823 = vunpack.c.l.b16 %v220
    %v824 = vunpack.c.h.b16 %v220
    %v825 = vunpack.c.l.b16 %v221
    %v826 = vunpack.c.h.b16 %v221
    %v827 = vunpack.c.l.b16 %v222
    %v828 = vunpack.c.h.b16 %v222
    %v829 = vunpack.c.l.b16 %v223
    %v830 = vunpack.c.h.b16 %v223
    %v831 = vunpack.c.l.b16 %v224
    %v832 = vunpack.c.h.b16 %v224
    %v833 = vunpack.c.l.b16 %v225
    %v834 = vunpack.c.h.b16 %v225
    %v835 = vunpack.c.l.b16 %v226
    %v836 = vunpack.c.h.b16 %v226
    %v837 = vunpack.c.l.b16 %v227
    %v838 = vunpack.c.h.b16 %v227
    %v839 = vunpack.c.l.b16 %v228
    %v840 = vunpack.c.h.b16 %v228
    %v841 = vunpack.c.l.b16 %v229
    %v842 = vunpack.c.h.b16 %v229
    %v843 = vunpack.c.l.b16 %v230
    %v844 = vunpack.c.h.b16 %v230
    %v845 = vunpack.c.l.b16 %v231
    %v846 = vunpack.c.h.b16 %v231
    %v847 = vunpack.c.l.b16 %v232
    %v848 = vunpack.c.h.b16 %v232
    %v849 = vunpack.c.l.b16 %v233
    %v850 = vunpack.c.h.b16 %v233
    %v851 = vunpack.c.l.b16 %v234
    %v852 = vunpack.c.h.b16 %v234
    %v853 = vunpack.c.l.b16 %v235
    %v854 = vunpack.c.h.b16 %v235
    %v855 = vunpack.c.l.b16 %v236
    %v856 = vunpack.c.h.b16 %v236
    %v857 = vunpack.c.l.b16 %v237
    %v858 = vunpack.c.h.b16 %v237
    %v859 = vunpack.c.l.b16 %v238
    %v860 = vunpack.c.h.b16 %v238
    %v861 = vunpack.c.l.b16 %v239
    %v862 = vunpack.c.h.b16 %v239
    %v863 = vunpack.c.l.b16 %v240
    %v864 = vunpack.c.h.b16 %v240
    %v865 = vunpack.c.l.b16 %v241
    %v866 = vunpack.c.h.b16 %v241
    %v867 = vunpack.c.l.b16 %v242
    %v868 = vunpack.c.h.b16 %v242
    %v869 = vunpack.c.l.b16 %v243
    %v870 = vunpack.c.h.b16 %v243
    %v871 = vpack.c.b16 %v483, %v479
    %v872 = vpack.c.b16 %v484, %v480
    %v873 = vpack.c.b16 %v485, %v481
    %v874 = vpack.c.b16 %v486, %v482
    %v875 = vpack.c.b16 %v491, %v487
    %v876 = vpack.c.b16 %v492, %v488
    %v877 = vpack.c.b16 %v493, %v489
    %v878 = vpack.c.b16 %v494, %v490
    %v879 = vpack.c.b16 %v499, %v495
    %v880 = vpack.c.b16 %v500, %v496
    %v881 = vpack.c.b16 %v501, %v497
    %v882 = vpack.c.b16 %v502, %v498
    %v883 = vpack.c.b16 %v507, %v503
    %v884 = vpack.c.b16 %v508, %v504
    %v885 = vpack.c.b16 %v509, %v505
    %v886 = vpack.c.b16 %v510, %v506
    %v887 = vpack.c.b16 %v515, %v511
    %v888 = vpack.c.b16 %v516, %v512
    %v889 = vpack.c.b16 %v517, %v513
    %v890 = vpack.c.b16 %v518, %v514
    %v891 = vpack.c.b16 %v523, %v519
    %v892 = vpack.c.b16 %v524, %v520
    %v893 = vpack.c.b16 %v525, %v521
    %v894 = vpack.c.b16 %v526, %v522
    %v895 = vpack.c.b16 %v531, %v527
    %v896 = vpack.c.b16 %v532, %v528
    %v897 = vpack.c.b16 %v533, %v529
    %v898 = vpack.c.b16 %v534, %v530
    %v899 = vpack.c.b16 %v539, %v535
    %v900 = vpack.c.b16 %v540, %v536
    %v901 = vpack.c.b16 %v541, %v537
    %v902 = vpack.c.b16 %v542, %v538
    %v903 = vpack.c.b16 %v547, %v543
    %v904 = vpack.c.b16 %v548, %v544
    %v905 = vpack.c.b16 %v549, %v545
    %v906 = vpack.c.b16 %v550, %v546
    %v907 = vpack.c.b16 %v555, %v551
    %v908 = vpack.c.b16 %v556, %v552
    %v909 = vpack.c.b16 %v557, %v553
    %v910 = vpack.c.b16 %v558, %v554
    %v911 = vpack.c.b16 %v563, %v559
    %v912 = vpack.c.b16 %v564, %v560
    %v913 = vpack.c.b16 %v565, %v561
    %v914 = vpack.c.b16 %v566, %v562
    %v915 = vpack.c.b16 %v571, %v567
    %v916 = vpack.c.b16 %v572, %v568
    %v917 = vpack.c.b16 %v573, %v569
    %v918 = vpack.c.b16 %v574, %v570
    %v919 = vpack.c.b16 %v579, %v575
    %v920 = vpack.c.b16 %v580, %v576
    %v921 = vpack.c.b16 %v581, %v577
    %v922 = vpack.c.b16 %v582, %v578
    %v923 = vpack.c.b16 %v587, %v583
    %v924 = vpack.c.b16 %v588, %v584
    %v925 = vpack.c.b16 %v589, %v585
    %v926 = vpack.c.b16 %v590, %v586
    %v927 = vpack.c.b16 %v595, %v591
    %v928 = vpack.c.b16 %v596, %v592
    %v929 = vpack.c.b16 %v597, %v593
    %v930 = vpack.c.b16 %v598, %v594
    %v931 = vpack.c.b16 %v603, %v599
    %v932 = vpack.c.b16 %v604, %v600
    %v933 = vpack.c.b16 %v605, %v601
    %v934 = vpack.c.b16 %v606, %v602
    %v935 = vpack.c.b16 %v611, %v607
    %v936 = vpack.c.b16 %v612, %v608
    %v937 = vpack.c.b16 %v613, %v609
    %v938 = vpack.c.b16 %v614, %v610
    %v939 = vpack.c.b16 %v619, %v615
    %v940 = vpack.c.b16 %v620, %v616
    %v941 = vpack.c.b16 %v621, %v617
    %v942 = vpack.c.b16 %v622, %v618
    %v943 = vpack.c.b16 %v627, %v623
    %v944 = vpack.c.b16 %v628, %v624
    %v945 = vpack.c.b16 %v629, %v625
    %v946 = vpack.c.b16 %v630, %v626
    %v947 = vpack.c.b16 %v635, %v631
    %v948 = vpack.c.b16 %v636, %v632
    %v949 = vpack.c.b16 %v637, %v633
    %v950 = vpack.c.b16 %v638, %v634
    %v951 = vpack.c.b16 %v643, %v639
    %v952 = vpack.c.b16 %v644, %v640
    %v953 = vpack.c.b16 %v645, %v641
    %v954 = vpack.c.b16 %v646, %v642
    %v955 = vpack.c.b16 %v651, %v647
    %v956 = vpack.c.b16 %v652, %v648
    %v957 = vpack.c.b16 %v653, %v649
    %v958 = vpack.c.b16 %v654, %v650
    %v959 = vpack.c.b16 %v659, %v655
    %v960 = vpack.c.b16 %v660, %v656
    %v961 = vpack.c.b16 %v661, %v657
    %v962 = vpack.c.b16 %v662, %v658
    %v963 = vpack.c.b16 %v667, %v663
    %v964 = vpack.c.b16 %v668, %v664
    %v965 = vpack.c.b16 %v669, %v665
    %v966 = vpack.c.b16 %v670, %v666
    %v967 = vpack.c.b16 %v675, %v671
    %v968 = vpack.c.b16 %v676, %v672
    %v969 = vpack.c.b16 %v677, %v673
    %v970 = vpack.c.b16 %v678, %v674
    %v971 = vpack.c.b16 %v683, %v679
    %v972 = vpack.c.b16 %v684, %v680
    %v973 = vpack.c.b16 %v685, %v681
    %v974 = vpack.c.b16 %v686, %v682
    %v975 = vpack.c.b16 %v691, %v687
    %v976 = vpack.c.b16 %v692, %v688
    %v977 = vpack.c.b16 %v693, %v689
    %v978 = vpack.c.b16 %v694, %v690
    %v979 = vpack.c.b16 %v699, %v695
    %v980 = vpack.c.b16 %v700, %v696
    %v981 = vpack.c.b16 %v701, %v697
    %v982 = vpack.c.b16 %v702, %v698
    %v983 = vpack.c.b16 %v707, %v703
    %v984 = vpack.c.b16 %v708, %v704
    %v985 = vpack.c.b16 %v709, %v705
    %v986 = vpack.c.b16 %v710, %v706
    %v987 = vpack.c.b16 %v715, %v711
    %v988 = vpack.c.b16 %v716, %v712
    %v989 = vpack.c.b16 %v717, %v713
    %v990 = vpack.c.b16 %v718, %v714
    %v991 = vpack.c.b16 %v723, %v719
    %v992 = vpack.c.b16 %v724, %v720
    %v993 = vpack.c.b16 %v725, %v721
    %v994 = vpack.c.b16 %v726, %v722
    %v995 = vpack.c.b16 %v731, %v727
    %v996 = vpack.c.b16 %v732, %v728
    %v997 = vpack.c.b16 %v733, %v729
    %v998 = vpack.c.b16 %v734, %v730
    %v999 = vpack.c.b16 %v739, %v735
    %v1000 = vpack.c.b16 %v740, %v736
    %v1001 = vpack.c.b16 %v741, %v737
    %v1002 = vpack.c.b16 %v742, %v738
    %v1003 = vpack.c.b16 %v747, %v743
    %v1004 = vpack.c.b16 %v748, %v744
    %v1005 = vpack.c.b16 %v749, %v745
    %v1006 = vpack.c.b16 %v750, %v746
    %v1007 = vpack.c.b16 %v755, %v751
    %v1008 = vpack.c.b16 %v756, %v752
    %v1009 = vpack.c.b16 %v757, %v753
    %v1010 = vpack.c.b16 %v758, %v754
    %v1011 = vpack.c.b16 %v763, %v759
    %v1012 = vpack.c.b16 %v764, %v760
    %v1013 = vpack.c.b16 %v765, %v761
    %v1014 = vpack.c.b16 %v766, %v762
    %v1015 = vpack.c.b16 %v771, %v767
    %v1016 = vpack.c.b16 %v772, %v768
    %v1017 = vpack.c.b16 %v773, %v769
    %v1018 = vpack.c.b16 %v774, %v770
    %v1019 = vpack.c.b16 %v779, %v775
    %v1020 = vpack.c.b16 %v780, %v776
    %v1021 = vpack.c.b16 %v781, %v777
    %v1022 = vpack.c.b16 %v782, %v778
    %v1023 = vpack.c.b16 %v787, %v783
    %v1024 = vpack.c.b16 %v788, %v784
    %v1025 = vpack.c.b16 %v789, %v785
    %v1026 = vpack.c.b16 %v790, %v786
    %v1027 = vpack.c.b16 %v795, %v791
    %v1028 = vpack.c.b16 %v796, %v792
    %v1029 = vpack.c.b16 %v797, %v793
    %v1030 = vpack.c.b16 %v798, %v794
    %v1031 = vpack.c.b16 %v803, %v799
    %v1032 = vpack.c.b16 %v804, %v800
    %v1033 = vpack.c.b16 %v805, %v801
    %v1034 = vpack.c.b16 %v806, %v802
    %v1035 = vpack.c.b16 %v811, %v807
    %v1036 = vpack.c.b16 %v812, %v808
    %v1037 = vpack.c.b16 %v813, %v809
    %v1038 = vpack.c.b16 %v814, %v810
    %v1039 = vpack.c.b16 %v819, %v815
    %v1040 = vpack.c.b16 %v820, %v816
    %v1041 = vpack.c.b16 %v821, %v817
    %v1042 = vpack.c.b16 %v822, %v818
    %v1043 = vpack.c.b16 %v827, %v823
    %v1044 = vpack.c.b16 %v828, %v824
    %v1045 = vpack.c.b16 %v829, %v825
    %v1046 = vpack.c.b16 %v830, %v826
    %v1047 = vpack.c.b16 %v835, %v831
    %v1048 = vpack.c.b16 %v836, %v832
    %v1049 = vpack.c.b16 %v837, %v833
    %v1050 = vpack.c.b16 %v838, %v834
    %v1051 = vpack.c.b16 %v843, %v839
    %v1052 = vpack.c.b16 %v844, %v840
    %v1053 = vpack.c.b16 %v845, %v841
    %v1054 = vpack.c.b16 %v846, %v842
    %v1055 = vpack.c.b16 %v851, %v847
    %v1056 = vpack.c.b16 %v852, %v848
    %v1057 = vpack.c.b16 %v853, %v849
    %v1058 = vpack.c.b16 %v854, %v850
    %v1059 = vpack.c.b16 %v859, %v855
    %v1060 = vpack.c.b16 %v860, %v856
    %v1061 = vpack.c.b16 %v861, %v857
    %v1062 = vpack.c.b16 %v862, %v858
    %v1063 = vpack.c.b16 %v867, %v863
    %v1064 = vpack.c.b16 %v868, %v864
    %v1065 = vpack.c.b16 %v869, %v865
    %v1066 = vpack.c.b16 %v870, %v866
    %vm1263 = vcmask 130048
    %v1265 = vsel %vm1263, %v47, 0
    %1267 = vmatprep.subr.bf16.mxu0 %v872
    %1268 = vmatpush1.bf16.msra.mxu0 %v871
    %1269 = vmatprep.subr.bf16.mxu0 %v876
    %1270 = vmatpush1.bf16.msra.mxu0 %v875
    %1271 = vmatprep.subr.bf16.mxu0 %v880
    %1272 = vmatpush1.bf16.msra.mxu0 %v879
    %1273 = vmatprep.subr.bf16.mxu0 %v884
    %1274 = vmatpush1.bf16.msra.mxu0 %v883
    %1275 = vmatprep.subr.bf16.mxu0 %v888
    %1276 = vmatpush1.bf16.msra.mxu0 %v887
    %1277 = vmatprep.subr.bf16.mxu0 %v892
    %1278 = vmatpush1.bf16.msra.mxu0 %v891
    %1279 = vmatprep.subr.bf16.mxu0 %v896
    %1280 = vmatpush1.bf16.msra.mxu0 %v895
    %1281 = vmatprep.subr.bf16.mxu0 %v900
    %1282 = vmatpush1.bf16.msra.mxu0 %v899
    %1283 = vmatprep.subr.bf16.mxu0 %v904
    %1284 = vmatpush1.bf16.msra.mxu0 %v903
    %1285 = vmatprep.subr.bf16.mxu0 %v908
    %1286 = vmatpush1.bf16.msra.mxu0 %v907
    %1287 = vmatprep.subr.bf16.mxu0 %v912
    %1288 = vmatpush1.bf16.msra.mxu0 %v911
    %1289 = vmatprep.subr.bf16.mxu0 %v916
    %1290 = vmatpush1.bf16.msra.mxu0 %v915
    %1291 = vmatprep.subr.bf16.mxu0 %v920
    %1292 = vmatpush1.bf16.msra.mxu0 %v919
    %1293 = vmatprep.subr.bf16.mxu0 %v924
    %1294 = vmatpush1.bf16.msra.mxu0 %v923
    %1295 = vmatprep.subr.bf16.mxu0 %v928
    %1296 = vmatpush1.bf16.msra.mxu0 %v927
    %1297 = vmatprep.subr.bf16.mxu0 %v932
    %1298 = vmatpush1.bf16.msra.mxu0 %v931
    %1299 = vmatprep.mubr.bf16.mxu0 %v42
    %1300 = vmatmul.mubr.bf16.gmra.mrb[0].mxu0 %v41
    %v1301 = vpop.f32.mrb[0].mxu0
    %v1302 = vadd.f32 %v270, %v1301
    %v1303 = vpop.f32.mrb[0].mxu0
    %v1304 = vadd.f32 %v274, %v1303
    %v1305 = vpop.f32.mrb[0].mxu0
    %v1306 = vpop.f32.mrb[0].mxu0
    %1307 = vdwg.mxu0
    %1308 = vmatprep.subr.bf16.mxu0 %v936
    %1309 = vmatpush1.bf16.msra.mxu0 %v935
    %1310 = vmatprep.subr.bf16.mxu0 %v940
    %1311 = vmatpush1.bf16.msra.mxu0 %v939
    %1312 = vmatprep.subr.bf16.mxu0 %v944
    %1313 = vmatpush1.bf16.msra.mxu0 %v943
    %1314 = vmatprep.subr.bf16.mxu0 %v948
    %1315 = vmatpush1.bf16.msra.mxu0 %v947
    %1316 = vmatprep.subr.bf16.mxu0 %v952
    %1317 = vmatpush1.bf16.msra.mxu0 %v951
    %1318 = vmatprep.subr.bf16.mxu0 %v956
    %1319 = vmatpush1.bf16.msra.mxu0 %v955
    %1320 = vmatprep.subr.bf16.mxu0 %v960
    %1321 = vmatpush1.bf16.msra.mxu0 %v959
    %1322 = vmatprep.subr.bf16.mxu0 %v964
    %1323 = vmatpush1.bf16.msra.mxu0 %v963
    %1324 = vmatprep.subr.bf16.mxu0 %v968
    %1325 = vmatpush1.bf16.msra.mxu0 %v967
    %1326 = vmatprep.subr.bf16.mxu0 %v972
    %1327 = vmatpush1.bf16.msra.mxu0 %v971
    %1328 = vmatprep.subr.bf16.mxu0 %v976
    %1329 = vmatpush1.bf16.msra.mxu0 %v975
    %1330 = vmatprep.subr.bf16.mxu0 %v980
    %1331 = vmatpush1.bf16.msra.mxu0 %v979
    %1332 = vmatprep.subr.bf16.mxu0 %v984
    %1333 = vmatpush1.bf16.msra.mxu0 %v983
    %1334 = vmatprep.subr.bf16.mxu0 %v988
    %1335 = vmatpush1.bf16.msra.mxu0 %v987
    %1336 = vmatprep.subr.bf16.mxu0 %v992
    %1337 = vmatpush1.bf16.msra.mxu0 %v991
    %1338 = vmatprep.subr.bf16.mxu0 %v996
    %1339 = vmatpush1.bf16.msra.mxu0 %v995
    %1340 = vmatprep.mubr.bf16.mxu0 %v44
    %1341 = vmatmul.mubr.bf16.gmra.mrb[0].mxu0 %v43
    %v1342 = vpop.f32.mrb[0].mxu0
    %v1343 = vadd.f32 %v1302, %v1342
    %v1344 = vpop.f32.mrb[0].mxu0
    %v1345 = vadd.f32 %v1304, %v1344
    %v1346 = vpop.f32.mrb[0].mxu0
    %v1347 = vpop.f32.mrb[0].mxu0
    %1348 = vdwg.mxu0
    %1349 = vmatprep.subr.bf16.mxu0 %v1000
    %1350 = vmatpush1.bf16.msra.mxu0 %v999
    %1351 = vmatprep.subr.bf16.mxu0 %v1004
    %1352 = vmatpush1.bf16.msra.mxu0 %v1003
    %1353 = vmatprep.subr.bf16.mxu0 %v1008
    %1354 = vmatpush1.bf16.msra.mxu0 %v1007
    %1355 = vmatprep.subr.bf16.mxu0 %v1012
    %1356 = vmatpush1.bf16.msra.mxu0 %v1011
    %1357 = vmatprep.subr.bf16.mxu0 %v1016
    %1358 = vmatpush1.bf16.msra.mxu0 %v1015
    %1359 = vmatprep.subr.bf16.mxu0 %v1020
    %1360 = vmatpush1.bf16.msra.mxu0 %v1019
    %1361 = vmatprep.subr.bf16.mxu0 %v1024
    %1362 = vmatpush1.bf16.msra.mxu0 %v1023
    %1363 = vmatprep.subr.bf16.mxu0 %v1028
    %1364 = vmatpush1.bf16.msra.mxu0 %v1027
    %1365 = vmatprep.subr.bf16.mxu0 %v1032
    %1366 = vmatpush1.bf16.msra.mxu0 %v1031
    %1367 = vmatprep.subr.bf16.mxu0 %v1036
    %1368 = vmatpush1.bf16.msra.mxu0 %v1035
    %1369 = vmatprep.subr.bf16.mxu0 %v1040
    %1370 = vmatpush1.bf16.msra.mxu0 %v1039
    %1371 = vmatprep.subr.bf16.mxu0 %v1044
    %1372 = vmatpush1.bf16.msra.mxu0 %v1043
    %1373 = vmatprep.subr.bf16.mxu0 %v1048
    %1374 = vmatpush1.bf16.msra.mxu0 %v1047
    %1375 = vmatprep.subr.bf16.mxu0 %v1052
    %1376 = vmatpush1.bf16.msra.mxu0 %v1051
    %1377 = vmatprep.subr.bf16.mxu0 %v1056
    %1378 = vmatpush1.bf16.msra.mxu0 %v1055
    %1379 = vmatprep.subr.bf16.mxu0 %v1060
    %1380 = vmatpush1.bf16.msra.mxu0 %v1059
    %1381 = vmatprep.mubr.bf16.mxu0 %v46
    %1382 = vmatmul.mubr.bf16.gmra.mrb[0].mxu0 %v45
    %v1383 = vpop.f32.mrb[0].mxu0
    %v1384 = vadd.f32 %v1343, %v1383
    %v1385 = vpop.f32.mrb[0].mxu0
    %v1386 = vadd.f32 %v1345, %v1385
    %v1387 = vpop.f32.mrb[0].mxu0
    %v1388 = vpop.f32.mrb[0].mxu0
    %1389 = vdwg.mxu0
    %1390 = vmatprep.subr.bf16.mxu0 %v1064
    %1391 = vmatpush1.bf16.msra.mxu0 %v1063
    %1392 = vmatprep.subr.bf16.mxu0 0
    %1393 = vmatpush1.bf16.msra.mxu0 0
    %1394 = vmatprep.subr.bf16.mxu0 0
    %1395 = vmatpush1.bf16.msra.mxu0 0
    %1396 = vmatprep.subr.bf16.mxu0 0
    %1397 = vmatpush1.bf16.msra.mxu0 0
    %1398 = vmatprep.subr.bf16.mxu0 0
    %1399 = vmatpush1.bf16.msra.mxu0 0
    %1400 = vmatprep.subr.bf16.mxu0 0
    %1401 = vmatpush1.bf16.msra.mxu0 0
    %1402 = vmatprep.subr.bf16.mxu0 0
    %1403 = vmatpush1.bf16.msra.mxu0 0
    %1404 = vmatprep.subr.bf16.mxu0 0
    %1405 = vmatpush1.bf16.msra.mxu0 0
    %1406 = vmatprep.subr.bf16.mxu0 0
    %1407 = vmatpush1.bf16.msra.mxu0 0
    %1408 = vmatprep.subr.bf16.mxu0 0
    %1409 = vmatpush1.bf16.msra.mxu0 0
    %1410 = vmatprep.subr.bf16.mxu0 0
    %1411 = vmatpush1.bf16.msra.mxu0 0
    %1412 = vmatprep.subr.bf16.mxu0 0
    %1413 = vmatpush1.bf16.msra.mxu0 0
    %1414 = vmatprep.subr.bf16.mxu0 0
    %1415 = vmatpush1.bf16.msra.mxu0 0
    %1416 = vmatprep.subr.bf16.mxu0 0
    %1417 = vmatpush1.bf16.msra.mxu0 0
    %1418 = vmatprep.subr.bf16.mxu0 0
    %1419 = vmatpush1.bf16.msra.mxu0 0
    %1420 = vmatprep.subr.bf16.mxu0 0
    %1421 = vmatpush1.bf16.msra.mxu0 0
    %1422 = vmatprep.mubr.bf16.mxu0 0
    %1423 = vmatmul.mubr.bf16.gmra.mrb[0].mxu0 %v1265
    %v1424 = vpop.f32.mrb[0].mxu0
    %v1425 = vadd.f32 %v1384, %v1424
    %v1426 = vpop.f32.mrb[0].mxu0
    %v1427 = vadd.f32 %v1386, %v1426
    %v1428 = vpop.f32.mrb[0].mxu0
    %v1429 = vpop.f32.mrb[0].mxu0
    %1430 = vdwg.mxu0
    %1431 = vmatprep.subr.bf16.mxu0 %v874
    %1432 = vmatpush1.bf16.msra.mxu0 %v873
    %1433 = vmatprep.subr.bf16.mxu0 %v878
    %1434 = vmatpush1.bf16.msra.mxu0 %v877
    %1435 = vmatprep.subr.bf16.mxu0 %v882
    %1436 = vmatpush1.bf16.msra.mxu0 %v881
    %1437 = vmatprep.subr.bf16.mxu0 %v886
    %1438 = vmatpush1.bf16.msra.mxu0 %v885
    %1439 = vmatprep.subr.bf16.mxu0 %v890
    %1440 = vmatpush1.bf16.msra.mxu0 %v889
    %1441 = vmatprep.subr.bf16.mxu0 %v894
    %1442 = vmatpush1.bf16.msra.mxu0 %v893
    %1443 = vmatprep.subr.bf16.mxu0 %v898
    %1444 = vmatpush1.bf16.msra.mxu0 %v897
    %1445 = vmatprep.subr.bf16.mxu0 %v902
    %1446 = vmatpush1.bf16.msra.mxu0 %v901
    %1447 = vmatprep.subr.bf16.mxu0 %v906
    %1448 = vmatpush1.bf16.msra.mxu0 %v905
    %1449 = vmatprep.subr.bf16.mxu0 %v910
    %1450 = vmatpush1.bf16.msra.mxu0 %v909
    %1451 = vmatprep.subr.bf16.mxu0 %v914
    %1452 = vmatpush1.bf16.msra.mxu0 %v913
    %1453 = vmatprep.subr.bf16.mxu0 %v918
    %1454 = vmatpush1.bf16.msra.mxu0 %v917
    %1455 = vmatprep.subr.bf16.mxu0 %v922
    %1456 = vmatpush1.bf16.msra.mxu0 %v921
    %1457 = vmatprep.subr.bf16.mxu0 %v926
    %1458 = vmatpush1.bf16.msra.mxu0 %v925
    %1459 = vmatprep.subr.bf16.mxu0 %v930
    %1460 = vmatpush1.bf16.msra.mxu0 %v929
    %1461 = vmatprep.subr.bf16.mxu0 %v934
    %1462 = vmatpush1.bf16.msra.mxu0 %v933
    %1463 = vmatprep.mubr.bf16.mxu0 %v42
    %1464 = vmatmul.mubr.bf16.gmra.mrb[0].mxu0 %v41
    %v1465 = vpop.f32.mrb[0].mxu0
    %v1466 = vadd.f32 %v278, %v1465
    %v1467 = vpop.f32.mrb[0].mxu0
    %v1468 = vadd.f32 %v282, %v1467
    %v1469 = vpop.f32.mrb[0].mxu0
    %v1470 = vpop.f32.mrb[0].mxu0
    %1471 = vdwg.mxu0
    %1472 = vmatprep.subr.bf16.mxu0 %v938
    %1473 = vmatpush1.bf16.msra.mxu0 %v937
    %1474 = vmatprep.subr.bf16.mxu0 %v942
    %1475 = vmatpush1.bf16.msra.mxu0 %v941
    %1476 = vmatprep.subr.bf16.mxu0 %v946
    %1477 = vmatpush1.bf16.msra.mxu0 %v945
    %1478 = vmatprep.subr.bf16.mxu0 %v950
    %1479 = vmatpush1.bf16.msra.mxu0 %v949
    %1480 = vmatprep.subr.bf16.mxu0 %v954
    %1481 = vmatpush1.bf16.msra.mxu0 %v953
    %1482 = vmatprep.subr.bf16.mxu0 %v958
    %1483 = vmatpush1.bf16.msra.mxu0 %v957
    %1484 = vmatprep.subr.bf16.mxu0 %v962
    %1485 = vmatpush1.bf16.msra.mxu0 %v961
    %1486 = vmatprep.subr.bf16.mxu0 %v966
    %1487 = vmatpush1.bf16.msra.mxu0 %v965
    %1488 = vmatprep.subr.bf16.mxu0 %v970
    %1489 = vmatpush1.bf16.msra.mxu0 %v969
    %1490 = vmatprep.subr.bf16.mxu0 %v974
    %1491 = vmatpush1.bf16.msra.mxu0 %v973
    %1492 = vmatprep.subr.bf16.mxu0 %v978
    %1493 = vmatpush1.bf16.msra.mxu0 %v977
    %1494 = vmatprep.subr.bf16.mxu0 %v982
    %1495 = vmatpush1.bf16.msra.mxu0 %v981
    %1496 = vmatprep.subr.bf16.mxu0 %v986
    %1497 = vmatpush1.bf16.msra.mxu0 %v985
    %1498 = vmatprep.subr.bf16.mxu0 %v990
    %1499 = vmatpush1.bf16.msra.mxu0 %v989
    %1500 = vmatprep.subr.bf16.mxu0 %v994
    %1501 = vmatpush1.bf16.msra.mxu0 %v993
    %1502 = vmatprep.subr.bf16.mxu0 %v998
    %1503 = vmatpush1.bf16.msra.mxu0 %v997
    %1504 = vmatprep.mubr.bf16.mxu0 %v44
    %1505 = vmatmul.mubr.bf16.gmra.mrb[0].mxu0 %v43
    %v1506 = vpop.f32.mrb[0].mxu0
    %v1507 = vadd.f32 %v1466, %v1506
    %v1508 = vpop.f32.mrb[0].mxu0
    %v1509 = vadd.f32 %v1468, %v1508
    %v1510 = vpop.f32.mrb[0].mxu0
    %v1511 = vpop.f32.mrb[0].mxu0
    %1512 = vdwg.mxu0
    %1513 = vmatprep.subr.bf16.mxu0 %v1002
    %1514 = vmatpush1.bf16.msra.mxu0 %v1001
    %1515 = vmatprep.subr.bf16.mxu0 %v1006
    %1516 = vmatpush1.bf16.msra.mxu0 %v1005
    %1517 = vmatprep.subr.bf16.mxu0 %v1010
    %1518 = vmatpush1.bf16.msra.mxu0 %v1009
    %1519 = vmatprep.subr.bf16.mxu0 %v1014
    %1520 = vmatpush1.bf16.msra.mxu0 %v1013
    %1521 = vmatprep.subr.bf16.mxu0 %v1018
    %1522 = vmatpush1.bf16.msra.mxu0 %v1017
    %1523 = vmatprep.subr.bf16.mxu0 %v1022
    %1524 = vmatpush1.bf16.msra.mxu0 %v1021
    %1525 = vmatprep.subr.bf16.mxu0 %v1026
    %1526 = vmatpush1.bf16.msra.mxu0 %v1025
    %1527 = vmatprep.subr.bf16.mxu0 %v1030
    %1528 = vmatpush1.bf16.msra.mxu0 %v1029
    %1529 = vmatprep.subr.bf16.mxu0 %v1034
    %1530 = vmatpush1.bf16.msra.mxu0 %v1033
    %1531 = vmatprep.subr.bf16.mxu0 %v1038
    %1532 = vmatpush1.bf16.msra.mxu0 %v1037
    %1533 = vmatprep.subr.bf16.mxu0 %v1042
    %1534 = vmatpush1.bf16.msra.mxu0 %v1041
    %1535 = vmatprep.subr.bf16.mxu0 %v1046
    %1536 = vmatpush1.bf16.msra.mxu0 %v1045
    %1537 = vmatprep.subr.bf16.mxu0 %v1050
    %1538 = vmatpush1.bf16.msra.mxu0 %v1049
    %1539 = vmatprep.subr.bf16.mxu0 %v1054
    %1540 = vmatpush1.bf16.msra.mxu0 %v1053
    %1541 = vmatprep.subr.bf16.mxu0 %v1058
    %1542 = vmatpush1.bf16.msra.mxu0 %v1057
    %1543 = vmatprep.subr.bf16.mxu0 %v1062
    %1544 = vmatpush1.bf16.msra.mxu0 %v1061
    %1545 = vmatprep.mubr.bf16.mxu0 %v46
    %1546 = vmatmul.mubr.bf16.gmra.mrb[0].mxu0 %v45
    %v1547 = vpop.f32.mrb[0].mxu0
    %v1548 = vadd.f32 %v1507, %v1547
    %v1549 = vpop.f32.mrb[0].mxu0
    %v1550 = vadd.f32 %v1509, %v1549
    %v1551 = vpop.f32.mrb[0].mxu0
    %v1552 = vpop.f32.mrb[0].mxu0
    %1553 = vdwg.mxu0
    %1554 = vmatprep.subr.bf16.mxu0 %v1066
    %1555 = vmatpush1.bf16.msra.mxu0 %v1065
    %1556 = vmatprep.subr.bf16.mxu0 0
    %1557 = vmatpush1.bf16.msra.mxu0 0
    %1558 = vmatprep.subr.bf16.mxu0 0
    %1559 = vmatpush1.bf16.msra.mxu0 0
    %1560 = vmatprep.subr.bf16.mxu0 0
    %1561 = vmatpush1.bf16.msra.mxu0 0
    %1562 = vmatprep.subr.bf16.mxu0 0
    %1563 = vmatpush1.bf16.msra.mxu0 0
    %1564 = vmatprep.subr.bf16.mxu0 0
    %1565 = vmatpush1.bf16.msra.mxu0 0
    %1566 = vmatprep.subr.bf16.mxu0 0
    %1567 = vmatpush1.bf16.msra.mxu0 0
    %1568 = vmatprep.subr.bf16.mxu0 0
    %1569 = vmatpush1.bf16.msra.mxu0 0
    %1570 = vmatprep.subr.bf16.mxu0 0
    %1571 = vmatpush1.bf16.msra.mxu0 0
    %1572 = vmatprep.subr.bf16.mxu0 0
    %1573 = vmatpush1.bf16.msra.mxu0 0
    %1574 = vmatprep.subr.bf16.mxu0 0
    %1575 = vmatpush1.bf16.msra.mxu0 0
    %1576 = vmatprep.subr.bf16.mxu0 0
    %1577 = vmatpush1.bf16.msra.mxu0 0
    %1578 = vmatprep.subr.bf16.mxu0 0
    %1579 = vmatpush1.bf16.msra.mxu0 0
    %1580 = vmatprep.subr.bf16.mxu0 0
    %1581 = vmatpush1.bf16.msra.mxu0 0
    %1582 = vmatprep.subr.bf16.mxu0 0
    %1583 = vmatpush1.bf16.msra.mxu0 0
    %1584 = vmatprep.subr.bf16.mxu0 0
    %1585 = vmatpush1.bf16.msra.mxu0 0
    %1586 = vmatprep.mubr.bf16.mxu0 0
    %1587 = vmatmul.mubr.bf16.gmra.mrb[0].mxu0 %v1265
    %v1588 = vpop.f32.mrb[0].mxu0
    %v1589 = vadd.f32 %v1548, %v1588
    %v1590 = vpop.f32.mrb[0].mxu0
    %v1591 = vadd.f32 %v1550, %v1590
    %v1592 = vpop.f32.mrb[0].mxu0
    %v1593 = vpop.f32.mrb[0].mxu0
    %1594 = vdwg.mxu0
    %v1595 = vmax.f32 %v1425, 0.0
    %v1596 = vmax.f32 %v1427, 0.0
    %v1597 = vmax.f32 %v1589, 0.0
    %v1598 = vmax.f32 %v1591, 0.0
    %v1599 = vpack.c.bf16 %v1595, %v1595
    %v1600 = vpack.c.bf16 %v1596, %v1596
    %v1601 = vpack.c.bf16 %v1597, %v1597
    %v1602 = vpack.c.bf16 %v1598, %v1598
    %v1603 = vld [vmem:[%s3] sm:$0xf]
    %v1604 = vld [vmem:[%s3 + $0x4] sm:$0xf]
    %v1605 = vld [vmem:[%s3 + $0x8] sm:$0xf]
    %v1606 = vld [vmem:[%s3 + $0xc] sm:$0xf]
    %v1607 = vld [vmem:[%s3 + $0x10] sm:$0xf]
    %v1608 = vld [vmem:[%s3 + $0x14] sm:$0xf]
    %v1609 = vld [vmem:[%s3 + $0x18] sm:$0xf]
    %v1610 = vld [vmem:[%s3 + $0x1c] sm:$0xf]
    %v1611 = vld [vmem:[%s3 + $0x20] sm:$0xf]
    %v1612 = vld [vmem:[%s3 + $0x24] sm:$0xf]
    %v1613 = vld [vmem:[%s3 + $0x28] sm:$0xf]
    %v1614 = vld [vmem:[%s3 + $0x2c] sm:$0xf]
    %v1615 = vld [vmem:[%s3 + $0x30] sm:$0xf]
    %v1616 = vld [vmem:[%s3 + $0x34] sm:$0xf]
    %v1617 = vld [vmem:[%s3 + $0x38] sm:$0xf]
    %v1618 = vld [vmem:[%s3 + $0x3c] sm:$0xf]
    %v1619 = vld [vmem:[%s3 + $0x40] sm:$0xf]
    %v1620 = vld [vmem:[%s3 + $0x44] sm:$0xf]
    %v1621 = vld [vmem:[%s3 + $0x48] sm:$0xf]
    %v1622 = vld [vmem:[%s3 + $0x4c] sm:$0xf]
    %v1623 = vld [vmem:[%s3 + $0x50] sm:$0xf]
    %v1624 = vld [vmem:[%s3 + $0x54] sm:$0xf]
    %v1625 = vld [vmem:[%s3 + $0x58] sm:$0xf]
    %v1626 = vld [vmem:[%s3 + $0x5c] sm:$0xf]
    %v1627 = vld [vmem:[%s3 + $0x60] sm:$0xf]
    %v1628 = vld [vmem:[%s3 + $0x64] sm:$0xf]
    %v1629 = vld [vmem:[%s3 + $0x68] sm:$0xf]
    %v1630 = vld [vmem:[%s3 + $0x6c] sm:$0xf]
    %v1631 = vld [vmem:[%s3 + $0x70] sm:$0xf]
    %v1632 = vld [vmem:[%s3 + $0x74] sm:$0xf]
    %v1633 = vld [vmem:[%s3 + $0x78] sm:$0xf]
    %v1634 = vld [vmem:[%s3 + $0x7c] sm:$0xf]
    %v1635 = vld [vmem:[%s3 + $0x80] sm:$0xf]
    %v1636 = vld [vmem:[%s3 + $0x84] sm:$0xf]
    %v1637 = vld [vmem:[%s3 + $0x88] sm:$0xf]
    %v1638 = vld [vmem:[%s3 + $0x8c] sm:$0xf]
    %v1639 = vld [vmem:[%s3 + $0x90] sm:$0xf]
    %v1640 = vld [vmem:[%s3 + $0x94] sm:$0xf]
    %v1641 = vld [vmem:[%s3 + $0x98] sm:$0xf]
    %v1642 = vld [vmem:[%s3 + $0x9c] sm:$0xf]
    %v1643 = vld [vmem:[%s3 + $0xa0] sm:$0xf]
    %v1644 = vld [vmem:[%s3 + $0xa4] sm:$0xf]
    %v1645 = vld [vmem:[%s3 + $0xa8] sm:$0xf]
    %v1646 = vld [vmem:[%s3 + $0xac] sm:$0xf]
    %v1647 = vld [vmem:[%s3 + $0xb0] sm:$0xf]
    %v1648 = vld [vmem:[%s3 + $0xb4] sm:$0xf]
    %v1649 = vld [vmem:[%s3 + $0xb8] sm:$0xf]
    %v1650 = vld [vmem:[%s3 + $0xbc] sm:$0xf]
    %v1651 = vld [vmem:[%s3 + $0xc0] sm:$0xf]
    %v1652 = vld [vmem:[%s3 + $0xc4] sm:$0xf]
    %v1653 = vld [vmem:[%s3 + $0xc8] sm:$0xf]
    %v1654 = vld [vmem:[%s3 + $0xcc] sm:$0xf]
    %v1655 = vld [vmem:[%s3 + $0xd0] sm:$0xf]
    %v1656 = vld [vmem:[%s3 + $0xd4] sm:$0xf]
    %v1657 = vld [vmem:[%s3 + $0xd8] sm:$0xf]
    %v1658 = vld [vmem:[%s3 + $0xdc] sm:$0xf]
    %v1659 = vld [vmem:[%s3 + $0xe0] sm:$0xf]
    %v1660 = vld [vmem:[%s3 + $0xe4] sm:$0xf]
    %v1661 = vld [vmem:[%s3 + $0xe8] sm:$0xf]
    %v1662 = vld [vmem:[%s3 + $0xec] sm:$0xf]
    %v1663 = vld [vmem:[%s3 + $0xf0] sm:$0xf]
    %v1664 = vld [vmem:[%s3 + $0xf4] sm:$0xf]
    %v1665 = vld [vmem:[%s3 + $0xf8] sm:$0xf]
    %v1666 = vld [vmem:[%s3 + $0xfc] sm:$0xf]
    %v1667 = vld [vmem:[%s4] sm:$0x1]
    %v1668 = vunpack.c.l.bf16 %v1667
    %v1669 = vlaneseq
    %v1670 = vshrl.u32 %v1669, 7
    %v1671 = vsub.s32 0, %v1670
    %v1672 = vrot.slane %v1668, %v1671
    %v1737 = vunpack.c.l.b16 %v1603
    %v1738 = vunpack.c.l.b16 %v1604
    %v1739 = vunpack.c.l.b16 %v1605
    %v1740 = vunpack.c.l.b16 %v1606
    %v1741 = vunpack.c.l.b16 %v1607
    %v1742 = vunpack.c.l.b16 %v1608
    %v1743 = vunpack.c.l.b16 %v1609
    %v1744 = vunpack.c.l.b16 %v1610
    %v1745 = vunpack.c.l.b16 %v1611
    %v1746 = vunpack.c.l.b16 %v1612
    %v1747 = vunpack.c.l.b16 %v1613
    %v1748 = vunpack.c.l.b16 %v1614
    %v1749 = vunpack.c.l.b16 %v1615
    %v1750 = vunpack.c.l.b16 %v1616
    %v1751 = vunpack.c.l.b16 %v1617
    %v1752 = vunpack.c.l.b16 %v1618
    %v1753 = vunpack.c.l.b16 %v1619
    %v1754 = vunpack.c.l.b16 %v1620
    %v1755 = vunpack.c.l.b16 %v1621
    %v1756 = vunpack.c.l.b16 %v1622
    %v1757 = vunpack.c.l.b16 %v1623
    %v1758 = vunpack.c.l.b16 %v1624
    %v1759 = vunpack.c.l.b16 %v1625
    %v1760 = vunpack.c.l.b16 %v1626
    %v1761 = vunpack.c.l.b16 %v1627
    %v1762 = vunpack.c.l.b16 %v1628
    %v1763 = vunpack.c.l.b16 %v1629
    %v1764 = vunpack.c.l.b16 %v1630
    %v1765 = vunpack.c.l.b16 %v1631
    %v1766 = vunpack.c.l.b16 %v1632
    %v1767 = vunpack.c.l.b16 %v1633
    %v1768 = vunpack.c.l.b16 %v1634
    %v1769 = vunpack.c.l.b16 %v1635
    %v1770 = vunpack.c.l.b16 %v1636
    %v1771 = vunpack.c.l.b16 %v1637
    %v1772 = vunpack.c.l.b16 %v1638
    %v1773 = vunpack.c.l.b16 %v1639
    %v1774 = vunpack.c.l.b16 %v1640
    %v1775 = vunpack.c.l.b16 %v1641
    %v1776 = vunpack.c.l.b16 %v1642
    %v1777 = vunpack.c.l.b16 %v1643
    %v1778 = vunpack.c.l.b16 %v1644
    %v1779 = vunpack.c.l.b16 %v1645
    %v1780 = vunpack.c.l.b16 %v1646
    %v1781 = vunpack.c.l.b16 %v1647
    %v1782 = vunpack.c.l.b16 %v1648
    %v1783 = vunpack.c.l.b16 %v1649
    %v1784 = vunpack.c.l.b16 %v1650
    %v1785 = vunpack.c.l.b16 %v1651
    %v1786 = vunpack.c.l.b16 %v1652
    %v1787 = vunpack.c.l.b16 %v1653
    %v1788 = vunpack.c.l.b16 %v1654
    %v1789 = vunpack.c.l.b16 %v1655
    %v1790 = vunpack.c.l.b16 %v1656
    %v1791 = vunpack.c.l.b16 %v1657
    %v1792 = vunpack.c.l.b16 %v1658
    %v1793 = vunpack.c.l.b16 %v1659
    %v1794 = vunpack.c.l.b16 %v1660
    %v1795 = vunpack.c.l.b16 %v1661
    %v1796 = vunpack.c.l.b16 %v1662
    %v1797 = vunpack.c.l.b16 %v1663
    %v1798 = vunpack.c.l.b16 %v1664
    %v1799 = vunpack.c.l.b16 %v1665
    %v1800 = vunpack.c.l.b16 %v1666
    %v1801 = vpack.c.b16 %v1738, %v1737
    %v1802 = vpack.c.b16 %v1740, %v1739
    %v1803 = vpack.c.b16 %v1742, %v1741
    %v1804 = vpack.c.b16 %v1744, %v1743
    %v1805 = vpack.c.b16 %v1746, %v1745
    %v1806 = vpack.c.b16 %v1748, %v1747
    %v1807 = vpack.c.b16 %v1750, %v1749
    %v1808 = vpack.c.b16 %v1752, %v1751
    %v1809 = vpack.c.b16 %v1754, %v1753
    %v1810 = vpack.c.b16 %v1756, %v1755
    %v1811 = vpack.c.b16 %v1758, %v1757
    %v1812 = vpack.c.b16 %v1760, %v1759
    %v1813 = vpack.c.b16 %v1762, %v1761
    %v1814 = vpack.c.b16 %v1764, %v1763
    %v1815 = vpack.c.b16 %v1766, %v1765
    %v1816 = vpack.c.b16 %v1768, %v1767
    %v1817 = vpack.c.b16 %v1770, %v1769
    %v1818 = vpack.c.b16 %v1772, %v1771
    %v1819 = vpack.c.b16 %v1774, %v1773
    %v1820 = vpack.c.b16 %v1776, %v1775
    %v1821 = vpack.c.b16 %v1778, %v1777
    %v1822 = vpack.c.b16 %v1780, %v1779
    %v1823 = vpack.c.b16 %v1782, %v1781
    %v1824 = vpack.c.b16 %v1784, %v1783
    %v1825 = vpack.c.b16 %v1786, %v1785
    %v1826 = vpack.c.b16 %v1788, %v1787
    %v1827 = vpack.c.b16 %v1790, %v1789
    %v1828 = vpack.c.b16 %v1792, %v1791
    %v1829 = vpack.c.b16 %v1794, %v1793
    %v1830 = vpack.c.b16 %v1796, %v1795
    %v1831 = vpack.c.b16 %v1798, %v1797
    %v1832 = vpack.c.b16 %v1800, %v1799
    %1865 = vmatprep.subr.bf16.mxu0 0
    %1866 = vmatpush1.bf16.msra.mxu0 %v1801
    %1867 = vmatprep.subr.bf16.mxu0 0
    %1868 = vmatpush1.bf16.msra.mxu0 %v1802
    %1869 = vmatprep.subr.bf16.mxu0 0
    %1870 = vmatpush1.bf16.msra.mxu0 %v1803
    %1871 = vmatprep.subr.bf16.mxu0 0
    %1872 = vmatpush1.bf16.msra.mxu0 %v1804
    %1873 = vmatprep.subr.bf16.mxu0 0
    %1874 = vmatpush1.bf16.msra.mxu0 %v1805
    %1875 = vmatprep.subr.bf16.mxu0 0
    %1876 = vmatpush1.bf16.msra.mxu0 %v1806
    %1877 = vmatprep.subr.bf16.mxu0 0
    %1878 = vmatpush1.bf16.msra.mxu0 %v1807
    %1879 = vmatprep.subr.bf16.mxu0 0
    %1880 = vmatpush1.bf16.msra.mxu0 %v1808
    %1881 = vmatprep.subr.bf16.mxu0 0
    %1882 = vmatpush1.bf16.msra.mxu0 %v1809
    %1883 = vmatprep.subr.bf16.mxu0 0
    %1884 = vmatpush1.bf16.msra.mxu0 %v1810
    %1885 = vmatprep.subr.bf16.mxu0 0
    %1886 = vmatpush1.bf16.msra.mxu0 %v1811
    %1887 = vmatprep.subr.bf16.mxu0 0
    %1888 = vmatpush1.bf16.msra.mxu0 %v1812
    %1889 = vmatprep.subr.bf16.mxu0 0
    %1890 = vmatpush1.bf16.msra.mxu0 %v1813
    %1891 = vmatprep.subr.bf16.mxu0 0
    %1892 = vmatpush1.bf16.msra.mxu0 %v1814
    %1893 = vmatprep.subr.bf16.mxu0 0
    %1894 = vmatpush1.bf16.msra.mxu0 %v1815
    %1895 = vmatprep.subr.bf16.mxu0 0
    %1896 = vmatpush1.bf16.msra.mxu0 %v1816
    %1897 = vmatprep.mubr.bf16.mxu0 %v1600
    %1898 = vmatmul.mubr.bf16.gmra.mrb[0].mxu0 %v1599
    %v1899 = vpop.f32.mrb[0].mxu0
    %v1900 = vadd.f32 %v1672, %v1899
    %v1901 = vpop.f32.mrb[0].mxu0
    %v1902 = vpop.f32.mrb[0].mxu0
    %v1903 = vpop.f32.mrb[0].mxu0
    %1904 = vdwg.mxu0
    %1905 = vmatprep.subr.bf16.mxu0 0
    %1906 = vmatpush1.bf16.msra.mxu0 %v1817
    %1907 = vmatprep.subr.bf16.mxu0 0
    %1908 = vmatpush1.bf16.msra.mxu0 %v1818
    %1909 = vmatprep.subr.bf16.mxu0 0
    %1910 = vmatpush1.bf16.msra.mxu0 %v1819
    %1911 = vmatprep.subr.bf16.mxu0 0
    %1912 = vmatpush1.bf16.msra.mxu0 %v1820
    %1913 = vmatprep.subr.bf16.mxu0 0
    %1914 = vmatpush1.bf16.msra.mxu0 %v1821
    %1915 = vmatprep.subr.bf16.mxu0 0
    %1916 = vmatpush1.bf16.msra.mxu0 %v1822
    %1917 = vmatprep.subr.bf16.mxu0 0
    %1918 = vmatpush1.bf16.msra.mxu0 %v1823
    %1919 = vmatprep.subr.bf16.mxu0 0
    %1920 = vmatpush1.bf16.msra.mxu0 %v1824
    %1921 = vmatprep.subr.bf16.mxu0 0
    %1922 = vmatpush1.bf16.msra.mxu0 %v1825
    %1923 = vmatprep.subr.bf16.mxu0 0
    %1924 = vmatpush1.bf16.msra.mxu0 %v1826
    %1925 = vmatprep.subr.bf16.mxu0 0
    %1926 = vmatpush1.bf16.msra.mxu0 %v1827
    %1927 = vmatprep.subr.bf16.mxu0 0
    %1928 = vmatpush1.bf16.msra.mxu0 %v1828
    %1929 = vmatprep.subr.bf16.mxu0 0
    %1930 = vmatpush1.bf16.msra.mxu0 %v1829
    %1931 = vmatprep.subr.bf16.mxu0 0
    %1932 = vmatpush1.bf16.msra.mxu0 %v1830
    %1933 = vmatprep.subr.bf16.mxu0 0
    %1934 = vmatpush1.bf16.msra.mxu0 %v1831
    %1935 = vmatprep.subr.bf16.mxu0 0
    %1936 = vmatpush1.bf16.msra.mxu0 %v1832
    %1937 = vmatprep.mubr.bf16.mxu0 %v1602
    %1938 = vmatmul.mubr.bf16.gmra.mrb[0].mxu0 %v1601
    %v1939 = vpop.f32.mrb[0].mxu0
    %v1940 = vadd.f32 %v1900, %v1939
    %v1941 = vpop.f32.mrb[0].mxu0
    %v1942 = vpop.f32.mrb[0].mxu0
    %v1943 = vpop.f32.mrb[0].mxu0
    %1944 = vdwg.mxu0
    %v1945 = vpack.c.bf16 %v1940, %v1940
    %v1946 = vld [vmem:[%s5] sm:$0xff]
    %v1947 = vld [vmem:[%s5 + $0x8] sm:$0xff]
    %v1948 = vld [vmem:[%s5 + $0x10] sm:$0xff]
    %v1949 = vld [vmem:[%s5 + $0x18] sm:$0xff]
    %v1950 = vld [vmem:[%s5 + $0x20] sm:$0xff]
    %v1951 = vld [vmem:[%s5 + $0x28] sm:$0xff]
    %v1952 = vld [vmem:[%s5 + $0x30] sm:$0xff]
    %v1953 = vld [vmem:[%s5 + $0x38] sm:$0xff]
    %v1954 = vld [vmem:[%s5 + $0x40] sm:$0xff]
    %v1955 = vld [vmem:[%s5 + $0x48] sm:$0xff]
    %v1956 = vld [vmem:[%s5 + $0x50] sm:$0xff]
    %v1957 = vld [vmem:[%s5 + $0x58] sm:$0xff]
    %v1958 = vld [vmem:[%s5 + $0x60] sm:$0xff]
    %v1959 = vld [vmem:[%s5 + $0x68] sm:$0xff]
    %v1960 = vld [vmem:[%s5 + $0x70] sm:$0xff]
    %v1961 = vld [vmem:[%s5 + $0x78] sm:$0xff]
    %v1962 = vld [vmem:[%s5 + $0x80] sm:$0xff]
    %v1963 = vld [vmem:[%s5 + $0x88] sm:$0xff]
    %v1964 = vld [vmem:[%s5 + $0x90] sm:$0xff]
    %v1965 = vld [vmem:[%s5 + $0x98] sm:$0xff]
    %v1966 = vld [vmem:[%s5 + $0xa0] sm:$0xff]
    %v1967 = vld [vmem:[%s5 + $0xa8] sm:$0xff]
    %v1968 = vld [vmem:[%s5 + $0xb0] sm:$0xff]
    %v1969 = vld [vmem:[%s5 + $0xb8] sm:$0xff]
    %v1970 = vld [vmem:[%s5 + $0xc0] sm:$0xff]
    %v1971 = vld [vmem:[%s5 + $0xc8] sm:$0xff]
    %v1972 = vld [vmem:[%s5 + $0xd0] sm:$0xff]
    %v1973 = vld [vmem:[%s5 + $0xd8] sm:$0xff]
    %v1974 = vld [vmem:[%s5 + $0xe0] sm:$0xff]
    %v1975 = vld [vmem:[%s5 + $0xe8] sm:$0xff]
    %v1976 = vld [vmem:[%s5 + $0xf0] sm:$0xff]
    %v1977 = vld [vmem:[%s5 + $0xf8] sm:$0xff]
    %v1978 = vld [vmem:[%s6] sm:$0xf]
    %v1979 = vunpack.c.l.bf16 %v1978
    %v1981 = vlaneseq
    %v1982 = vshrl.u32 %v1981, 7
    %v1983 = vsub.s32 0, %v1982
    %v1984 = vrot.slane %v1979, %v1983
    %v1985 = vlaneseq
    %v1986 = vshrl.u32 %v1985, 7
    %v1987 = vsub.s32 2, %v1986
    %v1988 = vrot.slane %v1979, %v1987
    %v1989 = vlaneseq
    %v1990 = vshrl.u32 %v1989, 7
    %v1991 = vsub.s32 4, %v1990
    %v1992 = vrot.slane %v1979, %v1991
    %v1993 = vlaneseq
    %v1994 = vshrl.u32 %v1993, 7
    %v1995 = vsub.s32 6, %v1994
    %v1996 = vrot.slane %v1979, %v1995
    %v2001 = vlaneseq
    %v2002 = vshrl.u32 %v2001, 7
    %v2003 = vsub.s32 0, %v2002
    %v2004 = vrot.slane %v1984, %v2003
    %v2005 = vlaneseq
    %v2006 = vshrl.u32 %v2005, 7
    %v2007 = vsub.s32 0, %v2006
    %v2008 = vrot.slane %v1988, %v2007
    %v2009 = vlaneseq
    %v2010 = vshrl.u32 %v2009, 7
    %v2011 = vsub.s32 0, %v2010
    %v2012 = vrot.slane %v1992, %v2011
    %v2013 = vlaneseq
    %v2014 = vshrl.u32 %v2013, 7
    %v2015 = vsub.s32 0, %v2014
    %v2016 = vrot.slane %v1996, %v2015
    %v2049 = vunpack.c.l.b16 %v1946
    %v2050 = vunpack.c.h.b16 %v1946
    %v2051 = vunpack.c.l.b16 %v1947
    %v2052 = vunpack.c.h.b16 %v1947
    %v2053 = vunpack.c.l.b16 %v1948
    %v2054 = vunpack.c.h.b16 %v1948
    %v2055 = vunpack.c.l.b16 %v1949
    %v2056 = vunpack.c.h.b16 %v1949
    %v2057 = vunpack.c.l.b16 %v1950
    %v2058 = vunpack.c.h.b16 %v1950
    %v2059 = vunpack.c.l.b16 %v1951
    %v2060 = vunpack.c.h.b16 %v1951
    %v2061 = vunpack.c.l.b16 %v1952
    %v2062 = vunpack.c.h.b16 %v1952
    %v2063 = vunpack.c.l.b16 %v1953
    %v2064 = vunpack.c.h.b16 %v1953
    %v2065 = vunpack.c.l.b16 %v1954
    %v2066 = vunpack.c.h.b16 %v1954
    %v2067 = vunpack.c.l.b16 %v1955
    %v2068 = vunpack.c.h.b16 %v1955
    %v2069 = vunpack.c.l.b16 %v1956
    %v2070 = vunpack.c.h.b16 %v1956
    %v2071 = vunpack.c.l.b16 %v1957
    %v2072 = vunpack.c.h.b16 %v1957
    %v2073 = vunpack.c.l.b16 %v1958
    %v2074 = vunpack.c.h.b16 %v1958
    %v2075 = vunpack.c.l.b16 %v1959
    %v2076 = vunpack.c.h.b16 %v1959
    %v2077 = vunpack.c.l.b16 %v1960
    %v2078 = vunpack.c.h.b16 %v1960
    %v2079 = vunpack.c.l.b16 %v1961
    %v2080 = vunpack.c.h.b16 %v1961
    %v2081 = vunpack.c.l.b16 %v1962
    %v2082 = vunpack.c.h.b16 %v1962
    %v2083 = vunpack.c.l.b16 %v1963
    %v2084 = vunpack.c.h.b16 %v1963
    %v2085 = vunpack.c.l.b16 %v1964
    %v2086 = vunpack.c.h.b16 %v1964
    %v2087 = vunpack.c.l.b16 %v1965
    %v2088 = vunpack.c.h.b16 %v1965
    %v2089 = vunpack.c.l.b16 %v1966
    %v2090 = vunpack.c.h.b16 %v1966
    %v2091 = vunpack.c.l.b16 %v1967
    %v2092 = vunpack.c.h.b16 %v1967
    %v2093 = vunpack.c.l.b16 %v1968
    %v2094 = vunpack.c.h.b16 %v1968
    %v2095 = vunpack.c.l.b16 %v1969
    %v2096 = vunpack.c.h.b16 %v1969
    %v2097 = vunpack.c.l.b16 %v1970
    %v2098 = vunpack.c.h.b16 %v1970
    %v2099 = vunpack.c.l.b16 %v1971
    %v2100 = vunpack.c.h.b16 %v1971
    %v2101 = vunpack.c.l.b16 %v1972
    %v2102 = vunpack.c.h.b16 %v1972
    %v2103 = vunpack.c.l.b16 %v1973
    %v2104 = vunpack.c.h.b16 %v1973
    %v2105 = vunpack.c.l.b16 %v1974
    %v2106 = vunpack.c.h.b16 %v1974
    %v2107 = vunpack.c.l.b16 %v1975
    %v2108 = vunpack.c.h.b16 %v1975
    %v2109 = vunpack.c.l.b16 %v1976
    %v2110 = vunpack.c.h.b16 %v1976
    %v2111 = vunpack.c.l.b16 %v1977
    %v2112 = vunpack.c.h.b16 %v1977
    %v2113 = vpack.c.b16 %v2053, %v2049
    %v2114 = vpack.c.b16 %v2054, %v2050
    %v2115 = vpack.c.b16 %v2055, %v2051
    %v2116 = vpack.c.b16 %v2056, %v2052
    %v2117 = vpack.c.b16 %v2061, %v2057
    %v2118 = vpack.c.b16 %v2062, %v2058
    %v2119 = vpack.c.b16 %v2063, %v2059
    %v2120 = vpack.c.b16 %v2064, %v2060
    %v2121 = vpack.c.b16 %v2069, %v2065
    %v2122 = vpack.c.b16 %v2070, %v2066
    %v2123 = vpack.c.b16 %v2071, %v2067
    %v2124 = vpack.c.b16 %v2072, %v2068
    %v2125 = vpack.c.b16 %v2077, %v2073
    %v2126 = vpack.c.b16 %v2078, %v2074
    %v2127 = vpack.c.b16 %v2079, %v2075
    %v2128 = vpack.c.b16 %v2080, %v2076
    %v2129 = vpack.c.b16 %v2085, %v2081
    %v2130 = vpack.c.b16 %v2086, %v2082
    %v2131 = vpack.c.b16 %v2087, %v2083
    %v2132 = vpack.c.b16 %v2088, %v2084
    %v2133 = vpack.c.b16 %v2093, %v2089
    %v2134 = vpack.c.b16 %v2094, %v2090
    %v2135 = vpack.c.b16 %v2095, %v2091
    %v2136 = vpack.c.b16 %v2096, %v2092
    %v2137 = vpack.c.b16 %v2101, %v2097
    %v2138 = vpack.c.b16 %v2102, %v2098
    %v2139 = vpack.c.b16 %v2103, %v2099
    %v2140 = vpack.c.b16 %v2104, %v2100
    %v2141 = vpack.c.b16 %v2109, %v2105
    %v2142 = vpack.c.b16 %v2110, %v2106
    %v2143 = vpack.c.b16 %v2111, %v2107
    %v2144 = vpack.c.b16 %v2112, %v2108
    %2177 = vmatprep.subr.bf16.mxu0 %v2114
    %2178 = vmatpush1.bf16.msra.mxu0 %v2113
    %2179 = vmatprep.subr.bf16.mxu0 %v2118
    %2180 = vmatpush1.bf16.msra.mxu0 %v2117
    %2181 = vmatprep.subr.bf16.mxu0 %v2122
    %2182 = vmatpush1.bf16.msra.mxu0 %v2121
    %2183 = vmatprep.subr.bf16.mxu0 %v2126
    %2184 = vmatpush1.bf16.msra.mxu0 %v2125
    %2185 = vmatprep.subr.bf16.mxu0 %v2130
    %2186 = vmatpush1.bf16.msra.mxu0 %v2129
    %2187 = vmatprep.subr.bf16.mxu0 %v2134
    %2188 = vmatpush1.bf16.msra.mxu0 %v2133
    %2189 = vmatprep.subr.bf16.mxu0 %v2138
    %2190 = vmatpush1.bf16.msra.mxu0 %v2137
    %2191 = vmatprep.subr.bf16.mxu0 %v2142
    %2192 = vmatpush1.bf16.msra.mxu0 %v2141
    %2193 = vmatprep.subr.bf16.mxu0 0
    %2194 = vmatpush1.bf16.msra.mxu0 0
    %2195 = vmatprep.subr.bf16.mxu0 0
    %2196 = vmatpush1.bf16.msra.mxu0 0
    %2197 = vmatprep.subr.bf16.mxu0 0
    %2198 = vmatpush1.bf16.msra.mxu0 0
    %2199 = vmatprep.subr.bf16.mxu0 0
    %2200 = vmatpush1.bf16.msra.mxu0 0
    %2201 = vmatprep.subr.bf16.mxu0 0
    %2202 = vmatpush1.bf16.msra.mxu0 0
    %2203 = vmatprep.subr.bf16.mxu0 0
    %2204 = vmatpush1.bf16.msra.mxu0 0
    %2205 = vmatprep.subr.bf16.mxu0 0
    %2206 = vmatpush1.bf16.msra.mxu0 0
    %2207 = vmatprep.subr.bf16.mxu0 0
    %2208 = vmatpush1.bf16.msra.mxu0 0
    %2209 = vmatprep.mubr.bf16.mxu0 0
    %2210 = vmatmul.mubr.bf16.gmra.mrb[0].mxu0 %v1945
    %v2211 = vpop.f32.mrb[0].mxu0
    %v2212 = vadd.f32 %v2004, %v2211
    %v2213 = vpop.f32.mrb[0].mxu0
    %v2214 = vadd.f32 %v2008, %v2213
    %v2215 = vpop.f32.mrb[0].mxu0
    %v2216 = vpop.f32.mrb[0].mxu0
    %2217 = vdwg.mxu0
    %2218 = vmatprep.subr.bf16.mxu0 %v2116
    %2219 = vmatpush1.bf16.msra.mxu0 %v2115
    %2220 = vmatprep.subr.bf16.mxu0 %v2120
    %2221 = vmatpush1.bf16.msra.mxu0 %v2119
    %2222 = vmatprep.subr.bf16.mxu0 %v2124
    %2223 = vmatpush1.bf16.msra.mxu0 %v2123
    %2224 = vmatprep.subr.bf16.mxu0 %v2128
    %2225 = vmatpush1.bf16.msra.mxu0 %v2127
    %2226 = vmatprep.subr.bf16.mxu0 %v2132
    %2227 = vmatpush1.bf16.msra.mxu0 %v2131
    %2228 = vmatprep.subr.bf16.mxu0 %v2136
    %2229 = vmatpush1.bf16.msra.mxu0 %v2135
    %2230 = vmatprep.subr.bf16.mxu0 %v2140
    %2231 = vmatpush1.bf16.msra.mxu0 %v2139
    %2232 = vmatprep.subr.bf16.mxu0 %v2144
    %2233 = vmatpush1.bf16.msra.mxu0 %v2143
    %2234 = vmatprep.subr.bf16.mxu0 0
    %2235 = vmatpush1.bf16.msra.mxu0 0
    %2236 = vmatprep.subr.bf16.mxu0 0
    %2237 = vmatpush1.bf16.msra.mxu0 0
    %2238 = vmatprep.subr.bf16.mxu0 0
    %2239 = vmatpush1.bf16.msra.mxu0 0
    %2240 = vmatprep.subr.bf16.mxu0 0
    %2241 = vmatpush1.bf16.msra.mxu0 0
    %2242 = vmatprep.subr.bf16.mxu0 0
    %2243 = vmatpush1.bf16.msra.mxu0 0
    %2244 = vmatprep.subr.bf16.mxu0 0
    %2245 = vmatpush1.bf16.msra.mxu0 0
    %2246 = vmatprep.subr.bf16.mxu0 0
    %2247 = vmatpush1.bf16.msra.mxu0 0
    %2248 = vmatprep.subr.bf16.mxu0 0
    %2249 = vmatpush1.bf16.msra.mxu0 0
    %2250 = vmatprep.mubr.bf16.mxu0 0
    %2251 = vmatmul.mubr.bf16.gmra.mrb[0].mxu0 %v1945
    %v2252 = vpop.f32.mrb[0].mxu0
    %v2253 = vadd.f32 %v2012, %v2252
    %v2254 = vpop.f32.mrb[0].mxu0
    %v2255 = vadd.f32 %v2016, %v2254
    %v2256 = vpop.f32.mrb[0].mxu0
    %v2257 = vpop.f32.mrb[0].mxu0
    %2258 = vdwg.mxu0
    %v2259 = vmax.f32 %v2212, 0.0
    %v2260 = vmax.f32 %v2214, 0.0
    %v2261 = vmax.f32 %v2253, 0.0
    %v2262 = vmax.f32 %v2255, 0.0
    %v2263 = vpack.c.bf16 %v2259, %v2259
    %v2264 = vpack.c.bf16 %v2260, %v2260
    %v2265 = vpack.c.bf16 %v2261, %v2261
    %v2266 = vpack.c.bf16 %v2262, %v2262
    %v2267 = vld [vmem:[%s7] sm:$0xff]
    %v2268 = vld [vmem:[%s7 + $0x8] sm:$0xff]
    %v2269 = vld [vmem:[%s7 + $0x10] sm:$0xff]
    %v2270 = vld [vmem:[%s7 + $0x18] sm:$0xf]
    %v2271 = vld [vmem:[%s7 + $0x1c] sm:$0xff]
    %v2272 = vld [vmem:[%s7 + $0x24] sm:$0xff]
    %v2273 = vld [vmem:[%s7 + $0x2c] sm:$0xff]
    %v2274 = vld [vmem:[%s7 + $0x34] sm:$0xf]
    %v2275 = vld [vmem:[%s7 + $0x38] sm:$0xff]
    %v2276 = vld [vmem:[%s7 + $0x40] sm:$0xff]
    %v2277 = vld [vmem:[%s7 + $0x48] sm:$0xff]
    %v2278 = vld [vmem:[%s7 + $0x50] sm:$0xf]
    %v2279 = vld [vmem:[%s7 + $0x54] sm:$0xff]
    %v2280 = vld [vmem:[%s7 + $0x5c] sm:$0xff]
    %v2281 = vld [vmem:[%s7 + $0x64] sm:$0xff]
    %v2282 = vld [vmem:[%s7 + $0x6c] sm:$0xf]
    %v2283 = vld [vmem:[%s7 + $0x70] sm:$0xff]
    %v2284 = vld [vmem:[%s7 + $0x78] sm:$0xff]
    %v2285 = vld [vmem:[%s7 + $0x80] sm:$0xff]
    %v2286 = vld [vmem:[%s7 + $0x88] sm:$0xf]
    %v2287 = vld [vmem:[%s7 + $0x8c] sm:$0xff]
    %v2288 = vld [vmem:[%s7 + $0x94] sm:$0xff]
    %v2289 = vld [vmem:[%s7 + $0x9c] sm:$0xff]
    %v2290 = vld [vmem:[%s7 + $0xa4] sm:$0xf]
    %v2291 = vld [vmem:[%s7 + $0xa8] sm:$0xff]
    %v2292 = vld [vmem:[%s7 + $0xb0] sm:$0xff]
    %v2293 = vld [vmem:[%s7 + $0xb8] sm:$0xff]
    %v2294 = vld [vmem:[%s7 + $0xc0] sm:$0xf]
    %v2295 = vld [vmem:[%s7 + $0xc4] sm:$0xff]
    %v2296 = vld [vmem:[%s7 + $0xcc] sm:$0xff]
    %v2297 = vld [vmem:[%s7 + $0xd4] sm:$0xff]
    %v2298 = vld [vmem:[%s7 + $0xdc] sm:$0xf]
    %v2299 = vld [vmem:[%s7 + $0xe0] sm:$0xff]
    %v2300 = vld [vmem:[%s7 + $0xe8] sm:$0xff]
    %v2301 = vld [vmem:[%s7 + $0xf0] sm:$0xff]
    %v2302 = vld [vmem:[%s7 + $0xf8] sm:$0xf]
    %v2303 = vld [vmem:[%s7 + $0xfc] sm:$0xff]
    %v2304 = vld [vmem:[%s7 + $0x104] sm:$0xff]
    %v2305 = vld [vmem:[%s7 + $0x10c] sm:$0xff]
    %v2306 = vld [vmem:[%s7 + $0x114] sm:$0xf]
    %v2307 = vld [vmem:[%s7 + $0x118] sm:$0xff]
    %v2308 = vld [vmem:[%s7 + $0x120] sm:$0xff]
    %v2309 = vld [vmem:[%s7 + $0x128] sm:$0xff]
    %v2310 = vld [vmem:[%s7 + $0x130] sm:$0xf]
    %v2311 = vld [vmem:[%s7 + $0x134] sm:$0xff]
    %v2312 = vld [vmem:[%s7 + $0x13c] sm:$0xff]
    %v2313 = vld [vmem:[%s7 + $0x144] sm:$0xff]
    %v2314 = vld [vmem:[%s7 + $0x14c] sm:$0xf]
    %v2315 = vld [vmem:[%s7 + $0x150] sm:$0xff]
    %v2316 = vld [vmem:[%s7 + $0x158] sm:$0xff]
    %v2317 = vld [vmem:[%s7 + $0x160] sm:$0xff]
    %v2318 = vld [vmem:[%s7 + $0x168] sm:$0xf]
    %v2319 = vld [vmem:[%s7 + $0x16c] sm:$0xff]
    %v2320 = vld [vmem:[%s7 + $0x174] sm:$0xff]
    %v2321 = vld [vmem:[%s7 + $0x17c] sm:$0xff]
    %v2322 = vld [vmem:[%s7 + $0x184] sm:$0xf]
    %v2323 = vld [vmem:[%s7 + $0x188] sm:$0xff]
    %v2324 = vld [vmem:[%s7 + $0x190] sm:$0xff]
    %v2325 = vld [vmem:[%s7 + $0x198] sm:$0xff]
    %v2326 = vld [vmem:[%s7 + $0x1a0] sm:$0xf]
    %v2327 = vld [vmem:[%s7 + $0x1a4] sm:$0xff]
    %v2328 = vld [vmem:[%s7 + $0x1ac] sm:$0xff]
    %v2329 = vld [vmem:[%s7 + $0x1b4] sm:$0xff]
    %v2330 = vld [vmem:[%s7 + $0x1bc] sm:$0xf]
    %v2331 = vld [vmem:[%s7 + $0x1c0] sm:$0xff]
    %v2332 = vld [vmem:[%s7 + $0x1c8] sm:$0xff]
    %v2333 = vld [vmem:[%s7 + $0x1d0] sm:$0xff]
    %v2334 = vld [vmem:[%s7 + $0x1d8] sm:$0xf]
    %v2335 = vld [vmem:[%s7 + $0x1dc] sm:$0xff]
    %v2336 = vld [vmem:[%s7 + $0x1e4] sm:$0xff]
    %v2337 = vld [vmem:[%s7 + $0x1ec] sm:$0xff]
    %v2338 = vld [vmem:[%s7 + $0x1f4] sm:$0xf]
    %v2339 = vld [vmem:[%s7 + $0x1f8] sm:$0xff]
    %v2340 = vld [vmem:[%s7 + $0x200] sm:$0xff]
    %v2341 = vld [vmem:[%s7 + $0x208] sm:$0xff]
    %v2342 = vld [vmem:[%s7 + $0x210] sm:$0xf]
    %v2343 = vld [vmem:[%s7 + $0x214] sm:$0xff]
    %v2344 = vld [vmem:[%s7 + $0x21c] sm:$0xff]
    %v2345 = vld [vmem:[%s7 + $0x224] sm:$0xff]
    %v2346 = vld [vmem:[%s7 + $0x22c] sm:$0xf]
    %v2347 = vld [vmem:[%s7 + $0x230] sm:$0xff]
    %v2348 = vld [vmem:[%s7 + $0x238] sm:$0xff]
    %v2349 = vld [vmem:[%s7 + $0x240] sm:$0xff]
    %v2350 = vld [vmem:[%s7 + $0x248] sm:$0xf]
    %v2351 = vld [vmem:[%s7 + $0x24c] sm:$0xff]
    %v2352 = vld [vmem:[%s7 + $0x254] sm:$0xff]
    %v2353 = vld [vmem:[%s7 + $0x25c] sm:$0xff]
    %v2354 = vld [vmem:[%s7 + $0x264] sm:$0xf]
    %v2355 = vld [vmem:[%s7 + $0x268] sm:$0xff]
    %v2356 = vld [vmem:[%s7 + $0x270] sm:$0xff]
    %v2357 = vld [vmem:[%s7 + $0x278] sm:$0xff]
    %v2358 = vld [vmem:[%s7 + $0x280] sm:$0xf]
    %v2359 = vld [vmem:[%s7 + $0x284] sm:$0xff]
    %v2360 = vld [vmem:[%s7 + $0x28c] sm:$0xff]
    %v2361 = vld [vmem:[%s7 + $0x294] sm:$0xff]
    %v2362 = vld [vmem:[%s7 + $0x29c] sm:$0xf]
    %v2363 = vld [vmem:[%s7 + $0x2a0] sm:$0xff]
    %v2364 = vld [vmem:[%s7 + $0x2a8] sm:$0xff]
    %v2365 = vld [vmem:[%s7 + $0x2b0] sm:$0xff]
    %v2366 = vld [vmem:[%s7 + $0x2b8] sm:$0xf]
    %v2367 = vld [vmem:[%s7 + $0x2bc] sm:$0xff]
    %v2368 = vld [vmem:[%s7 + $0x2c4] sm:$0xff]
    %v2369 = vld [vmem:[%s7 + $0x2cc] sm:$0xff]
    %v2370 = vld [vmem:[%s7 + $0x2d4] sm:$0xf]
    %v2371 = vld [vmem:[%s7 + $0x2d8] sm:$0xff]
    %v2372 = vld [vmem:[%s7 + $0x2e0] sm:$0xff]
    %v2373 = vld [vmem:[%s7 + $0x2e8] sm:$0xff]
    %v2374 = vld [vmem:[%s7 + $0x2f0] sm:$0xf]
    %v2375 = vld [vmem:[%s7 + $0x2f4] sm:$0xff]
    %v2376 = vld [vmem:[%s7 + $0x2fc] sm:$0xff]
    %v2377 = vld [vmem:[%s7 + $0x304] sm:$0xff]
    %v2378 = vld [vmem:[%s7 + $0x30c] sm:$0xf]
    %v2379 = vld [vmem:[%s7 + $0x310] sm:$0xff]
    %v2380 = vld [vmem:[%s7 + $0x318] sm:$0xff]
    %v2381 = vld [vmem:[%s7 + $0x320] sm:$0xff]
    %v2382 = vld [vmem:[%s7 + $0x328] sm:$0xf]
    %v2383 = vld [vmem:[%s7 + $0x32c] sm:$0xff]
    %v2384 = vld [vmem:[%s7 + $0x334] sm:$0xff]
    %v2385 = vld [vmem:[%s7 + $0x33c] sm:$0xff]
    %v2386 = vld [vmem:[%s7 + $0x344] sm:$0xf]
    %v2387 = vld [vmem:[%s7 + $0x348] sm:$0xff]
    %v2388 = vld [vmem:[%s7 + $0x350] sm:$0xff]
    %v2389 = vld [vmem:[%s7 + $0x358] sm:$0xff]
    %v2390 = vld [vmem:[%s7 + $0x360] sm:$0xf]
    %v2391 = vld [vmem:[%s7 + $0x364] sm:$0xff]
    %v2392 = vld [vmem:[%s7 + $0x36c] sm:$0xff]
    %v2393 = vld [vmem:[%s7 + $0x374] sm:$0xff]
    %v2394 = vld [vmem:[%s7 + $0x37c] sm:$0xf]
    %v2395 = vld [vmem:[%s7 + $0x380] sm:$0xff]
    %v2396 = vld [vmem:[%s7 + $0x388] sm:$0xff]
    %v2397 = vld [vmem:[%s7 + $0x390] sm:$0xff]
    %v2398 = vld [vmem:[%s7 + $0x398] sm:$0xf]
    %v2399 = vld [vmem:[%s7 + $0x39c] sm:$0xff]
    %v2400 = vld [vmem:[%s7 + $0x3a4] sm:$0xff]
    %v2401 = vld [vmem:[%s7 + $0x3ac] sm:$0xff]
    %v2402 = vld [vmem:[%s7 + $0x3b4] sm:$0xf]
    %v2403 = vld [vmem:[%s7 + $0x3b8] sm:$0xff]
    %v2404 = vld [vmem:[%s7 + $0x3c0] sm:$0xff]
    %v2405 = vld [vmem:[%s7 + $0x3c8] sm:$0xff]
    %v2406 = vld [vmem:[%s7 + $0x3d0] sm:$0xf]
    %v2407 = vld [vmem:[%s7 + $0x3d4] sm:$0xff]
    %v2408 = vld [vmem:[%s7 + $0x3dc] sm:$0xff]
    %v2409 = vld [vmem:[%s7 + $0x3e4] sm:$0xff]
    %v2410 = vld [vmem:[%s7 + $0x3ec] sm:$0xf]
    %v2411 = vld [vmem:[%s7 + $0x3f0] sm:$0xff]
    %v2412 = vld [vmem:[%s7 + $0x3f8] sm:$0xff]
    %v2413 = vld [vmem:[%s7 + $0x400] sm:$0xff]
    %v2414 = vld [vmem:[%s7 + $0x408] sm:$0xf]
    %v2415 = vld [vmem:[%s7 + $0x40c] sm:$0xff]
    %v2416 = vld [vmem:[%s7 + $0x414] sm:$0xff]
    %v2417 = vld [vmem:[%s7 + $0x41c] sm:$0xff]
    %v2418 = vld [vmem:[%s7 + $0x424] sm:$0xf]
    %v2419 = vld [vmem:[%s7 + $0x428] sm:$0xff]
    %v2420 = vld [vmem:[%s7 + $0x430] sm:$0xff]
    %v2421 = vld [vmem:[%s7 + $0x438] sm:$0xff]
    %v2422 = vld [vmem:[%s7 + $0x440] sm:$0xf]
    %v2423 = vld [vmem:[%s7 + $0x444] sm:$0xff]
    %v2424 = vld [vmem:[%s7 + $0x44c] sm:$0xff]
    %v2425 = vld [vmem:[%s7 + $0x454] sm:$0xff]
    %v2426 = vld [vmem:[%s7 + $0x45c] sm:$0xf]
    %v2427 = vld [vmem:[%s7 + $0x460] sm:$0xff]
    %v2428 = vld [vmem:[%s7 + $0x468] sm:$0xff]
    %v2429 = vld [vmem:[%s7 + $0x470] sm:$0xff]
    %v2430 = vld [vmem:[%s7 + $0x478] sm:$0xf]
    %v2431 = vld [vmem:[%s7 + $0x47c] sm:$0xff]
    %v2432 = vld [vmem:[%s7 + $0x484] sm:$0xff]
    %v2433 = vld [vmem:[%s7 + $0x48c] sm:$0xff]
    %v2434 = vld [vmem:[%s7 + $0x494] sm:$0xf]
    %v2435 = vld [vmem:[%s7 + $0x498] sm:$0xff]
    %v2436 = vld [vmem:[%s7 + $0x4a0] sm:$0xff]
    %v2437 = vld [vmem:[%s7 + $0x4a8] sm:$0xff]
    %v2438 = vld [vmem:[%s7 + $0x4b0] sm:$0xf]
    %v2439 = vld [vmem:[%s7 + $0x4b4] sm:$0xff]
    %v2440 = vld [vmem:[%s7 + $0x4bc] sm:$0xff]
    %v2441 = vld [vmem:[%s7 + $0x4c4] sm:$0xff]
    %v2442 = vld [vmem:[%s7 + $0x4cc] sm:$0xf]
    %v2443 = vld [vmem:[%s7 + $0x4d0] sm:$0xff]
    %v2444 = vld [vmem:[%s7 + $0x4d8] sm:$0xff]
    %v2445 = vld [vmem:[%s7 + $0x4e0] sm:$0xff]
    %v2446 = vld [vmem:[%s7 + $0x4e8] sm:$0xf]
    %v2447 = vld [vmem:[%s7 + $0x4ec] sm:$0xff]
    %v2448 = vld [vmem:[%s7 + $0x4f4] sm:$0xff]
    %v2449 = vld [vmem:[%s7 + $0x4fc] sm:$0xff]
    %v2450 = vld [vmem:[%s7 + $0x504] sm:$0xf]
    %v2451 = vld [vmem:[%s7 + $0x508] sm:$0xff]
    %v2452 = vld [vmem:[%s7 + $0x510] sm:$0xff]
    %v2453 = vld [vmem:[%s7 + $0x518] sm:$0xff]
    %v2454 = vld [vmem:[%s7 + $0x520] sm:$0xf]
    %v2455 = vld [vmem:[%s7 + $0x524] sm:$0xff]
    %v2456 = vld [vmem:[%s7 + $0x52c] sm:$0xff]
    %v2457 = vld [vmem:[%s7 + $0x534] sm:$0xff]
    %v2458 = vld [vmem:[%s7 + $0x53c] sm:$0xf]
    %v2459 = vld [vmem:[%s7 + $0x540] sm:$0xff]
    %v2460 = vld [vmem:[%s7 + $0x548] sm:$0xff]
    %v2461 = vld [vmem:[%s7 + $0x550] sm:$0xff]
    %v2462 = vld [vmem:[%s7 + $0x558] sm:$0xf]
    %v2463 = vld [vmem:[%s7 + $0x55c] sm:$0xff]
    %v2464 = vld [vmem:[%s7 + $0x564] sm:$0xff]
    %v2465 = vld [vmem:[%s7 + $0x56c] sm:$0xff]
    %v2466 = vld [vmem:[%s7 + $0x574] sm:$0xf]
    %v2467 = vld [vmem:[%s7 + $0x578] sm:$0xff]
    %v2468 = vld [vmem:[%s7 + $0x580] sm:$0xff]
    %v2469 = vld [vmem:[%s7 + $0x588] sm:$0xff]
    %v2470 = vld [vmem:[%s7 + $0x590] sm:$0xf]
    %v2471 = vld [vmem:[%s7 + $0x594] sm:$0xff]
    %v2472 = vld [vmem:[%s7 + $0x59c] sm:$0xff]
    %v2473 = vld [vmem:[%s7 + $0x5a4] sm:$0xff]
    %v2474 = vld [vmem:[%s7 + $0x5ac] sm:$0xf]
    %v2475 = vld [vmem:[%s7 + $0x5b0] sm:$0xff]
    %v2476 = vld [vmem:[%s7 + $0x5b8] sm:$0xff]
    %v2477 = vld [vmem:[%s7 + $0x5c0] sm:$0xff]
    %v2478 = vld [vmem:[%s7 + $0x5c8] sm:$0xf]
    %v2479 = vld [vmem:[%s7 + $0x5cc] sm:$0xff]
    %v2480 = vld [vmem:[%s7 + $0x5d4] sm:$0xff]
    %v2481 = vld [vmem:[%s7 + $0x5dc] sm:$0xff]
    %v2482 = vld [vmem:[%s7 + $0x5e4] sm:$0xf]
    %v2483 = vld [vmem:[%s7 + $0x5e8] sm:$0xff]
    %v2484 = vld [vmem:[%s7 + $0x5f0] sm:$0xff]
    %v2485 = vld [vmem:[%s7 + $0x5f8] sm:$0xff]
    %v2486 = vld [vmem:[%s7 + $0x600] sm:$0xf]
    %v2487 = vld [vmem:[%s7 + $0x604] sm:$0xff]
    %v2488 = vld [vmem:[%s7 + $0x60c] sm:$0xff]
    %v2489 = vld [vmem:[%s7 + $0x614] sm:$0xff]
    %v2490 = vld [vmem:[%s7 + $0x61c] sm:$0xf]
    %v2491 = vld [vmem:[%s7 + $0x620] sm:$0xff]
    %v2492 = vld [vmem:[%s7 + $0x628] sm:$0xff]
    %v2493 = vld [vmem:[%s7 + $0x630] sm:$0xff]
    %v2494 = vld [vmem:[%s7 + $0x638] sm:$0xf]
    %v2495 = vld [vmem:[%s7 + $0x63c] sm:$0xff]
    %v2496 = vld [vmem:[%s7 + $0x644] sm:$0xff]
    %v2497 = vld [vmem:[%s7 + $0x64c] sm:$0xff]
    %v2498 = vld [vmem:[%s7 + $0x654] sm:$0xf]
    %v2499 = vld [vmem:[%s7 + $0x658] sm:$0xff]
    %v2500 = vld [vmem:[%s7 + $0x660] sm:$0xff]
    %v2501 = vld [vmem:[%s7 + $0x668] sm:$0xff]
    %v2502 = vld [vmem:[%s7 + $0x670] sm:$0xf]
    %v2503 = vld [vmem:[%s7 + $0x674] sm:$0xff]
    %v2504 = vld [vmem:[%s7 + $0x67c] sm:$0xff]
    %v2505 = vld [vmem:[%s7 + $0x684] sm:$0xff]
    %v2506 = vld [vmem:[%s7 + $0x68c] sm:$0xf]
    %v2507 = vld [vmem:[%s7 + $0x690] sm:$0xff]
    %v2508 = vld [vmem:[%s7 + $0x698] sm:$0xff]
    %v2509 = vld [vmem:[%s7 + $0x6a0] sm:$0xff]
    %v2510 = vld [vmem:[%s7 + $0x6a8] sm:$0xf]
    %v2511 = vld [vmem:[%s7 + $0x6ac] sm:$0xff]
    %v2512 = vld [vmem:[%s7 + $0x6b4] sm:$0xff]
    %v2513 = vld [vmem:[%s7 + $0x6bc] sm:$0xff]
    %v2514 = vld [vmem:[%s7 + $0x6c4] sm:$0xf]
    %v2515 = vld [vmem:[%s7 + $0x6c8] sm:$0xff]
    %v2516 = vld [vmem:[%s7 + $0x6d0] sm:$0xff]
    %v2517 = vld [vmem:[%s7 + $0x6d8] sm:$0xff]
    %v2518 = vld [vmem:[%s7 + $0x6e0] sm:$0xf]
    %v2519 = vld [vmem:[%s7 + $0x6e4] sm:$0xff]
    %v2520 = vld [vmem:[%s7 + $0x6ec] sm:$0xff]
    %v2521 = vld [vmem:[%s7 + $0x6f4] sm:$0xff]
    %v2522 = vld [vmem:[%s7 + $0x6fc] sm:$0xf]
    %v2523 = vld [vmem:[%s8] sm:$0x7f]
    %v2524 = vunpack.c.l.bf16 %v2523
    %v2525 = vunpack.c.h.bf16 %v2523
    %v2528 = vlaneseq
    %v2529 = vshrl.u32 %v2528, 7
    %v2530 = vsub.s32 0, %v2529
    %v2531 = vrot.slane %v2524, %v2530
    %v2532 = vlaneseq
    %v2533 = vshrl.u32 %v2532, 7
    %v2534 = vsub.s32 2, %v2533
    %v2535 = vrot.slane %v2524, %v2534
    %v2536 = vlaneseq
    %v2537 = vshrl.u32 %v2536, 7
    %v2538 = vsub.s32 4, %v2537
    %v2539 = vrot.slane %v2524, %v2538
    %v2540 = vlaneseq
    %v2541 = vshrl.u32 %v2540, 7
    %v2542 = vsub.s32 6, %v2541
    %v2543 = vrot.slane %v2524, %v2542
    %v2544 = vlaneseq
    %v2545 = vshrl.u32 %v2544, 7
    %v2546 = vsub.s32 0, %v2545
    %v2547 = vrot.slane %v2525, %v2546
    %v2548 = vlaneseq
    %v2549 = vshrl.u32 %v2548, 7
    %v2550 = vsub.s32 2, %v2549
    %v2551 = vrot.slane %v2525, %v2550
    %v2552 = vlaneseq
    %v2553 = vshrl.u32 %v2552, 7
    %v2554 = vsub.s32 4, %v2553
    %v2555 = vrot.slane %v2525, %v2554
    %v2563 = vlaneseq
    %v2564 = vshrl.u32 %v2563, 7
    %v2565 = vsub.s32 0, %v2564
    %v2566 = vrot.slane %v2531, %v2565
    %v2567 = vlaneseq
    %v2568 = vshrl.u32 %v2567, 7
    %v2569 = vsub.s32 0, %v2568
    %v2570 = vrot.slane %v2535, %v2569
    %v2571 = vlaneseq
    %v2572 = vshrl.u32 %v2571, 7
    %v2573 = vsub.s32 0, %v2572
    %v2574 = vrot.slane %v2539, %v2573
    %v2575 = vlaneseq
    %v2576 = vshrl.u32 %v2575, 7
    %v2577 = vsub.s32 0, %v2576
    %v2578 = vrot.slane %v2543, %v2577
    %v2579 = vlaneseq
    %v2580 = vshrl.u32 %v2579, 7
    %v2581 = vsub.s32 0, %v2580
    %v2582 = vrot.slane %v2547, %v2581
    %v2583 = vlaneseq
    %v2584 = vshrl.u32 %v2583, 7
    %v2585 = vsub.s32 0, %v2584
    %v2586 = vrot.slane %v2551, %v2585
    %v2587 = vlaneseq
    %v2588 = vshrl.u32 %v2587, 7
    %v2589 = vsub.s32 0, %v2588
    %v2590 = vrot.slane %v2555, %v2589
    %v2847 = vunpack.c.l.b16 %v2267
    %v2848 = vunpack.c.h.b16 %v2267
    %v2849 = vunpack.c.l.b16 %v2268
    %v2850 = vunpack.c.h.b16 %v2268
    %v2851 = vunpack.c.l.b16 %v2269
    %v2852 = vunpack.c.h.b16 %v2269
    %v2853 = vunpack.c.l.b16 %v2270
    %v2854 = vunpack.c.l.b16 %v2271
    %v2855 = vunpack.c.h.b16 %v2271
    %v2856 = vunpack.c.l.b16 %v2272
    %v2857 = vunpack.c.h.b16 %v2272
    %v2858 = vunpack.c.l.b16 %v2273
    %v2859 = vunpack.c.h.b16 %v2273
    %v2860 = vunpack.c.l.b16 %v2274
    %v2861 = vunpack.c.l.b16 %v2275
    %v2862 = vunpack.c.h.b16 %v2275
    %v2863 = vunpack.c.l.b16 %v2276
    %v2864 = vunpack.c.h.b16 %v2276
    %v2865 = vunpack.c.l.b16 %v2277
    %v2866 = vunpack.c.h.b16 %v2277
    %v2867 = vunpack.c.l.b16 %v2278
    %v2868 = vunpack.c.l.b16 %v2279
    %v2869 = vunpack.c.h.b16 %v2279
    %v2870 = vunpack.c.l.b16 %v2280
    %v2871 = vunpack.c.h.b16 %v2280
    %v2872 = vunpack.c.l.b16 %v2281
    %v2873 = vunpack.c.h.b16 %v2281
    %v2874 = vunpack.c.l.b16 %v2282
    %v2875 = vunpack.c.l.b16 %v2283
    %v2876 = vunpack.c.h.b16 %v2283
    %v2877 = vunpack.c.l.b16 %v2284
    %v2878 = vunpack.c.h.b16 %v2284
    %v2879 = vunpack.c.l.b16 %v2285
    %v2880 = vunpack.c.h.b16 %v2285
    %v2881 = vunpack.c.l.b16 %v2286
    %v2882 = vunpack.c.l.b16 %v2287
    %v2883 = vunpack.c.h.b16 %v2287
    %v2884 = vunpack.c.l.b16 %v2288
    %v2885 = vunpack.c.h.b16 %v2288
    %v2886 = vunpack.c.l.b16 %v2289
    %v2887 = vunpack.c.h.b16 %v2289
    %v2888 = vunpack.c.l.b16 %v2290
    %v2889 = vunpack.c.l.b16 %v2291
    %v2890 = vunpack.c.h.b16 %v2291
    %v2891 = vunpack.c.l.b16 %v2292
    %v2892 = vunpack.c.h.b16 %v2292
    %v2893 = vunpack.c.l.b16 %v2293
    %v2894 = vunpack.c.h.b16 %v2293
    %v2895 = vunpack.c.l.b16 %v2294
    %v2896 = vunpack.c.l.b16 %v2295
    %v2897 = vunpack.c.h.b16 %v2295
    %v2898 = vunpack.c.l.b16 %v2296
    %v2899 = vunpack.c.h.b16 %v2296
    %v2900 = vunpack.c.l.b16 %v2297
    %v2901 = vunpack.c.h.b16 %v2297
    %v2902 = vunpack.c.l.b16 %v2298
    %v2903 = vunpack.c.l.b16 %v2299
    %v2904 = vunpack.c.h.b16 %v2299
    %v2905 = vunpack.c.l.b16 %v2300
    %v2906 = vunpack.c.h.b16 %v2300
    %v2907 = vunpack.c.l.b16 %v2301
    %v2908 = vunpack.c.h.b16 %v2301
    %v2909 = vunpack.c.l.b16 %v2302
    %v2910 = vunpack.c.l.b16 %v2303
    %v2911 = vunpack.c.h.b16 %v2303
    %v2912 = vunpack.c.l.b16 %v2304
    %v2913 = vunpack.c.h.b16 %v2304
    %v2914 = vunpack.c.l.b16 %v2305
    %v2915 = vunpack.c.h.b16 %v2305
    %v2916 = vunpack.c.l.b16 %v2306
    %v2917 = vunpack.c.l.b16 %v2307
    %v2918 = vunpack.c.h.b16 %v2307
    %v2919 = vunpack.c.l.b16 %v2308
    %v2920 = vunpack.c.h.b16 %v2308
    %v2921 = vunpack.c.l.b16 %v2309
    %v2922 = vunpack.c.h.b16 %v2309
    %v2923 = vunpack.c.l.b16 %v2310
    %v2924 = vunpack.c.l.b16 %v2311
    %v2925 = vunpack.c.h.b16 %v2311
    %v2926 = vunpack.c.l.b16 %v2312
    %v2927 = vunpack.c.h.b16 %v2312
    %v2928 = vunpack.c.l.b16 %v2313
    %v2929 = vunpack.c.h.b16 %v2313
    %v2930 = vunpack.c.l.b16 %v2314
    %v2931 = vunpack.c.l.b16 %v2315
    %v2932 = vunpack.c.h.b16 %v2315
    %v2933 = vunpack.c.l.b16 %v2316
    %v2934 = vunpack.c.h.b16 %v2316
    %v2935 = vunpack.c.l.b16 %v2317
    %v2936 = vunpack.c.h.b16 %v2317
    %v2937 = vunpack.c.l.b16 %v2318
    %v2938 = vunpack.c.l.b16 %v2319
    %v2939 = vunpack.c.h.b16 %v2319
    %v2940 = vunpack.c.l.b16 %v2320
    %v2941 = vunpack.c.h.b16 %v2320
    %v2942 = vunpack.c.l.b16 %v2321
    %v2943 = vunpack.c.h.b16 %v2321
    %v2944 = vunpack.c.l.b16 %v2322
    %v2945 = vunpack.c.l.b16 %v2323
    %v2946 = vunpack.c.h.b16 %v2323
    %v2947 = vunpack.c.l.b16 %v2324
    %v2948 = vunpack.c.h.b16 %v2324
    %v2949 = vunpack.c.l.b16 %v2325
    %v2950 = vunpack.c.h.b16 %v2325
    %v2951 = vunpack.c.l.b16 %v2326
    %v2952 = vunpack.c.l.b16 %v2327
    %v2953 = vunpack.c.h.b16 %v2327
    %v2954 = vunpack.c.l.b16 %v2328
    %v2955 = vunpack.c.h.b16 %v2328
    %v2956 = vunpack.c.l.b16 %v2329
    %v2957 = vunpack.c.h.b16 %v2329
    %v2958 = vunpack.c.l.b16 %v2330
    %v2959 = vunpack.c.l.b16 %v2331
    %v2960 = vunpack.c.h.b16 %v2331
    %v2961 = vunpack.c.l.b16 %v2332
    %v2962 = vunpack.c.h.b16 %v2332
    %v2963 = vunpack.c.l.b16 %v2333
    %v2964 = vunpack.c.h.b16 %v2333
    %v2965 = vunpack.c.l.b16 %v2334
    %v2966 = vunpack.c.l.b16 %v2335
    %v2967 = vunpack.c.h.b16 %v2335
    %v2968 = vunpack.c.l.b16 %v2336
    %v2969 = vunpack.c.h.b16 %v2336
    %v2970 = vunpack.c.l.b16 %v2337
    %v2971 = vunpack.c.h.b16 %v2337
    %v2972 = vunpack.c.l.b16 %v2338
    %v2973 = vunpack.c.l.b16 %v2339
    %v2974 = vunpack.c.h.b16 %v2339
    %v2975 = vunpack.c.l.b16 %v2340
    %v2976 = vunpack.c.h.b16 %v2340
    %v2977 = vunpack.c.l.b16 %v2341
    %v2978 = vunpack.c.h.b16 %v2341
    %v2979 = vunpack.c.l.b16 %v2342
    %v2980 = vunpack.c.l.b16 %v2343
    %v2981 = vunpack.c.h.b16 %v2343
    %v2982 = vunpack.c.l.b16 %v2344
    %v2983 = vunpack.c.h.b16 %v2344
    %v2984 = vunpack.c.l.b16 %v2345
    %v2985 = vunpack.c.h.b16 %v2345
    %v2986 = vunpack.c.l.b16 %v2346
    %v2987 = vunpack.c.l.b16 %v2347
    %v2988 = vunpack.c.h.b16 %v2347
    %v2989 = vunpack.c.l.b16 %v2348
    %v2990 = vunpack.c.h.b16 %v2348
    %v2991 = vunpack.c.l.b16 %v2349
    %v2992 = vunpack.c.h.b16 %v2349
    %v2993 = vunpack.c.l.b16 %v2350
    %v2994 = vunpack.c.l.b16 %v2351
    %v2995 = vunpack.c.h.b16 %v2351
    %v2996 = vunpack.c.l.b16 %v2352
    %v2997 = vunpack.c.h.b16 %v2352
    %v2998 = vunpack.c.l.b16 %v2353
    %v2999 = vunpack.c.h.b16 %v2353
    %v3000 = vunpack.c.l.b16 %v2354
    %v3001 = vunpack.c.l.b16 %v2355
    %v3002 = vunpack.c.h.b16 %v2355
    %v3003 = vunpack.c.l.b16 %v2356
    %v3004 = vunpack.c.h.b16 %v2356
    %v3005 = vunpack.c.l.b16 %v2357
    %v3006 = vunpack.c.h.b16 %v2357
    %v3007 = vunpack.c.l.b16 %v2358
    %v3008 = vunpack.c.l.b16 %v2359
    %v3009 = vunpack.c.h.b16 %v2359
    %v3010 = vunpack.c.l.b16 %v2360
    %v3011 = vunpack.c.h.b16 %v2360
    %v3012 = vunpack.c.l.b16 %v2361
    %v3013 = vunpack.c.h.b16 %v2361
    %v3014 = vunpack.c.l.b16 %v2362
    %v3015 = vunpack.c.l.b16 %v2363
    %v3016 = vunpack.c.h.b16 %v2363
    %v3017 = vunpack.c.l.b16 %v2364
    %v3018 = vunpack.c.h.b16 %v2364
    %v3019 = vunpack.c.l.b16 %v2365
    %v3020 = vunpack.c.h.b16 %v2365
    %v3021 = vunpack.c.l.b16 %v2366
    %v3022 = vunpack.c.l.b16 %v2367
    %v3023 = vunpack.c.h.b16 %v2367
    %v3024 = vunpack.c.l.b16 %v2368
    %v3025 = vunpack.c.h.b16 %v2368
    %v3026 = vunpack.c.l.b16 %v2369
    %v3027 = vunpack.c.h.b16 %v2369
    %v3028 = vunpack.c.l.b16 %v2370
    %v3029 = vunpack.c.l.b16 %v2371
    %v3030 = vunpack.c.h.b16 %v2371
    %v3031 = vunpack.c.l.b16 %v2372
    %v3032 = vunpack.c.h.b16 %v2372
    %v3033 = vunpack.c.l.b16 %v2373
    %v3034 = vunpack.c.h.b16 %v2373
    %v3035 = vunpack.c.l.b16 %v2374
    %v3036 = vunpack.c.l.b16 %v2375
    %v3037 = vunpack.c.h.b16 %v2375
    %v3038 = vunpack.c.l.b16 %v2376
    %v3039 = vunpack.c.h.b16 %v2376
    %v3040 = vunpack.c.l.b16 %v2377
    %v3041 = vunpack.c.h.b16 %v2377
    %v3042 = vunpack.c.l.b16 %v2378
    %v3043 = vunpack.c.l.b16 %v2379
    %v3044 = vunpack.c.h.b16 %v2379
    %v3045 = vunpack.c.l.b16 %v2380
    %v3046 = vunpack.c.h.b16 %v2380
    %v3047 = vunpack.c.l.b16 %v2381
    %v3048 = vunpack.c.h.b16 %v2381
    %v3049 = vunpack.c.l.b16 %v2382
    %v3050 = vunpack.c.l.b16 %v2383
    %v3051 = vunpack.c.h.b16 %v2383
    %v3052 = vunpack.c.l.b16 %v2384
    %v3053 = vunpack.c.h.b16 %v2384
    %v3054 = vunpack.c.l.b16 %v2385
    %v3055 = vunpack.c.h.b16 %v2385
    %v3056 = vunpack.c.l.b16 %v2386
    %v3057 = vunpack.c.l.b16 %v2387
    %v3058 = vunpack.c.h.b16 %v2387
    %v3059 = vunpack.c.l.b16 %v2388
    %v3060 = vunpack.c.h.b16 %v2388
    %v3061 = vunpack.c.l.b16 %v2389
    %v3062 = vunpack.c.h.b16 %v2389
    %v3063 = vunpack.c.l.b16 %v2390
    %v3064 = vunpack.c.l.b16 %v2391
    %v3065 = vunpack.c.h.b16 %v2391
    %v3066 = vunpack.c.l.b16 %v2392
    %v3067 = vunpack.c.h.b16 %v2392
    %v3068 = vunpack.c.l.b16 %v2393
    %v3069 = vunpack.c.h.b16 %v2393
    %v3070 = vunpack.c.l.b16 %v2394
    %v3071 = vunpack.c.l.b16 %v2395
    %v3072 = vunpack.c.h.b16 %v2395
    %v3073 = vunpack.c.l.b16 %v2396
    %v3074 = vunpack.c.h.b16 %v2396
    %v3075 = vunpack.c.l.b16 %v2397
    %v3076 = vunpack.c.h.b16 %v2397
    %v3077 = vunpack.c.l.b16 %v2398
    %v3078 = vunpack.c.l.b16 %v2399
    %v3079 = vunpack.c.h.b16 %v2399
    %v3080 = vunpack.c.l.b16 %v2400
    %v3081 = vunpack.c.h.b16 %v2400
    %v3082 = vunpack.c.l.b16 %v2401
    %v3083 = vunpack.c.h.b16 %v2401
    %v3084 = vunpack.c.l.b16 %v2402
    %v3085 = vunpack.c.l.b16 %v2403
    %v3086 = vunpack.c.h.b16 %v2403
    %v3087 = vunpack.c.l.b16 %v2404
    %v3088 = vunpack.c.h.b16 %v2404
    %v3089 = vunpack.c.l.b16 %v2405
    %v3090 = vunpack.c.h.b16 %v2405
    %v3091 = vunpack.c.l.b16 %v2406
    %v3092 = vunpack.c.l.b16 %v2407
    %v3093 = vunpack.c.h.b16 %v2407
    %v3094 = vunpack.c.l.b16 %v2408
    %v3095 = vunpack.c.h.b16 %v2408
    %v3096 = vunpack.c.l.b16 %v2409
    %v3097 = vunpack.c.h.b16 %v2409
    %v3098 = vunpack.c.l.b16 %v2410
    %v3099 = vunpack.c.l.b16 %v2411
    %v3100 = vunpack.c.h.b16 %v2411
    %v3101 = vunpack.c.l.b16 %v2412
    %v3102 = vunpack.c.h.b16 %v2412
    %v3103 = vunpack.c.l.b16 %v2413
    %v3104 = vunpack.c.h.b16 %v2413
    %v3105 = vunpack.c.l.b16 %v2414
    %v3106 = vunpack.c.l.b16 %v2415
    %v3107 = vunpack.c.h.b16 %v2415
    %v3108 = vunpack.c.l.b16 %v2416
    %v3109 = vunpack.c.h.b16 %v2416
    %v3110 = vunpack.c.l.b16 %v2417
    %v3111 = vunpack.c.h.b16 %v2417
    %v3112 = vunpack.c.l.b16 %v2418
    %v3113 = vunpack.c.l.b16 %v2419
    %v3114 = vunpack.c.h.b16 %v2419
    %v3115 = vunpack.c.l.b16 %v2420
    %v3116 = vunpack.c.h.b16 %v2420
    %v3117 = vunpack.c.l.b16 %v2421
    %v3118 = vunpack.c.h.b16 %v2421
    %v3119 = vunpack.c.l.b16 %v2422
    %v3120 = vunpack.c.l.b16 %v2423
    %v3121 = vunpack.c.h.b16 %v2423
    %v3122 = vunpack.c.l.b16 %v2424
    %v3123 = vunpack.c.h.b16 %v2424
    %v3124 = vunpack.c.l.b16 %v2425
    %v3125 = vunpack.c.h.b16 %v2425
    %v3126 = vunpack.c.l.b16 %v2426
    %v3127 = vunpack.c.l.b16 %v2427
    %v3128 = vunpack.c.h.b16 %v2427
    %v3129 = vunpack.c.l.b16 %v2428
    %v3130 = vunpack.c.h.b16 %v2428
    %v3131 = vunpack.c.l.b16 %v2429
    %v3132 = vunpack.c.h.b16 %v2429
    %v3133 = vunpack.c.l.b16 %v2430
    %v3134 = vunpack.c.l.b16 %v2431
    %v3135 = vunpack.c.h.b16 %v2431
    %v3136 = vunpack.c.l.b16 %v2432
    %v3137 = vunpack.c.h.b16 %v2432
    %v3138 = vunpack.c.l.b16 %v2433
    %v3139 = vunpack.c.h.b16 %v2433
    %v3140 = vunpack.c.l.b16 %v2434
    %v3141 = vunpack.c.l.b16 %v2435
    %v3142 = vunpack.c.h.b16 %v2435
    %v3143 = vunpack.c.l.b16 %v2436
    %v3144 = vunpack.c.h.b16 %v2436
    %v3145 = vunpack.c.l.b16 %v2437
    %v3146 = vunpack.c.h.b16 %v2437
    %v3147 = vunpack.c.l.b16 %v2438
    %v3148 = vunpack.c.l.b16 %v2439
    %v3149 = vunpack.c.h.b16 %v2439
    %v3150 = vunpack.c.l.b16 %v2440
    %v3151 = vunpack.c.h.b16 %v2440
    %v3152 = vunpack.c.l.b16 %v2441
    %v3153 = vunpack.c.h.b16 %v2441
    %v3154 = vunpack.c.l.b16 %v2442
    %v3155 = vunpack.c.l.b16 %v2443
    %v3156 = vunpack.c.h.b16 %v2443
    %v3157 = vunpack.c.l.b16 %v2444
    %v3158 = vunpack.c.h.b16 %v2444
    %v3159 = vunpack.c.l.b16 %v2445
    %v3160 = vunpack.c.h.b16 %v2445
    %v3161 = vunpack.c.l.b16 %v2446
    %v3162 = vunpack.c.l.b16 %v2447
    %v3163 = vunpack.c.h.b16 %v2447
    %v3164 = vunpack.c.l.b16 %v2448
    %v3165 = vunpack.c.h.b16 %v2448
    %v3166 = vunpack.c.l.b16 %v2449
    %v3167 = vunpack.c.h.b16 %v2449
    %v3168 = vunpack.c.l.b16 %v2450
    %v3169 = vunpack.c.l.b16 %v2451
    %v3170 = vunpack.c.h.b16 %v2451
    %v3171 = vunpack.c.l.b16 %v2452
    %v3172 = vunpack.c.h.b16 %v2452
    %v3173 = vunpack.c.l.b16 %v2453
    %v3174 = vunpack.c.h.b16 %v2453
    %v3175 = vunpack.c.l.b16 %v2454
    %v3176 = vunpack.c.l.b16 %v2455
    %v3177 = vunpack.c.h.b16 %v2455
    %v3178 = vunpack.c.l.b16 %v2456
    %v3179 = vunpack.c.h.b16 %v2456
    %v3180 = vunpack.c.l.b16 %v2457
    %v3181 = vunpack.c.h.b16 %v2457
    %v3182 = vunpack.c.l.b16 %v2458
    %v3183 = vunpack.c.l.b16 %v2459
    %v3184 = vunpack.c.h.b16 %v2459
    %v3185 = vunpack.c.l.b16 %v2460
    %v3186 = vunpack.c.h.b16 %v2460
    %v3187 = vunpack.c.l.b16 %v2461
    %v3188 = vunpack.c.h.b16 %v2461
    %v3189 = vunpack.c.l.b16 %v2462
    %v3190 = vunpack.c.l.b16 %v2463
    %v3191 = vunpack.c.h.b16 %v2463
    %v3192 = vunpack.c.l.b16 %v2464
    %v3193 = vunpack.c.h.b16 %v2464
    %v3194 = vunpack.c.l.b16 %v2465
    %v3195 = vunpack.c.h.b16 %v2465
    %v3196 = vunpack.c.l.b16 %v2466
    %v3197 = vunpack.c.l.b16 %v2467
    %v3198 = vunpack.c.h.b16 %v2467
    %v3199 = vunpack.c.l.b16 %v2468
    %v3200 = vunpack.c.h.b16 %v2468
    %v3201 = vunpack.c.l.b16 %v2469
    %v3202 = vunpack.c.h.b16 %v2469
    %v3203 = vunpack.c.l.b16 %v2470
    %v3204 = vunpack.c.l.b16 %v2471
    %v3205 = vunpack.c.h.b16 %v2471
    %v3206 = vunpack.c.l.b16 %v2472
    %v3207 = vunpack.c.h.b16 %v2472
    %v3208 = vunpack.c.l.b16 %v2473
    %v3209 = vunpack.c.h.b16 %v2473
    %v3210 = vunpack.c.l.b16 %v2474
    %v3211 = vunpack.c.l.b16 %v2475
    %v3212 = vunpack.c.h.b16 %v2475
    %v3213 = vunpack.c.l.b16 %v2476
    %v3214 = vunpack.c.h.b16 %v2476
    %v3215 = vunpack.c.l.b16 %v2477
    %v3216 = vunpack.c.h.b16 %v2477
    %v3217 = vunpack.c.l.b16 %v2478
    %v3218 = vunpack.c.l.b16 %v2479
    %v3219 = vunpack.c.h.b16 %v2479
    %v3220 = vunpack.c.l.b16 %v2480
    %v3221 = vunpack.c.h.b16 %v2480
    %v3222 = vunpack.c.l.b16 %v2481
    %v3223 = vunpack.c.h.b16 %v2481
    %v3224 = vunpack.c.l.b16 %v2482
    %v3225 = vunpack.c.l.b16 %v2483
    %v3226 = vunpack.c.h.b16 %v2483
    %v3227 = vunpack.c.l.b16 %v2484
    %v3228 = vunpack.c.h.b16 %v2484
    %v3229 = vunpack.c.l.b16 %v2485
    %v3230 = vunpack.c.h.b16 %v2485
    %v3231 = vunpack.c.l.b16 %v2486
    %v3232 = vunpack.c.l.b16 %v2487
    %v3233 = vunpack.c.h.b16 %v2487
    %v3234 = vunpack.c.l.b16 %v2488
    %v3235 = vunpack.c.h.b16 %v2488
    %v3236 = vunpack.c.l.b16 %v2489
    %v3237 = vunpack.c.h.b16 %v2489
    %v3238 = vunpack.c.l.b16 %v2490
    %v3239 = vunpack.c.l.b16 %v2491
    %v3240 = vunpack.c.h.b16 %v2491
    %v3241 = vunpack.c.l.b16 %v2492
    %v3242 = vunpack.c.h.b16 %v2492
    %v3243 = vunpack.c.l.b16 %v2493
    %v3244 = vunpack.c.h.b16 %v2493
    %v3245 = vunpack.c.l.b16 %v2494
    %v3246 = vunpack.c.l.b16 %v2495
    %v3247 = vunpack.c.h.b16 %v2495
    %v3248 = vunpack.c.l.b16 %v2496
    %v3249 = vunpack.c.h.b16 %v2496
    %v3250 = vunpack.c.l.b16 %v2497
    %v3251 = vunpack.c.h.b16 %v2497
    %v3252 = vunpack.c.l.b16 %v2498
    %v3253 = vunpack.c.l.b16 %v2499
    %v3254 = vunpack.c.h.b16 %v2499
    %v3255 = vunpack.c.l.b16 %v2500
    %v3256 = vunpack.c.h.b16 %v2500
    %v3257 = vunpack.c.l.b16 %v2501
    %v3258 = vunpack.c.h.b16 %v2501
    %v3259 = vunpack.c.l.b16 %v2502
    %v3260 = vunpack.c.l.b16 %v2503
    %v3261 = vunpack.c.h.b16 %v2503
    %v3262 = vunpack.c.l.b16 %v2504
    %v3263 = vunpack.c.h.b16 %v2504
    %v3264 = vunpack.c.l.b16 %v2505
    %v3265 = vunpack.c.h.b16 %v2505
    %v3266 = vunpack.c.l.b16 %v2506
    %v3267 = vunpack.c.l.b16 %v2507
    %v3268 = vunpack.c.h.b16 %v2507
    %v3269 = vunpack.c.l.b16 %v2508
    %v3270 = vunpack.c.h.b16 %v2508
    %v3271 = vunpack.c.l.b16 %v2509
    %v3272 = vunpack.c.h.b16 %v2509
    %v3273 = vunpack.c.l.b16 %v2510
    %v3274 = vunpack.c.l.b16 %v2511
    %v3275 = vunpack.c.h.b16 %v2511
    %v3276 = vunpack.c.l.b16 %v2512
    %v3277 = vunpack.c.h.b16 %v2512
    %v3278 = vunpack.c.l.b16 %v2513
    %v3279 = vunpack.c.h.b16 %v2513
    %v3280 = vunpack.c.l.b16 %v2514
    %v3281 = vunpack.c.l.b16 %v2515
    %v3282 = vunpack.c.h.b16 %v2515
    %v3283 = vunpack.c.l.b16 %v2516
    %v3284 = vunpack.c.h.b16 %v2516
    %v3285 = vunpack.c.l.b16 %v2517
    %v3286 = vunpack.c.h.b16 %v2517
    %v3287 = vunpack.c.l.b16 %v2518
    %v3288 = vunpack.c.l.b16 %v2519
    %v3289 = vunpack.c.h.b16 %v2519
    %v3290 = vunpack.c.l.b16 %v2520
    %v3291 = vunpack.c.h.b16 %v2520
    %v3292 = vunpack.c.l.b16 %v2521
    %v3293 = vunpack.c.h.b16 %v2521
    %v3294 = vunpack.c.l.b16 %v2522
    %v3295 = vpack.c.b16 %v2854, %v2847
    %v3296 = vpack.c.b16 %v2855, %v2848
    %v3297 = vpack.c.b16 %v2856, %v2849
    %v3298 = vpack.c.b16 %v2857, %v2850
    %v3299 = vpack.c.b16 %v2858, %v2851
    %v3300 = vpack.c.b16 %v2859, %v2852
    %v3301 = vpack.c.b16 %v2860, %v2853
    %v3302 = vpack.c.b16 %v2868, %v2861
    %v3303 = vpack.c.b16 %v2869, %v2862
    %v3304 = vpack.c.b16 %v2870, %v2863
    %v3305 = vpack.c.b16 %v2871, %v2864
    %v3306 = vpack.c.b16 %v2872, %v2865
    %v3307 = vpack.c.b16 %v2873, %v2866
    %v3308 = vpack.c.b16 %v2874, %v2867
    %v3309 = vpack.c.b16 %v2882, %v2875
    %v3310 = vpack.c.b16 %v2883, %v2876
    %v3311 = vpack.c.b16 %v2884, %v2877
    %v3312 = vpack.c.b16 %v2885, %v2878
    %v3313 = vpack.c.b16 %v2886, %v2879
    %v3314 = vpack.c.b16 %v2887, %v2880
    %v3315 = vpack.c.b16 %v2888, %v2881
    %v3316 = vpack.c.b16 %v2896, %v2889
    %v3317 = vpack.c.b16 %v2897, %v2890
    %v3318 = vpack.c.b16 %v2898, %v2891
    %v3319 = vpack.c.b16 %v2899, %v2892
    %v3320 = vpack.c.b16 %v2900, %v2893
    %v3321 = vpack.c.b16 %v2901, %v2894
    %v3322 = vpack.c.b16 %v2902, %v2895
    %v3323 = vpack.c.b16 %v2910, %v2903
    %v3324 = vpack.c.b16 %v2911, %v2904
    %v3325 = vpack.c.b16 %v2912, %v2905
    %v3326 = vpack.c.b16 %v2913, %v2906
    %v3327 = vpack.c.b16 %v2914, %v2907
    %v3328 = vpack.c.b16 %v2915, %v2908
    %v3329 = vpack.c.b16 %v2916, %v2909
    %v3330 = vpack.c.b16 %v2924, %v2917
    %v3331 = vpack.c.b16 %v2925, %v2918
    %v3332 = vpack.c.b16 %v2926, %v2919
    %v3333 = vpack.c.b16 %v2927, %v2920
    %v3334 = vpack.c.b16 %v2928, %v2921
    %v3335 = vpack.c.b16 %v2929, %v2922
    %v3336 = vpack.c.b16 %v2930, %v2923
    %v3337 = vpack.c.b16 %v2938, %v2931
    %v3338 = vpack.c.b16 %v2939, %v2932
    %v3339 = vpack.c.b16 %v2940, %v2933
    %v3340 = vpack.c.b16 %v2941, %v2934
    %v3341 = vpack.c.b16 %v2942, %v2935
    %v3342 = vpack.c.b16 %v2943, %v2936
    %v3343 = vpack.c.b16 %v2944, %v2937
    %v3344 = vpack.c.b16 %v2952, %v2945
    %v3345 = vpack.c.b16 %v2953, %v2946
    %v3346 = vpack.c.b16 %v2954, %v2947
    %v3347 = vpack.c.b16 %v2955, %v2948
    %v3348 = vpack.c.b16 %v2956, %v2949
    %v3349 = vpack.c.b16 %v2957, %v2950
    %v3350 = vpack.c.b16 %v2958, %v2951
    %v3351 = vpack.c.b16 %v2966, %v2959
    %v3352 = vpack.c.b16 %v2967, %v2960
    %v3353 = vpack.c.b16 %v2968, %v2961
    %v3354 = vpack.c.b16 %v2969, %v2962
    %v3355 = vpack.c.b16 %v2970, %v2963
    %v3356 = vpack.c.b16 %v2971, %v2964
    %v3357 = vpack.c.b16 %v2972, %v2965
    %v3358 = vpack.c.b16 %v2980, %v2973
    %v3359 = vpack.c.b16 %v2981, %v2974
    %v3360 = vpack.c.b16 %v2982, %v2975
    %v3361 = vpack.c.b16 %v2983, %v2976
    %v3362 = vpack.c.b16 %v2984, %v2977
    %v3363 = vpack.c.b16 %v2985, %v2978
    %v3364 = vpack.c.b16 %v2986, %v2979
    %v3365 = vpack.c.b16 %v2994, %v2987
    %v3366 = vpack.c.b16 %v2995, %v2988
    %v3367 = vpack.c.b16 %v2996, %v2989
    %v3368 = vpack.c.b16 %v2997, %v2990
    %v3369 = vpack.c.b16 %v2998, %v2991
    %v3370 = vpack.c.b16 %v2999, %v2992
    %v3371 = vpack.c.b16 %v3000, %v2993
    %v3372 = vpack.c.b16 %v3008, %v3001
    %v3373 = vpack.c.b16 %v3009, %v3002
    %v3374 = vpack.c.b16 %v3010, %v3003
    %v3375 = vpack.c.b16 %v3011, %v3004
    %v3376 = vpack.c.b16 %v3012, %v3005
    %v3377 = vpack.c.b16 %v3013, %v3006
    %v3378 = vpack.c.b16 %v3014, %v3007
    %v3379 = vpack.c.b16 %v3022, %v3015
    %v3380 = vpack.c.b16 %v3023, %v3016
    %v3381 = vpack.c.b16 %v3024, %v3017
    %v3382 = vpack.c.b16 %v3025, %v3018
    %v3383 = vpack.c.b16 %v3026, %v3019
    %v3384 = vpack.c.b16 %v3027, %v3020
    %v3385 = vpack.c.b16 %v3028, %v3021
    %v3386 = vpack.c.b16 %v3036, %v3029
    %v3387 = vpack.c.b16 %v3037, %v3030
    %v3388 = vpack.c.b16 %v3038, %v3031
    %v3389 = vpack.c.b16 %v3039, %v3032
    %v3390 = vpack.c.b16 %v3040, %v3033
    %v3391 = vpack.c.b16 %v3041, %v3034
    %v3392 = vpack.c.b16 %v3042, %v3035
    %v3393 = vpack.c.b16 %v3050, %v3043
    %v3394 = vpack.c.b16 %v3051, %v3044
    %v3395 = vpack.c.b16 %v3052, %v3045
    %v3396 = vpack.c.b16 %v3053, %v3046
    %v3397 = vpack.c.b16 %v3054, %v3047
    %v3398 = vpack.c.b16 %v3055, %v3048
    %v3399 = vpack.c.b16 %v3056, %v3049
    %v3400 = vpack.c.b16 %v3064, %v3057
    %v3401 = vpack.c.b16 %v3065, %v3058
    %v3402 = vpack.c.b16 %v3066, %v3059
    %v3403 = vpack.c.b16 %v3067, %v3060
    %v3404 = vpack.c.b16 %v3068, %v3061
    %v3405 = vpack.c.b16 %v3069, %v3062
    %v3406 = vpack.c.b16 %v3070, %v3063
    %v3407 = vpack.c.b16 %v3078, %v3071
    %v3408 = vpack.c.b16 %v3079, %v3072
    %v3409 = vpack.c.b16 %v3080, %v3073
    %v3410 = vpack.c.b16 %v3081, %v3074
    %v3411 = vpack.c.b16 %v3082, %v3075
    %v3412 = vpack.c.b16 %v3083, %v3076
    %v3413 = vpack.c.b16 %v3084, %v3077
    %v3414 = vpack.c.b16 %v3092, %v3085
    %v3415 = vpack.c.b16 %v3093, %v3086
    %v3416 = vpack.c.b16 %v3094, %v3087
    %v3417 = vpack.c.b16 %v3095, %v3088
    %v3418 = vpack.c.b16 %v3096, %v3089
    %v3419 = vpack.c.b16 %v3097, %v3090
    %v3420 = vpack.c.b16 %v3098, %v3091
    %v3421 = vpack.c.b16 %v3106, %v3099
    %v3422 = vpack.c.b16 %v3107, %v3100
    %v3423 = vpack.c.b16 %v3108, %v3101
    %v3424 = vpack.c.b16 %v3109, %v3102
    %v3425 = vpack.c.b16 %v3110, %v3103
    %v3426 = vpack.c.b16 %v3111, %v3104
    %v3427 = vpack.c.b16 %v3112, %v3105
    %v3428 = vpack.c.b16 %v3120, %v3113
    %v3429 = vpack.c.b16 %v3121, %v3114
    %v3430 = vpack.c.b16 %v3122, %v3115
    %v3431 = vpack.c.b16 %v3123, %v3116
    %v3432 = vpack.c.b16 %v3124, %v3117
    %v3433 = vpack.c.b16 %v3125, %v3118
    %v3434 = vpack.c.b16 %v3126, %v3119
    %v3435 = vpack.c.b16 %v3134, %v3127
    %v3436 = vpack.c.b16 %v3135, %v3128
    %v3437 = vpack.c.b16 %v3136, %v3129
    %v3438 = vpack.c.b16 %v3137, %v3130
    %v3439 = vpack.c.b16 %v3138, %v3131
    %v3440 = vpack.c.b16 %v3139, %v3132
    %v3441 = vpack.c.b16 %v3140, %v3133
    %v3442 = vpack.c.b16 %v3148, %v3141
    %v3443 = vpack.c.b16 %v3149, %v3142
    %v3444 = vpack.c.b16 %v3150, %v3143
    %v3445 = vpack.c.b16 %v3151, %v3144
    %v3446 = vpack.c.b16 %v3152, %v3145
    %v3447 = vpack.c.b16 %v3153, %v3146
    %v3448 = vpack.c.b16 %v3154, %v3147
    %v3449 = vpack.c.b16 %v3162, %v3155
    %v3450 = vpack.c.b16 %v3163, %v3156
    %v3451 = vpack.c.b16 %v3164, %v3157
    %v3452 = vpack.c.b16 %v3165, %v3158
    %v3453 = vpack.c.b16 %v3166, %v3159
    %v3454 = vpack.c.b16 %v3167, %v3160
    %v3455 = vpack.c.b16 %v3168, %v3161
    %v3456 = vpack.c.b16 %v3176, %v3169
    %v3457 = vpack.c.b16 %v3177, %v3170
    %v3458 = vpack.c.b16 %v3178, %v3171
    %v3459 = vpack.c.b16 %v3179, %v3172
    %v3460 = vpack.c.b16 %v3180, %v3173
    %v3461 = vpack.c.b16 %v3181, %v3174
    %v3462 = vpack.c.b16 %v3182, %v3175
    %v3463 = vpack.c.b16 %v3190, %v3183
    %v3464 = vpack.c.b16 %v3191, %v3184
    %v3465 = vpack.c.b16 %v3192, %v3185
    %v3466 = vpack.c.b16 %v3193, %v3186
    %v3467 = vpack.c.b16 %v3194, %v3187
    %v3468 = vpack.c.b16 %v3195, %v3188
    %v3469 = vpack.c.b16 %v3196, %v3189
    %v3470 = vpack.c.b16 %v3204, %v3197
    %v3471 = vpack.c.b16 %v3205, %v3198
    %v3472 = vpack.c.b16 %v3206, %v3199
    %v3473 = vpack.c.b16 %v3207, %v3200
    %v3474 = vpack.c.b16 %v3208, %v3201
    %v3475 = vpack.c.b16 %v3209, %v3202
    %v3476 = vpack.c.b16 %v3210, %v3203
    %v3477 = vpack.c.b16 %v3218, %v3211
    %v3478 = vpack.c.b16 %v3219, %v3212
    %v3479 = vpack.c.b16 %v3220, %v3213
    %v3480 = vpack.c.b16 %v3221, %v3214
    %v3481 = vpack.c.b16 %v3222, %v3215
    %v3482 = vpack.c.b16 %v3223, %v3216
    %v3483 = vpack.c.b16 %v3224, %v3217
    %v3484 = vpack.c.b16 %v3232, %v3225
    %v3485 = vpack.c.b16 %v3233, %v3226
    %v3486 = vpack.c.b16 %v3234, %v3227
    %v3487 = vpack.c.b16 %v3235, %v3228
    %v3488 = vpack.c.b16 %v3236, %v3229
    %v3489 = vpack.c.b16 %v3237, %v3230
    %v3490 = vpack.c.b16 %v3238, %v3231
    %v3491 = vpack.c.b16 %v3246, %v3239
    %v3492 = vpack.c.b16 %v3247, %v3240
    %v3493 = vpack.c.b16 %v3248, %v3241
    %v3494 = vpack.c.b16 %v3249, %v3242
    %v3495 = vpack.c.b16 %v3250, %v3243
    %v3496 = vpack.c.b16 %v3251, %v3244
    %v3497 = vpack.c.b16 %v3252, %v3245
    %v3498 = vpack.c.b16 %v3260, %v3253
    %v3499 = vpack.c.b16 %v3261, %v3254
    %v3500 = vpack.c.b16 %v3262, %v3255
    %v3501 = vpack.c.b16 %v3263, %v3256
    %v3502 = vpack.c.b16 %v3264, %v3257
    %v3503 = vpack.c.b16 %v3265, %v3258
    %v3504 = vpack.c.b16 %v3266, %v3259
    %v3505 = vpack.c.b16 %v3274, %v3267
    %v3506 = vpack.c.b16 %v3275, %v3268
    %v3507 = vpack.c.b16 %v3276, %v3269
    %v3508 = vpack.c.b16 %v3277, %v3270
    %v3509 = vpack.c.b16 %v3278, %v3271
    %v3510 = vpack.c.b16 %v3279, %v3272
    %v3511 = vpack.c.b16 %v3280, %v3273
    %v3512 = vpack.c.b16 %v3288, %v3281
    %v3513 = vpack.c.b16 %v3289, %v3282
    %v3514 = vpack.c.b16 %v3290, %v3283
    %v3515 = vpack.c.b16 %v3291, %v3284
    %v3516 = vpack.c.b16 %v3292, %v3285
    %v3517 = vpack.c.b16 %v3293, %v3286
    %v3518 = vpack.c.b16 %v3294, %v3287
    %3743 = vmatprep.subr.bf16.mxu0 %v3296
    %3744 = vmatpush1.bf16.msra.mxu0 %v3295
    %3745 = vmatprep.subr.bf16.mxu0 %v3303
    %3746 = vmatpush1.bf16.msra.mxu0 %v3302
    %3747 = vmatprep.subr.bf16.mxu0 %v3310
    %3748 = vmatpush1.bf16.msra.mxu0 %v3309
    %3749 = vmatprep.subr.bf16.mxu0 %v3317
    %3750 = vmatpush1.bf16.msra.mxu0 %v3316
    %3751 = vmatprep.subr.bf16.mxu0 %v3324
    %3752 = vmatpush1.bf16.msra.mxu0 %v3323
    %3753 = vmatprep.subr.bf16.mxu0 %v3331
    %3754 = vmatpush1.bf16.msra.mxu0 %v3330
    %3755 = vmatprep.subr.bf16.mxu0 %v3338
    %3756 = vmatpush1.bf16.msra.mxu0 %v3337
    %3757 = vmatprep.subr.bf16.mxu0 %v3345
    %3758 = vmatpush1.bf16.msra.mxu0 %v3344
    %3759 = vmatprep.subr.bf16.mxu0 %v3352
    %3760 = vmatpush1.bf16.msra.mxu0 %v3351
    %3761 = vmatprep.subr.bf16.mxu0 %v3359
    %3762 = vmatpush1.bf16.msra.mxu0 %v3358
    %3763 = vmatprep.subr.bf16.mxu0 %v3366
    %3764 = vmatpush1.bf16.msra.mxu0 %v3365
    %3765 = vmatprep.subr.bf16.mxu0 %v3373
    %3766 = vmatpush1.bf16.msra.mxu0 %v3372
    %3767 = vmatprep.subr.bf16.mxu0 %v3380
    %3768 = vmatpush1.bf16.msra.mxu0 %v3379
    %3769 = vmatprep.subr.bf16.mxu0 %v3387
    %3770 = vmatpush1.bf16.msra.mxu0 %v3386
    %3771 = vmatprep.subr.bf16.mxu0 %v3394
    %3772 = vmatpush1.bf16.msra.mxu0 %v3393
    %3773 = vmatprep.subr.bf16.mxu0 %v3401
    %3774 = vmatpush1.bf16.msra.mxu0 %v3400
    %3775 = vmatprep.mubr.bf16.mxu0 %v2264
    %3776 = vmatmul.mubr.bf16.gmra.mrb[0].mxu0 %v2263
    %v3777 = vpop.f32.mrb[0].mxu0
    %v3778 = vadd.f32 %v2566, %v3777
    %v3779 = vpop.f32.mrb[0].mxu0
    %v3780 = vadd.f32 %v2570, %v3779
    %v3781 = vpop.f32.mrb[0].mxu0
    %v3782 = vpop.f32.mrb[0].mxu0
    %3783 = vdwg.mxu0
    %3784 = vmatprep.subr.bf16.mxu0 %v3408
    %3785 = vmatpush1.bf16.msra.mxu0 %v3407
    %3786 = vmatprep.subr.bf16.mxu0 %v3415
    %3787 = vmatpush1.bf16.msra.mxu0 %v3414
    %3788 = vmatprep.subr.bf16.mxu0 %v3422
    %3789 = vmatpush1.bf16.msra.mxu0 %v3421
    %3790 = vmatprep.subr.bf16.mxu0 %v3429
    %3791 = vmatpush1.bf16.msra.mxu0 %v3428
    %3792 = vmatprep.subr.bf16.mxu0 %v3436
    %3793 = vmatpush1.bf16.msra.mxu0 %v3435
    %3794 = vmatprep.subr.bf16.mxu0 %v3443
    %3795 = vmatpush1.bf16.msra.mxu0 %v3442
    %3796 = vmatprep.subr.bf16.mxu0 %v3450
    %3797 = vmatpush1.bf16.msra.mxu0 %v3449
    %3798 = vmatprep.subr.bf16.mxu0 %v3457
    %3799 = vmatpush1.bf16.msra.mxu0 %v3456
    %3800 = vmatprep.subr.bf16.mxu0 %v3464
    %3801 = vmatpush1.bf16.msra.mxu0 %v3463
    %3802 = vmatprep.subr.bf16.mxu0 %v3471
    %3803 = vmatpush1.bf16.msra.mxu0 %v3470
    %3804 = vmatprep.subr.bf16.mxu0 %v3478
    %3805 = vmatpush1.bf16.msra.mxu0 %v3477
    %3806 = vmatprep.subr.bf16.mxu0 %v3485
    %3807 = vmatpush1.bf16.msra.mxu0 %v3484
    %3808 = vmatprep.subr.bf16.mxu0 %v3492
    %3809 = vmatpush1.bf16.msra.mxu0 %v3491
    %3810 = vmatprep.subr.bf16.mxu0 %v3499
    %3811 = vmatpush1.bf16.msra.mxu0 %v3498
    %3812 = vmatprep.subr.bf16.mxu0 %v3506
    %3813 = vmatpush1.bf16.msra.mxu0 %v3505
    %3814 = vmatprep.subr.bf16.mxu0 %v3513
    %3815 = vmatpush1.bf16.msra.mxu0 %v3512
    %3816 = vmatprep.mubr.bf16.mxu0 %v2266
    %3817 = vmatmul.mubr.bf16.gmra.mrb[0].mxu0 %v2265
    %v3818 = vpop.f32.mrb[0].mxu0
    %v3819 = vadd.f32 %v3778, %v3818
    %v3820 = vpop.f32.mrb[0].mxu0
    %v3821 = vadd.f32 %v3780, %v3820
    %v3822 = vpop.f32.mrb[0].mxu0
    %v3823 = vpop.f32.mrb[0].mxu0
    %3824 = vdwg.mxu0
    %3825 = vmatprep.subr.bf16.mxu0 %v3298
    %3826 = vmatpush1.bf16.msra.mxu0 %v3297
    %3827 = vmatprep.subr.bf16.mxu0 %v3305
    %3828 = vmatpush1.bf16.msra.mxu0 %v3304
    %3829 = vmatprep.subr.bf16.mxu0 %v3312
    %3830 = vmatpush1.bf16.msra.mxu0 %v3311
    %3831 = vmatprep.subr.bf16.mxu0 %v3319
    %3832 = vmatpush1.bf16.msra.mxu0 %v3318
    %3833 = vmatprep.subr.bf16.mxu0 %v3326
    %3834 = vmatpush1.bf16.msra.mxu0 %v3325
    %3835 = vmatprep.subr.bf16.mxu0 %v3333
    %3836 = vmatpush1.bf16.msra.mxu0 %v3332
    %3837 = vmatprep.subr.bf16.mxu0 %v3340
    %3838 = vmatpush1.bf16.msra.mxu0 %v3339
    %3839 = vmatprep.subr.bf16.mxu0 %v3347
    %3840 = vmatpush1.bf16.msra.mxu0 %v3346
    %3841 = vmatprep.subr.bf16.mxu0 %v3354
    %3842 = vmatpush1.bf16.msra.mxu0 %v3353
    %3843 = vmatprep.subr.bf16.mxu0 %v3361
    %3844 = vmatpush1.bf16.msra.mxu0 %v3360
    %3845 = vmatprep.subr.bf16.mxu0 %v3368
    %3846 = vmatpush1.bf16.msra.mxu0 %v3367
    %3847 = vmatprep.subr.bf16.mxu0 %v3375
    %3848 = vmatpush1.bf16.msra.mxu0 %v3374
    %3849 = vmatprep.subr.bf16.mxu0 %v3382
    %3850 = vmatpush1.bf16.msra.mxu0 %v3381
    %3851 = vmatprep.subr.bf16.mxu0 %v3389
    %3852 = vmatpush1.bf16.msra.mxu0 %v3388
    %3853 = vmatprep.subr.bf16.mxu0 %v3396
    %3854 = vmatpush1.bf16.msra.mxu0 %v3395
    %3855 = vmatprep.subr.bf16.mxu0 %v3403
    %3856 = vmatpush1.bf16.msra.mxu0 %v3402
    %3857 = vmatprep.mubr.bf16.mxu0 %v2264
    %3858 = vmatmul.mubr.bf16.gmra.mrb[0].mxu0 %v2263
    %v3859 = vpop.f32.mrb[0].mxu0
    %v3860 = vadd.f32 %v2574, %v3859
    %v3861 = vpop.f32.mrb[0].mxu0
    %v3862 = vadd.f32 %v2578, %v3861
    %v3863 = vpop.f32.mrb[0].mxu0
    %v3864 = vpop.f32.mrb[0].mxu0
    %3865 = vdwg.mxu0
    %3866 = vmatprep.subr.bf16.mxu0 %v3410
    %3867 = vmatpush1.bf16.msra.mxu0 %v3409
    %3868 = vmatprep.subr.bf16.mxu0 %v3417
    %3869 = vmatpush1.bf16.msra.mxu0 %v3416
    %3870 = vmatprep.subr.bf16.mxu0 %v3424
    %3871 = vmatpush1.bf16.msra.mxu0 %v3423
    %3872 = vmatprep.subr.bf16.mxu0 %v3431
    %3873 = vmatpush1.bf16.msra.mxu0 %v3430
    %3874 = vmatprep.subr.bf16.mxu0 %v3438
    %3875 = vmatpush1.bf16.msra.mxu0 %v3437
    %3876 = vmatprep.subr.bf16.mxu0 %v3445
    %3877 = vmatpush1.bf16.msra.mxu0 %v3444
    %3878 = vmatprep.subr.bf16.mxu0 %v3452
    %3879 = vmatpush1.bf16.msra.mxu0 %v3451
    %3880 = vmatprep.subr.bf16.mxu0 %v3459
    %3881 = vmatpush1.bf16.msra.mxu0 %v3458
    %3882 = vmatprep.subr.bf16.mxu0 %v3466
    %3883 = vmatpush1.bf16.msra.mxu0 %v3465
    %3884 = vmatprep.subr.bf16.mxu0 %v3473
    %3885 = vmatpush1.bf16.msra.mxu0 %v3472
    %3886 = vmatprep.subr.bf16.mxu0 %v3480
    %3887 = vmatpush1.bf16.msra.mxu0 %v3479
    %3888 = vmatprep.subr.bf16.mxu0 %v3487
    %3889 = vmatpush1.bf16.msra.mxu0 %v3486
    %3890 = vmatprep.subr.bf16.mxu0 %v3494
    %3891 = vmatpush1.bf16.msra.mxu0 %v3493
    %3892 = vmatprep.subr.bf16.mxu0 %v3501
    %3893 = vmatpush1.bf16.msra.mxu0 %v3500
    %3894 = vmatprep.subr.bf16.mxu0 %v3508
    %3895 = vmatpush1.bf16.msra.mxu0 %v3507
    %3896 = vmatprep.subr.bf16.mxu0 %v3515
    %3897 = vmatpush1.bf16.msra.mxu0 %v3514
    %3898 = vmatprep.mubr.bf16.mxu0 %v2266
    %3899 = vmatmul.mubr.bf16.gmra.mrb[0].mxu0 %v2265
    %v3900 = vpop.f32.mrb[0].mxu0
    %v3901 = vadd.f32 %v3860, %v3900
    %v3902 = vpop.f32.mrb[0].mxu0
    %v3903 = vadd.f32 %v3862, %v3902
    %v3904 = vpop.f32.mrb[0].mxu0
    %v3905 = vpop.f32.mrb[0].mxu0
    %3906 = vdwg.mxu0
    %3907 = vmatprep.subr.bf16.mxu0 %v3300
    %3908 = vmatpush1.bf16.msra.mxu0 %v3299
    %3909 = vmatprep.subr.bf16.mxu0 %v3307
    %3910 = vmatpush1.bf16.msra.mxu0 %v3306
    %3911 = vmatprep.subr.bf16.mxu0 %v3314
    %3912 = vmatpush1.bf16.msra.mxu0 %v3313
    %3913 = vmatprep.subr.bf16.mxu0 %v3321
    %3914 = vmatpush1.bf16.msra.mxu0 %v3320
    %3915 = vmatprep.subr.bf16.mxu0 %v3328
    %3916 = vmatpush1.bf16.msra.mxu0 %v3327
    %3917 = vmatprep.subr.bf16.mxu0 %v3335
    %3918 = vmatpush1.bf16.msra.mxu0 %v3334
    %3919 = vmatprep.subr.bf16.mxu0 %v3342
    %3920 = vmatpush1.bf16.msra.mxu0 %v3341
    %3921 = vmatprep.subr.bf16.mxu0 %v3349
    %3922 = vmatpush1.bf16.msra.mxu0 %v3348
    %3923 = vmatprep.subr.bf16.mxu0 %v3356
    %3924 = vmatpush1.bf16.msra.mxu0 %v3355
    %3925 = vmatprep.subr.bf16.mxu0 %v3363
    %3926 = vmatpush1.bf16.msra.mxu0 %v3362
    %3927 = vmatprep.subr.bf16.mxu0 %v3370
    %3928 = vmatpush1.bf16.msra.mxu0 %v3369
    %3929 = vmatprep.subr.bf16.mxu0 %v3377
    %3930 = vmatpush1.bf16.msra.mxu0 %v3376
    %3931 = vmatprep.subr.bf16.mxu0 %v3384
    %3932 = vmatpush1.bf16.msra.mxu0 %v3383
    %3933 = vmatprep.subr.bf16.mxu0 %v3391
    %3934 = vmatpush1.bf16.msra.mxu0 %v3390
    %3935 = vmatprep.subr.bf16.mxu0 %v3398
    %3936 = vmatpush1.bf16.msra.mxu0 %v3397
    %3937 = vmatprep.subr.bf16.mxu0 %v3405
    %3938 = vmatpush1.bf16.msra.mxu0 %v3404
    %3939 = vmatprep.mubr.bf16.mxu0 %v2264
    %3940 = vmatmul.mubr.bf16.gmra.mrb[0].mxu0 %v2263
    %v3941 = vpop.f32.mrb[0].mxu0
    %v3942 = vadd.f32 %v2582, %v3941
    %v3943 = vpop.f32.mrb[0].mxu0
    %v3944 = vadd.f32 %v2586, %v3943
    %v3945 = vpop.f32.mrb[0].mxu0
    %v3946 = vpop.f32.mrb[0].mxu0
    %3947 = vdwg.mxu0
    %3948 = vmatprep.subr.bf16.mxu0 %v3412
    %3949 = vmatpush1.bf16.msra.mxu0 %v3411
    %3950 = vmatprep.subr.bf16.mxu0 %v3419
    %3951 = vmatpush1.bf16.msra.mxu0 %v3418
    %3952 = vmatprep.subr.bf16.mxu0 %v3426
    %3953 = vmatpush1.bf16.msra.mxu0 %v3425
    %3954 = vmatprep.subr.bf16.mxu0 %v3433
    %3955 = vmatpush1.bf16.msra.mxu0 %v3432
    %3956 = vmatprep.subr.bf16.mxu0 %v3440
    %3957 = vmatpush1.bf16.msra.mxu0 %v3439
    %3958 = vmatprep.subr.bf16.mxu0 %v3447
    %3959 = vmatpush1.bf16.msra.mxu0 %v3446
    %3960 = vmatprep.subr.bf16.mxu0 %v3454
    %3961 = vmatpush1.bf16.msra.mxu0 %v3453
    %3962 = vmatprep.subr.bf16.mxu0 %v3461
    %3963 = vmatpush1.bf16.msra.mxu0 %v3460
    %3964 = vmatprep.subr.bf16.mxu0 %v3468
    %3965 = vmatpush1.bf16.msra.mxu0 %v3467
    %3966 = vmatprep.subr.bf16.mxu0 %v3475
    %3967 = vmatpush1.bf16.msra.mxu0 %v3474
    %3968 = vmatprep.subr.bf16.mxu0 %v3482
    %3969 = vmatpush1.bf16.msra.mxu0 %v3481
    %3970 = vmatprep.subr.bf16.mxu0 %v3489
    %3971 = vmatpush1.bf16.msra.mxu0 %v3488
    %3972 = vmatprep.subr.bf16.mxu0 %v3496
    %3973 = vmatpush1.bf16.msra.mxu0 %v3495
    %3974 = vmatprep.subr.bf16.mxu0 %v3503
    %3975 = vmatpush1.bf16.msra.mxu0 %v3502
    %3976 = vmatprep.subr.bf16.mxu0 %v3510
    %3977 = vmatpush1.bf16.msra.mxu0 %v3509
    %3978 = vmatprep.subr.bf16.mxu0 %v3517
    %3979 = vmatpush1.bf16.msra.mxu0 %v3516
    %3980 = vmatprep.mubr.bf16.mxu0 %v2266
    %3981 = vmatmul.mubr.bf16.gmra.mrb[0].mxu0 %v2265
    %v3982 = vpop.f32.mrb[0].mxu0
    %v3983 = vadd.f32 %v3942, %v3982
    %v3984 = vpop.f32.mrb[0].mxu0
    %v3985 = vadd.f32 %v3944, %v3984
    %v3986 = vpop.f32.mrb[0].mxu0
    %v3987 = vpop.f32.mrb[0].mxu0
    %3988 = vdwg.mxu0
    %3989 = vmatprep.subr.bf16.mxu0 0
    %3990 = vmatpush1.bf16.msra.mxu0 %v3301
    %3991 = vmatprep.subr.bf16.mxu0 0
    %3992 = vmatpush1.bf16.msra.mxu0 %v3308
    %3993 = vmatprep.subr.bf16.mxu0 0
    %3994 = vmatpush1.bf16.msra.mxu0 %v3315
    %3995 = vmatprep.subr.bf16.mxu0 0
    %3996 = vmatpush1.bf16.msra.mxu0 %v3322
    %3997 = vmatprep.subr.bf16.mxu0 0
    %3998 = vmatpush1.bf16.msra.mxu0 %v3329
    %3999 = vmatprep.subr.bf16.mxu0 0
    %4000 = vmatpush1.bf16.msra.mxu0 %v3336
    %4001 = vmatprep.subr.bf16.mxu0 0
    %4002 = vmatpush1.bf16.msra.mxu0 %v3343
    %4003 = vmatprep.subr.bf16.mxu0 0
    %4004 = vmatpush1.bf16.msra.mxu0 %v3350
    %4005 = vmatprep.subr.bf16.mxu0 0
    %4006 = vmatpush1.bf16.msra.mxu0 %v3357
    %4007 = vmatprep.subr.bf16.mxu0 0
    %4008 = vmatpush1.bf16.msra.mxu0 %v3364
    %4009 = vmatprep.subr.bf16.mxu0 0
    %4010 = vmatpush1.bf16.msra.mxu0 %v3371
    %4011 = vmatprep.subr.bf16.mxu0 0
    %4012 = vmatpush1.bf16.msra.mxu0 %v3378
    %4013 = vmatprep.subr.bf16.mxu0 0
    %4014 = vmatpush1.bf16.msra.mxu0 %v3385
    %4015 = vmatprep.subr.bf16.mxu0 0
    %4016 = vmatpush1.bf16.msra.mxu0 %v3392
    %4017 = vmatprep.subr.bf16.mxu0 0
    %4018 = vmatpush1.bf16.msra.mxu0 %v3399
    %4019 = vmatprep.subr.bf16.mxu0 0
    %4020 = vmatpush1.bf16.msra.mxu0 %v3406
    %4021 = vmatprep.mubr.bf16.mxu0 %v2264
    %4022 = vmatmul.mubr.bf16.gmra.mrb[0].mxu0 %v2263
    %v4023 = vpop.f32.mrb[0].mxu0
    %v4024 = vadd.f32 %v2590, %v4023
    %v4025 = vpop.f32.mrb[0].mxu0
    %v4026 = vpop.f32.mrb[0].mxu0
    %v4027 = vpop.f32.mrb[0].mxu0
    %4028 = vdwg.mxu0
    %4029 = vmatprep.subr.bf16.mxu0 0
    %4030 = vmatpush1.bf16.msra.mxu0 %v3413
    %4031 = vmatprep.subr.bf16.mxu0 0
    %4032 = vmatpush1.bf16.msra.mxu0 %v3420
    %4033 = vmatprep.subr.bf16.mxu0 0
    %4034 = vmatpush1.bf16.msra.mxu0 %v3427
    %4035 = vmatprep.subr.bf16.mxu0 0
    %4036 = vmatpush1.bf16.msra.mxu0 %v3434
    %4037 = vmatprep.subr.bf16.mxu0 0
    %4038 = vmatpush1.bf16.msra.mxu0 %v3441
    %4039 = vmatprep.subr.bf16.mxu0 0
    %4040 = vmatpush1.bf16.msra.mxu0 %v3448
    %4041 = vmatprep.subr.bf16.mxu0 0
    %4042 = vmatpush1.bf16.msra.mxu0 %v3455
    %4043 = vmatprep.subr.bf16.mxu0 0
    %4044 = vmatpush1.bf16.msra.mxu0 %v3462
    %4045 = vmatprep.subr.bf16.mxu0 0
    %4046 = vmatpush1.bf16.msra.mxu0 %v3469
    %4047 = vmatprep.subr.bf16.mxu0 0
    %4048 = vmatpush1.bf16.msra.mxu0 %v3476
    %4049 = vmatprep.subr.bf16.mxu0 0
    %4050 = vmatpush1.bf16.msra.mxu0 %v3483
    %4051 = vmatprep.subr.bf16.mxu0 0
    %4052 = vmatpush1.bf16.msra.mxu0 %v3490
    %4053 = vmatprep.subr.bf16.mxu0 0
    %4054 = vmatpush1.bf16.msra.mxu0 %v3497
    %4055 = vmatprep.subr.bf16.mxu0 0
    %4056 = vmatpush1.bf16.msra.mxu0 %v3504
    %4057 = vmatprep.subr.bf16.mxu0 0
    %4058 = vmatpush1.bf16.msra.mxu0 %v3511
    %4059 = vmatprep.subr.bf16.mxu0 0
    %4060 = vmatpush1.bf16.msra.mxu0 %v3518
    %4061 = vmatprep.mubr.bf16.mxu0 %v2266
    %4062 = vmatmul.mubr.bf16.gmra.mrb[0].mxu0 %v2265
    %v4063 = vpop.f32.mrb[0].mxu0
    %v4064 = vadd.f32 %v4024, %v4063
    %v4065 = vpop.f32.mrb[0].mxu0
    %v4066 = vpop.f32.mrb[0].mxu0
    %v4067 = vpop.f32.mrb[0].mxu0
    %4068 = vdwg.mxu0
    %v4069 = vxor.u32 %v3819, 2147483648
    %v4070 = vxor.u32 %v3821, 2147483648
    %v4071 = vxor.u32 %v3901, 2147483648
    %v4072 = vxor.u32 %v3903, 2147483648
    %v4073 = vxor.u32 %v3983, 2147483648
    %v4074 = vxor.u32 %v3985, 2147483648
    %v4075 = vxor.u32 %v4064, 2147483648
    %v4076 = vmul.f32 %v4069, 1.442695
    %v4077 = vpow.pop %v4076
    %v4078 = vmul.f32 %v4070, 1.442695
    %v4079 = vpow.pop %v4078
    %v4080 = vmul.f32 %v4071, 1.442695
    %v4081 = vpow.pop %v4080
    %v4082 = vmul.f32 %v4072, 1.442695
    %v4083 = vpow.pop %v4082
    %v4084 = vmul.f32 %v4073, 1.442695
    %v4085 = vpow.pop %v4084
    %v4086 = vmul.f32 %v4074, 1.442695
    %v4087 = vpow.pop %v4086
    %v4088 = vmul.f32 %v4075, 1.442695
    %v4089 = vpow.pop %v4088
    %v4090 = vadd.f32 %v4077, 1.0
    %v4091 = vadd.f32 %v4079, 1.0
    %v4092 = vadd.f32 %v4081, 1.0
    %v4093 = vadd.f32 %v4083, 1.0
    %v4094 = vadd.f32 %v4085, 1.0
    %v4095 = vadd.f32 %v4087, 1.0
    %v4096 = vadd.f32 %v4089, 1.0
    %v4097 = vrcp.pop %v4090
    %v4098 = vmul.f32 1.0, %v4097
    %v4099 = vrcp.pop %v4091
    %v4100 = vmul.f32 1.0, %v4099
    %v4101 = vrcp.pop %v4092
    %v4102 = vmul.f32 1.0, %v4101
    %v4103 = vrcp.pop %v4093
    %v4104 = vmul.f32 1.0, %v4103
    %v4105 = vrcp.pop %v4094
    %v4106 = vmul.f32 1.0, %v4105
    %v4107 = vrcp.pop %v4095
    %v4108 = vmul.f32 1.0, %v4107
    %v4109 = vrcp.pop %v4096
    %v4110 = vmul.f32 1.0, %v4109
    %4111 = vst [vmem:[#allocation2] sm:$0xff] %v4098
    %4112 = vst [vmem:[#allocation2 + $0x8] sm:$0xff] %v4100
    %4113 = vst [vmem:[#allocation2 + $0x10] sm:$0xff] %v4102
    %4114 = vst [vmem:[#allocation2 + $0x18] sm:$0xff] %v4104
    %4115 = vst [vmem:[#allocation2 + $0x20] sm:$0xff] %v4106
    %4116 = vst [vmem:[#allocation2 + $0x28] sm:$0xff] %v4108
    %4117 = vst.msk [vmem:[#allocation2 + $0x30] sm:$0xff] %vm1263, %v4110
    // Predicated region
    $region38: #{tpu_custom_call.1} parent=1 // pred_check
      _
    $region39: #{tpu_custom_call.1} parent=1 // pred_check_branch
      %4119 = sbr.rel (0) target = $region41
    $region40: #{tpu_custom_call.1} parent=1 // pred_region
      %s4121 = ssub.s32 896, 896
      %4122 = vsyncadd [#allocation3], %s4121
      %s4124 = sshll.u32 [#allocation2], 4
      %s4125 = int_to_ptr.vmem [resolvable:$true] %s4124
      %4127 = dma.vmem_to_hbm [thread:$0]  %s4125, 896, %s9, [#allocation3]
    $region41: #{tpu_custom_call.1} parent=1 // pred_fallthru
      _
    // Predicated region
    $region42: #{tpu_custom_call.1} parent=1 // pred_check
      _
    $region43: #{tpu_custom_call.1} parent=1 // pred_check_branch
      %4129 = sbr.rel (0) target = $region45
    $region44: #{tpu_custom_call.1} parent=1 // pred_region
      %4130 = dma.done [#allocation3], 896
    $region45: #{tpu_custom_call.1} parent=1 // pred_fallthru
      _
    %4131 = vsyncpa [#allocation3], 1

</llo_original>
